<compile_context>
chip_gen: v7x
topology: tpu7x:2x2x1
jax: 0.10.0
libtpu: 0.0.40
codegen_flags: <defaults>
</compile_context>

<pallas_src>
import functools

import jax
import jax.numpy as jnp
from jax.experimental import pallas as pl
from jax.experimental.pallas import tpu as pltpu


# --------------------------------------------------------------------------------------
# Pass 1: channel-tiled reduction (sum -> mean, max) over C, lane-dense over H*W.
# --------------------------------------------------------------------------------------
def _reduce_kernel(x_ref, red_ref, *, inv_c):
    """x_ref: (1, tc, HW) block.  red_ref: (1, 2, HW) f32, resident across the c axis."""
    c = pl.program_id(1)
    xv = x_ref[0].astype(jnp.float32)                    # (tc, HW) f32 accumulation
    part_sum = jnp.sum(xv, axis=0, keepdims=True)        # (1, HW)
    part_max = jnp.max(xv, axis=0, keepdims=True)        # (1, HW)

    @pl.when(c == 0)
    def _():
        red_ref[0, 0:1, :] = part_sum
        red_ref[0, 1:2, :] = part_max

    @pl.when(c > 0)
    def _():
        red_ref[0, 0:1, :] = red_ref[0, 0:1, :] + part_sum
        red_ref[0, 1:2, :] = jnp.maximum(red_ref[0, 1:2, :], part_max)

    @pl.when(c == pl.num_programs(1) - 1)
    def _():
        red_ref[0, 0:1, :] = red_ref[0, 0:1, :] * inv_c   # sum -> mean


# --------------------------------------------------------------------------------------
# Pass 2: tiny 7x7 (or 3x3) conv over the 2-channel reduced map + sigmoid.
# --------------------------------------------------------------------------------------
def _conv_sigmoid_kernel(red_ref, w_ref, att_ref, pad_ref, *, H, W, K):
    """red_ref: (1, 2, H, W).  w_ref: (2*K*K,) SMEM.  att_ref: (1, H, W).
    pad_ref: (2, H+2P, W+2P) VMEM scratch (persists across grid steps)."""
    P = K // 2

    # Zero the padded scratch only once: scratch persists across grid steps, the border
    # stays zero forever and the interior is fully overwritten below every step.
    @pl.when(pl.program_id(0) == 0)
    def _():
        pad_ref[...] = jnp.zeros_like(pad_ref)

    pad_ref[0, P:P + H, P:P + W] = red_ref[0, 0]
    pad_ref[1, P:P + H, P:P + W] = red_ref[0, 1]

    # Fully-unrolled shift-and-accumulate; 2*K*K static taps on a 2-channel map is
    # negligible work relative to the x-streaming passes, so it stays off the MXU.
    acc = jnp.zeros((H, W), jnp.float32)
    for ch in range(2):
        for di in range(K):
            for dj in range(K):
                wv = w_ref[ch * K * K + di * K + dj]          # scalar from SMEM
                acc = acc + wv * pad_ref[ch, di:di + H, dj:dj + W]
    att_ref[0] = jax.nn.sigmoid(acc)


# --------------------------------------------------------------------------------------
# Pass 3: lane-dense recalibration out = x * att.
# --------------------------------------------------------------------------------------
def _apply_kernel(x_ref, att_ref, o_ref):
    """x_ref/o_ref: (1, tc, HW) in the input dtype.  att_ref: (1, 1, HW) f32."""
    att = att_ref[0].astype(o_ref.dtype)                  # cast once; (1, HW)
    o_ref[0] = x_ref[0] * att                             # sublane-broadcast multiply


def _choose_tc(C, HW, itemsize, block_bytes_budget=4 * 1024 * 1024):
    """Largest channel tile whose (tc, HW) block stays under ~4 MiB, so that
    2 arrays x 2 double-buffers stays well below the 32 MiB scoped-VMEM default
    (and leaves headroom on v7x's smaller VMEM)."""
    if C * HW * itemsize <= block_bytes_budget:
        return C
    fitting = [t for t in range(8, C, 8)
               if C % t == 0 and t * HW * itemsize <= block_bytes_budget]
    if fitting:
        return max(fitting)
    return 8 if C % 8 == 0 else C


@jax.jit
def spatial_attention_pallas(x, w):
    """x: (N, C, H, W).  w: (1, 2, K, K) conv weight (OIHW, no bias)."""
    N, C, H, W = x.shape
    K = int(w.shape[-1])
    P = K // 2
    HW = H * W

    x_flat = x.reshape(N, C, HW)                 # free, contiguous reshape
    w_flat = w.reshape(-1).astype(jnp.float32)   # (2*K*K,)

    tc = _choose_tc(C, HW, x.dtype.itemsize)
    nct = C // tc

    # ---- Pass 1: channel mean/max maps, lane-dense, channel-tiled ----
    red = pl.pallas_call(
        functools.partial(_reduce_kernel, inv_c=float(1.0 / C)),
        out_shape=jax.ShapeDtypeStruct((N, 2, HW), jnp.float32),
        grid=(N, nct),
        in_specs=[pl.BlockSpec((1, tc, HW), lambda n, c: (n, c, 0))],
        out_specs=pl.BlockSpec((1, 2, HW), lambda n, c: (n, 0, 0)),
        compiler_params=pltpu.CompilerParams(
            dimension_semantics=("parallel", "arbitrary")),
    )(x_flat)

    # ---- Pass 2: 7x7 conv + sigmoid on the (2, H, W) reduced maps ----
    red4 = red.reshape(N, 2, H, W)               # free reshape in the wrapper
    att = pl.pallas_call(
        functools.partial(_conv_sigmoid_kernel, H=H, W=W, K=K),
        out_shape=jax.ShapeDtypeStruct((N, H, W), jnp.float32),
        grid=(N,),
        in_specs=[
            pl.BlockSpec((1, 2, H, W), lambda n: (n, 0, 0, 0)),
            pl.BlockSpec(memory_space=pltpu.SMEM),       # conv weights, scalar reads
        ],
        out_specs=pl.BlockSpec((1, H, W), lambda n: (n, 0, 0)),
        scratch_shapes=[pltpu.VMEM((2, H + 2 * P, W + 2 * P), jnp.float32)],
        compiler_params=pltpu.CompilerParams(
            dimension_semantics=("arbitrary",)),         # sequential: scratch zeroed once
    )(red4, w_flat)

    # ---- Pass 3: out = x * att, lane-dense blocks, both grid axes parallel ----
    att_flat = att.reshape(N, 1, HW)             # free reshape in the wrapper
    out_flat = pl.pallas_call(
        _apply_kernel,
        out_shape=jax.ShapeDtypeStruct((N, C, HW), x.dtype),
        grid=(N, nct),
        in_specs=[
            pl.BlockSpec((1, tc, HW), lambda n, c: (n, c, 0)),
            pl.BlockSpec((1, 1, HW), lambda n, c: (n, 0, 0)),
        ],
        out_specs=pl.BlockSpec((1, tc, HW), lambda n, c: (n, c, 0)),
        compiler_params=pltpu.CompilerParams(
            dimension_semantics=("parallel", "parallel")),
    )(x_flat, att_flat)

    return out_flat.reshape(N, C, H, W)


def spatial_attention_ref(x, w):
    """Pure-JAX reference matching the PyTorch forward exactly."""
    mean_map = jnp.mean(x, axis=1, keepdims=True)
    max_map = jnp.max(x, axis=1, keepdims=True)
    cat = jnp.concatenate([mean_map, max_map], axis=1)      # (N, 2, H, W)
    K = w.shape[-1]
    p = K // 2
    conv = jax.lax.conv_general_dilated(
        cat, w, window_strides=(1, 1), padding=[(p, p), (p, p)],
        dimension_numbers=("NCHW", "OIHW", "NCHW"))
    return x * jax.nn.sigmoid(conv)


if __name__ == "__main__":
    key = jax.random.PRNGKey(0)
    kx, kw = jax.random.split(key)

    # Small shapes consistent with the module: NCHW input, Conv2d(2,1,7,pad=3).
    N, C, H, W = 2, 4, 16, 16
    K = 7
    x = jax.random.normal(kx, (N, C, H, W), dtype=jnp.float32)

    # Deterministic weight init (kaiming-uniform-like bound, like nn.Conv2d default).
    fan_in = 2 * K * K
    bound = 1.0 / jnp.sqrt(jnp.float32(fan_in))
    w = jax.random.uniform(kw, (1, 2, K, K), dtype=jnp.float32,
                           minval=-bound, maxval=bound)

    out = spatial_attention_pallas(x, w)
    out = jax.block_until_ready(out)

    ref = spatial_attention_ref(x, w)
    assert out.shape == ref.shape and out.dtype == ref.dtype
    assert jnp.allclose(out, ref, atol=1e-4, rtol=1e-4), (
        float(jnp.max(jnp.abs(out - ref))))

    print("KERNEL_OK")
</pallas_src>

<mosaic_0001>
module attributes {stable_mosaic.version = 11 : i64} {
  func.func @_reduce_kernel(%arg0: i32, %arg1: i32, %arg2: memref<1x4x256xf32, #tpu.memory_space<vmem>>, %arg3: memref<1x2x256xf32, #tpu.memory_space<vmem>>) attributes {dimension_semantics = [#tpu.dimension_semantics<parallel>, #tpu.dimension_semantics<arbitrary>], iteration_bounds = array<i64: 2, 1>, scalar_prefetch = 0 : i64, scratch_operands = 0 : i64, tpu.core_type = #tpu.core_type<tc>, window_params = [{transform_indices = @transform_0, window_bounds = array<i64: 1, 4, 256>}, {transform_indices = @transform_1, window_bounds = array<i64: 1, 2, 256>}]} {
    %c0 = arith.constant 0 : index
    %c0_0 = arith.constant 0 : index
    %c0_1 = arith.constant 0 : index
    %0 = vector.load %arg2[%c0, %c0_0, %c0_1] : memref<1x4x256xf32, #tpu.memory_space<vmem>>, vector<1x4x256xf32>
    %1 = vector.shape_cast %0 : vector<1x4x256xf32> to vector<4x256xf32>
    %cst = arith.constant dense<0.000000e+00> : vector<256xf32>
    %2 = vector.multi_reduction <add>, %1, %cst [0] : vector<4x256xf32> to vector<256xf32>
    %3 = vector.shape_cast %2 : vector<256xf32> to vector<1x256xf32>
    %cst_2 = arith.constant dense<0xFF800000> : vector<256xf32>
    %4 = vector.multi_reduction <maximumf>, %1, %cst_2 [0] : vector<4x256xf32> to vector<256xf32>
    %5 = vector.shape_cast %4 : vector<256xf32> to vector<1x256xf32>
    %c0_i32 = arith.constant 0 : i32
    %6 = arith.cmpi eq, %arg1, %c0_i32 : i32
    %7 = arith.extui %6 : i1 to i32
    %c0_i32_3 = arith.constant 0 : i32
    %8 = arith.cmpi ne, %7, %c0_i32_3 : i32
    scf.if %8 {
      %c0_8 = arith.constant 0 : index
      %c0_9 = arith.constant 0 : index
      %c0_10 = arith.constant 0 : index
      %15 = vector.load %arg3[%c0_8, %c0_9, %c0_10] : memref<1x2x256xf32, #tpu.memory_space<vmem>>, vector<1x1x256xf32>
      %16 = vector.shape_cast %15 : vector<1x1x256xf32> to vector<1x256xf32>
      %17 = vector.shape_cast %3 : vector<1x256xf32> to vector<1x1x256xf32>
      tpu.vector_store %arg3[%c0_8, %c0_9, %c0_10], %17 {strides = array<i32>} : memref<1x2x256xf32, #tpu.memory_space<vmem>>, vector<1x1x256xf32>,
      %c0_11 = arith.constant 0 : index
      %c1 = arith.constant 1 : index
      %c0_12 = arith.constant 0 : index
      %18 = vector.load %arg3[%c0_11, %c1, %c0_12] : memref<1x2x256xf32, #tpu.memory_space<vmem>>, vector<1x1x256xf32>
      %19 = vector.shape_cast %18 : vector<1x1x256xf32> to vector<1x256xf32>
      %20 = vector.shape_cast %5 : vector<1x256xf32> to vector<1x1x256xf32>
      tpu.vector_store %arg3[%c0_11, %c1, %c0_12], %20 {strides = array<i32>} : memref<1x2x256xf32, #tpu.memory_space<vmem>>, vector<1x1x256xf32>,
    } else {
    }
    %c0_i32_4 = arith.constant 0 : i32
    %9 = arith.cmpi sgt, %arg1, %c0_i32_4 : i32
    %10 = arith.extui %9 : i1 to i32
    %c0_i32_5 = arith.constant 0 : i32
    %11 = arith.cmpi ne, %10, %c0_i32_5 : i32
    scf.if %11 {
      %c0_8 = arith.constant 0 : index
      %c0_9 = arith.constant 0 : index
      %c0_10 = arith.constant 0 : index
      %15 = vector.load %arg3[%c0_8, %c0_9, %c0_10] : memref<1x2x256xf32, #tpu.memory_space<vmem>>, vector<1x1x256xf32>
      %16 = vector.shape_cast %15 : vector<1x1x256xf32> to vector<1x256xf32>
      %17 = arith.addf %16, %3 : vector<1x256xf32>
      %c0_11 = arith.constant 0 : index
      %c0_12 = arith.constant 0 : index
      %c0_13 = arith.constant 0 : index
      %18 = vector.load %arg3[%c0_11, %c0_12, %c0_13] : memref<1x2x256xf32, #tpu.memory_space<vmem>>, vector<1x1x256xf32>
      %19 = vector.shape_cast %18 : vector<1x1x256xf32> to vector<1x256xf32>
      %20 = vector.shape_cast %17 : vector<1x256xf32> to vector<1x1x256xf32>
      tpu.vector_store %arg3[%c0_11, %c0_12, %c0_13], %20 {strides = array<i32>} : memref<1x2x256xf32, #tpu.memory_space<vmem>>, vector<1x1x256xf32>,
      %c0_14 = arith.constant 0 : index
      %c1 = arith.constant 1 : index
      %c0_15 = arith.constant 0 : index
      %21 = vector.load %arg3[%c0_14, %c1, %c0_15] : memref<1x2x256xf32, #tpu.memory_space<vmem>>, vector<1x1x256xf32>
      %22 = vector.shape_cast %21 : vector<1x1x256xf32> to vector<1x256xf32>
      %23 = arith.maximumf %22, %5 : vector<1x256xf32>
      %c0_16 = arith.constant 0 : index
      %c1_17 = arith.constant 1 : index
      %c0_18 = arith.constant 0 : index
      %24 = vector.load %arg3[%c0_16, %c1_17, %c0_18] : memref<1x2x256xf32, #tpu.memory_space<vmem>>, vector<1x1x256xf32>
      %25 = vector.shape_cast %24 : vector<1x1x256xf32> to vector<1x256xf32>
      %26 = vector.shape_cast %23 : vector<1x256xf32> to vector<1x1x256xf32>
      tpu.vector_store %arg3[%c0_16, %c1_17, %c0_18], %26 {strides = array<i32>} : memref<1x2x256xf32, #tpu.memory_space<vmem>>, vector<1x1x256xf32>,
    } else {
    }
    %c0_i32_6 = arith.constant 0 : i32
    %12 = arith.cmpi eq, %arg1, %c0_i32_6 : i32
    %13 = arith.extui %12 : i1 to i32
    %c0_i32_7 = arith.constant 0 : i32
    %14 = arith.cmpi ne, %13, %c0_i32_7 : i32
    scf.if %14 {
      %c0_8 = arith.constant 0 : index
      %c0_9 = arith.constant 0 : index
      %c0_10 = arith.constant 0 : index
      %15 = vector.load %arg3[%c0_8, %c0_9, %c0_10] : memref<1x2x256xf32, #tpu.memory_space<vmem>>, vector<1x1x256xf32>
      %16 = vector.shape_cast %15 : vector<1x1x256xf32> to vector<1x256xf32>
      %cst_11 = arith.constant 2.500000e-01 : f32
      %17 = vector.broadcast %cst_11 : f32 to vector<1x256xf32>
      %18 = arith.mulf %16, %17 : vector<1x256xf32>
      %c0_12 = arith.constant 0 : index
      %c0_13 = arith.constant 0 : index
      %c0_14 = arith.constant 0 : index
      %19 = vector.load %arg3[%c0_12, %c0_13, %c0_14] : memref<1x2x256xf32, #tpu.memory_space<vmem>>, vector<1x1x256xf32>
      %20 = vector.shape_cast %19 : vector<1x1x256xf32> to vector<1x256xf32>
      %21 = vector.shape_cast %18 : vector<1x256xf32> to vector<1x1x256xf32>
      tpu.vector_store %arg3[%c0_12, %c0_13, %c0_14], %21 {strides = array<i32>} : memref<1x2x256xf32, #tpu.memory_space<vmem>>, vector<1x1x256xf32>,
    } else {
    }
    return
  }
  func.func @transform_0(%arg0: i32, %arg1: i32) -> (i32, i32, i32) {
    %c0_i32 = arith.constant 0 : i32
    %c0_i32_0 = arith.constant 0 : i32
    return %arg0, %arg1, %c0_i32 : i32, i32, i32
  }
  func.func @transform_1(%arg0: i32, %arg1: i32) -> (i32, i32, i32) {
    %c0_i32 = arith.constant 0 : i32
    %c0_i32_0 = arith.constant 0 : i32
    %c0_i32_1 = arith.constant 0 : i32
    return %arg0, %c0_i32, %c0_i32_0 : i32, i32, i32
  }
}

module attributes {stable_mosaic.version = 11 : i64} {
  func.func @_apply_kernel(%arg0: i32, %arg1: i32, %arg2: memref<1x4x256xf32, #tpu.memory_space<vmem>>, %arg3: memref<1x1x256xf32, #tpu.memory_space<vmem>>, %arg4: memref<1x4x256xf32, #tpu.memory_space<vmem>>) attributes {dimension_semantics = [#tpu.dimension_semantics<parallel>, #tpu.dimension_semantics<parallel>], iteration_bounds = array<i64: 2, 1>, scalar_prefetch = 0 : i64, scratch_operands = 0 : i64, tpu.core_type = #tpu.core_type<tc>, window_params = [{transform_indices = @transform_0, window_bounds = array<i64: 1, 4, 256>}, {transform_indices = @transform_1, window_bounds = array<i64: 1, 1, 256>}, {transform_indices = @transform_2, window_bounds = array<i64: 1, 4, 256>}]} {
    %c0 = arith.constant 0 : index
    %c0_0 = arith.constant 0 : index
    %c0_1 = arith.constant 0 : index
    %0 = vector.load %arg3[%c0, %c0_0, %c0_1] : memref<1x1x256xf32, #tpu.memory_space<vmem>>, vector<1x1x256xf32>
    %1 = vector.shape_cast %0 : vector<1x1x256xf32> to vector<1x256xf32>
    %c0_2 = arith.constant 0 : index
    %c0_3 = arith.constant 0 : index
    %c0_4 = arith.constant 0 : index
    %2 = vector.load %arg2[%c0_2, %c0_3, %c0_4] : memref<1x4x256xf32, #tpu.memory_space<vmem>>, vector<1x4x256xf32>
    %3 = vector.shape_cast %2 : vector<1x4x256xf32> to vector<4x256xf32>
    %4 = vector.broadcast %1 : vector<1x256xf32> to vector<4x256xf32>
    %5 = arith.mulf %3, %4 : vector<4x256xf32>
    %c0_5 = arith.constant 0 : index
    %c0_6 = arith.constant 0 : index
    %c0_7 = arith.constant 0 : index
    %6 = vector.load %arg4[%c0_5, %c0_6, %c0_7] : memref<1x4x256xf32, #tpu.memory_space<vmem>>, vector<1x4x256xf32>
    %7 = vector.shape_cast %6 : vector<1x4x256xf32> to vector<4x256xf32>
    %8 = vector.shape_cast %5 : vector<4x256xf32> to vector<1x4x256xf32>
    tpu.vector_store %arg4[%c0_5, %c0_6, %c0_7], %8 {strides = array<i32>} : memref<1x4x256xf32, #tpu.memory_space<vmem>>, vector<1x4x256xf32>,
    return
  }
  func.func @transform_0(%arg0: i32, %arg1: i32) -> (i32, i32, i32) {
    %c0_i32 = arith.constant 0 : i32
    %c0_i32_0 = arith.constant 0 : i32
    return %arg0, %arg1, %c0_i32 : i32, i32, i32
  }
  func.func @transform_1(%arg0: i32, %arg1: i32) -> (i32, i32, i32) {
    %c0_i32 = arith.constant 0 : i32
    %c0_i32_0 = arith.constant 0 : i32
    %c0_i32_1 = arith.constant 0 : i32
    return %arg0, %c0_i32, %c0_i32_0 : i32, i32, i32
  }
  func.func @transform_2(%arg0: i32, %arg1: i32) -> (i32, i32, i32) {
    %c0_i32 = arith.constant 0 : i32
    %c0_i32_0 = arith.constant 0 : i32
    return %arg0, %arg1, %c0_i32 : i32, i32, i32
  }
}

module attributes {stable_mosaic.version = 11 : i64} {
  func.func @_conv_sigmoid_kernel(%arg0: i32, %arg1: memref<1x2x16x16xf32, #tpu.memory_space<vmem>>, %arg2: memref<98xf32, #tpu.memory_space<smem>>, %arg3: memref<1x16x16xf32, #tpu.memory_space<vmem>>, %arg4: memref<2x22x22xf32, #tpu.memory_space<vmem>>) attributes {dimension_semantics = [#tpu.dimension_semantics<arbitrary>], iteration_bounds = array<i64: 2>, scalar_prefetch = 0 : i64, scratch_operands = 1 : i64, tpu.core_type = #tpu.core_type<tc>, window_params = [{transform_indices = @transform_0, window_bounds = array<i64: 1, 2, 16, 16>}, {transform_indices = @transform_1, window_bounds = array<i64: 98>}, {transform_indices = @transform_2, window_bounds = array<i64: 1, 16, 16>}]} {
    %c0_i32 = arith.constant 0 : i32
    %0 = arith.cmpi eq, %arg0, %c0_i32 : i32
    %1 = arith.extui %0 : i1 to i32
    %c0_i32_0 = arith.constant 0 : i32
    %2 = arith.cmpi ne, %1, %c0_i32_0 : i32
    scf.if %2 {
      %cst_313 = arith.constant 0.000000e+00 : f32
      %610 = vector.broadcast %cst_313 : f32 to vector<2x22x22xf32>
      %c0_314 = arith.constant 0 : index
      %c0_315 = arith.constant 0 : index
      %c0_316 = arith.constant 0 : index
      %611 = vector.load %arg4[%c0_314, %c0_315, %c0_316] : memref<2x22x22xf32, #tpu.memory_space<vmem>>, vector<2x22x22xf32>
      tpu.vector_store %arg4[%c0_314, %c0_315, %c0_316], %610 {strides = array<i32>} : memref<2x22x22xf32, #tpu.memory_space<vmem>>, vector<2x22x22xf32>,
    } else {
    }
    %c0 = arith.constant 0 : index
    %c0_1 = arith.constant 0 : index
    %c0_2 = arith.constant 0 : index
    %c0_3 = arith.constant 0 : index
    %3 = vector.load %arg1[%c0, %c0_1, %c0_2, %c0_3] : memref<1x2x16x16xf32, #tpu.memory_space<vmem>>, vector<1x1x16x16xf32>
    %4 = vector.shape_cast %3 : vector<1x1x16x16xf32> to vector<16x16xf32>
    %c0_4 = arith.constant 0 : index
    %c3 = arith.constant 3 : index
    %c3_5 = arith.constant 3 : index
    %5 = vector.load %arg4[%c0_4, %c3, %c3_5] : memref<2x22x22xf32, #tpu.memory_space<vmem>>, vector<1x16x16xf32>
    %6 = vector.shape_cast %5 : vector<1x16x16xf32> to vector<16x16xf32>
    %7 = vector.shape_cast %4 : vector<16x16xf32> to vector<1x16x16xf32>
    tpu.vector_store %arg4[%c0_4, %c3, %c3_5], %7 {strides = array<i32>} : memref<2x22x22xf32, #tpu.memory_space<vmem>>, vector<1x16x16xf32>,
    %c0_6 = arith.constant 0 : index
    %c1 = arith.constant 1 : index
    %c0_7 = arith.constant 0 : index
    %c0_8 = arith.constant 0 : index
    %8 = vector.load %arg1[%c0_6, %c1, %c0_7, %c0_8] : memref<1x2x16x16xf32, #tpu.memory_space<vmem>>, vector<1x1x16x16xf32>
    %9 = vector.shape_cast %8 : vector<1x1x16x16xf32> to vector<16x16xf32>
    %c1_9 = arith.constant 1 : index
    %c3_10 = arith.constant 3 : index
    %c3_11 = arith.constant 3 : index
    %10 = vector.load %arg4[%c1_9, %c3_10, %c3_11] : memref<2x22x22xf32, #tpu.memory_space<vmem>>, vector<1x16x16xf32>
    %11 = vector.shape_cast %10 : vector<1x16x16xf32> to vector<16x16xf32>
    %12 = vector.shape_cast %9 : vector<16x16xf32> to vector<1x16x16xf32>
    tpu.vector_store %arg4[%c1_9, %c3_10, %c3_11], %12 {strides = array<i32>} : memref<2x22x22xf32, #tpu.memory_space<vmem>>, vector<1x16x16xf32>,
    %cst = arith.constant 0.000000e+00 : f32
    %13 = vector.broadcast %cst : f32 to vector<16x16xf32>
    %c0_12 = arith.constant 0 : index
    %14 = memref.load %arg2[%c0_12] : memref<98xf32, #tpu.memory_space<smem>>
    %c0_13 = arith.constant 0 : index
    %c0_14 = arith.constant 0 : index
    %c0_15 = arith.constant 0 : index
    %15 = vector.load %arg4[%c0_13, %c0_14, %c0_15] : memref<2x22x22xf32, #tpu.memory_space<vmem>>, vector<1x16x16xf32>
    %16 = vector.shape_cast %15 : vector<1x16x16xf32> to vector<16x16xf32>
    %17 = vector.broadcast %14 : f32 to vector<16x16xf32>
    %18 = arith.mulf %17, %16 : vector<16x16xf32>
    %19 = arith.addf %13, %18 : vector<16x16xf32>
    %c1_16 = arith.constant 1 : index
    %20 = memref.load %arg2[%c1_16] : memref<98xf32, #tpu.memory_space<smem>>
    %c0_17 = arith.constant 0 : index
    %c0_18 = arith.constant 0 : index
    %c1_19 = arith.constant 1 : index
    %21 = vector.load %arg4[%c0_17, %c0_18, %c1_19] : memref<2x22x22xf32, #tpu.memory_space<vmem>>, vector<1x16x16xf32>
    %22 = vector.shape_cast %21 : vector<1x16x16xf32> to vector<16x16xf32>
    %23 = vector.broadcast %20 : f32 to vector<16x16xf32>
    %24 = arith.mulf %23, %22 : vector<16x16xf32>
    %25 = arith.addf %19, %24 : vector<16x16xf32>
    %c2 = arith.constant 2 : index
    %26 = memref.load %arg2[%c2] : memref<98xf32, #tpu.memory_space<smem>>
    %c0_20 = arith.constant 0 : index
    %c0_21 = arith.constant 0 : index
    %c2_22 = arith.constant 2 : index
    %27 = vector.load %arg4[%c0_20, %c0_21, %c2_22] : memref<2x22x22xf32, #tpu.memory_space<vmem>>, vector<1x16x16xf32>
    %28 = vector.shape_cast %27 : vector<1x16x16xf32> to vector<16x16xf32>
    %29 = vector.broadcast %26 : f32 to vector<16x16xf32>
    %30 = arith.mulf %29, %28 : vector<16x16xf32>
    %31 = arith.addf %25, %30 : vector<16x16xf32>
    %c3_23 = arith.constant 3 : index
    %32 = memref.load %arg2[%c3_23] : memref<98xf32, #tpu.memory_space<smem>>
    %c0_24 = arith.constant 0 : index
    %c0_25 = arith.constant 0 : index
    %c3_26 = arith.constant 3 : index
    %33 = vector.load %arg4[%c0_24, %c0_25, %c3_26] : memref<2x22x22xf32, #tpu.memory_space<vmem>>, vector<1x16x16xf32>
    %34 = vector.shape_cast %33 : vector<1x16x16xf32> to vector<16x16xf32>
    %35 = vector.broadcast %32 : f32 to vector<16x16xf32>
    %36 = arith.mulf %35, %34 : vector<16x16xf32>
    %37 = arith.addf %31, %36 : vector<16x16xf32>
    %c4 = arith.constant 4 : index
    %38 = memref.load %arg2[%c4] : memref<98xf32, #tpu.memory_space<smem>>
    %c0_27 = arith.constant 0 : index
    %c0_28 = arith.constant 0 : index
    %c4_29 = arith.constant 4 : index
    %39 = vector.load %arg4[%c0_27, %c0_28, %c4_29] : memref<2x22x22xf32, #tpu.memory_space<vmem>>, vector<1x16x16xf32>
    %40 = vector.shape_cast %39 : vector<1x16x16xf32> to vector<16x16xf32>
    %41 = vector.broadcast %38 : f32 to vector<16x16xf32>
    %42 = arith.mulf %41, %40 : vector<16x16xf32>
    %43 = arith.addf %37, %42 : vector<16x16xf32>
    %c5 = arith.constant 5 : index
    %44 = memref.load %arg2[%c5] : memref<98xf32, #tpu.memory_space<smem>>
    %c0_30 = arith.constant 0 : index
    %c0_31 = arith.constant 0 : index
    %c5_32 = arith.constant 5 : index
    %45 = vector.load %arg4[%c0_30, %c0_31, %c5_32] : memref<2x22x22xf32, #tpu.memory_space<vmem>>, vector<1x16x16xf32>
    %46 = vector.shape_cast %45 : vector<1x16x16xf32> to vector<16x16xf32>
    %47 = vector.broadcast %44 : f32 to vector<16x16xf32>
    %48 = arith.mulf %47, %46 : vector<16x16xf32>
    %49 = arith.addf %43, %48 : vector<16x16xf32>
    %c6 = arith.constant 6 : index
    %50 = memref.load %arg2[%c6] : memref<98xf32, #tpu.memory_space<smem>>
    %c0_33 = arith.constant 0 : index
    %c0_34 = arith.constant 0 : index
    %c6_35 = arith.constant 6 : index
    %51 = vector.load %arg4[%c0_33, %c0_34, %c6_35] : memref<2x22x22xf32, #tpu.memory_space<vmem>>, vector<1x16x16xf32>
    %52 = vector.shape_cast %51 : vector<1x16x16xf32> to vector<16x16xf32>
    %53 = vector.broadcast %50 : f32 to vector<16x16xf32>
    %54 = arith.mulf %53, %52 : vector<16x16xf32>
    %55 = arith.addf %49, %54 : vector<16x16xf32>
    %c7 = arith.constant 7 : index
    %56 = memref.load %arg2[%c7] : memref<98xf32, #tpu.memory_space<smem>>
    %c0_36 = arith.constant 0 : index
    %c1_37 = arith.constant 1 : index
    %c0_38 = arith.constant 0 : index
    %57 = vector.load %arg4[%c0_36, %c1_37, %c0_38] : memref<2x22x22xf32, #tpu.memory_space<vmem>>, vector<1x16x16xf32>
    %58 = vector.shape_cast %57 : vector<1x16x16xf32> to vector<16x16xf32>
    %59 = vector.broadcast %56 : f32 to vector<16x16xf32>
    %60 = arith.mulf %59, %58 : vector<16x16xf32>
    %61 = arith.addf %55, %60 : vector<16x16xf32>
    %c8 = arith.constant 8 : index
    %62 = memref.load %arg2[%c8] : memref<98xf32, #tpu.memory_space<smem>>
    %c0_39 = arith.constant 0 : index
    %c1_40 = arith.constant 1 : index
    %c1_41 = arith.constant 1 : index
    %63 = vector.load %arg4[%c0_39, %c1_40, %c1_41] : memref<2x22x22xf32, #tpu.memory_space<vmem>>, vector<1x16x16xf32>
    %64 = vector.shape_cast %63 : vector<1x16x16xf32> to vector<16x16xf32>
    %65 = vector.broadcast %62 : f32 to vector<16x16xf32>
    %66 = arith.mulf %65, %64 : vector<16x16xf32>
    %67 = arith.addf %61, %66 : vector<16x16xf32>
    %c9 = arith.constant 9 : index
    %68 = memref.load %arg2[%c9] : memref<98xf32, #tpu.memory_space<smem>>
    %c0_42 = arith.constant 0 : index
    %c1_43 = arith.constant 1 : index
    %c2_44 = arith.constant 2 : index
    %69 = vector.load %arg4[%c0_42, %c1_43, %c2_44] : memref<2x22x22xf32, #tpu.memory_space<vmem>>, vector<1x16x16xf32>
    %70 = vector.shape_cast %69 : vector<1x16x16xf32> to vector<16x16xf32>
    %71 = vector.broadcast %68 : f32 to vector<16x16xf32>
    %72 = arith.mulf %71, %70 : vector<16x16xf32>
    %73 = arith.addf %67, %72 : vector<16x16xf32>
    %c10 = arith.constant 10 : index
    %74 = memref.load %arg2[%c10] : memref<98xf32, #tpu.memory_space<smem>>
    %c0_45 = arith.constant 0 : index
    %c1_46 = arith.constant 1 : index
    %c3_47 = arith.constant 3 : index
    %75 = vector.load %arg4[%c0_45, %c1_46, %c3_47] : memref<2x22x22xf32, #tpu.memory_space<vmem>>, vector<1x16x16xf32>
    %76 = vector.shape_cast %75 : vector<1x16x16xf32> to vector<16x16xf32>
    %77 = vector.broadcast %74 : f32 to vector<16x16xf32>
    %78 = arith.mulf %77, %76 : vector<16x16xf32>
    %79 = arith.addf %73, %78 : vector<16x16xf32>
    %c11 = arith.constant 11 : index
    %80 = memref.load %arg2[%c11] : memref<98xf32, #tpu.memory_space<smem>>
    %c0_48 = arith.constant 0 : index
    %c1_49 = arith.constant 1 : index
    %c4_50 = arith.constant 4 : index
    %81 = vector.load %arg4[%c0_48, %c1_49, %c4_50] : memref<2x22x22xf32, #tpu.memory_space<vmem>>, vector<1x16x16xf32>
    %82 = vector.shape_cast %81 : vector<1x16x16xf32> to vector<16x16xf32>
    %83 = vector.broadcast %80 : f32 to vector<16x16xf32>
    %84 = arith.mulf %83, %82 : vector<16x16xf32>
    %85 = arith.addf %79, %84 : vector<16x16xf32>
    %c12 = arith.constant 12 : index
    %86 = memref.load %arg2[%c12] : memref<98xf32, #tpu.memory_space<smem>>
    %c0_51 = arith.constant 0 : index
    %c1_52 = arith.constant 1 : index
    %c5_53 = arith.constant 5 : index
    %87 = vector.load %arg4[%c0_51, %c1_52, %c5_53] : memref<2x22x22xf32, #tpu.memory_space<vmem>>, vector<1x16x16xf32>
    %88 = vector.shape_cast %87 : vector<1x16x16xf32> to vector<16x16xf32>
    %89 = vector.broadcast %86 : f32 to vector<16x16xf32>
    %90 = arith.mulf %89, %88 : vector<16x16xf32>
    %91 = arith.addf %85, %90 : vector<16x16xf32>
    %c13 = arith.constant 13 : index
    %92 = memref.load %arg2[%c13] : memref<98xf32, #tpu.memory_space<smem>>
    %c0_54 = arith.constant 0 : index
    %c1_55 = arith.constant 1 : index
    %c6_56 = arith.constant 6 : index
    %93 = vector.load %arg4[%c0_54, %c1_55, %c6_56] : memref<2x22x22xf32, #tpu.memory_space<vmem>>, vector<1x16x16xf32>
    %94 = vector.shape_cast %93 : vector<1x16x16xf32> to vector<16x16xf32>
    %95 = vector.broadcast %92 : f32 to vector<16x16xf32>
    %96 = arith.mulf %95, %94 : vector<16x16xf32>
    %97 = arith.addf %91, %96 : vector<16x16xf32>
    %c14 = arith.constant 14 : index
    %98 = memref.load %arg2[%c14] : memref<98xf32, #tpu.memory_space<smem>>
    %c0_57 = arith.constant 0 : index
    %c2_58 = arith.constant 2 : index
    %c0_59 = arith.constant 0 : index
    %99 = vector.load %arg4[%c0_57, %c2_58, %c0_59] : memref<2x22x22xf32, #tpu.memory_space<vmem>>, vector<1x16x16xf32>
    %100 = vector.shape_cast %99 : vector<1x16x16xf32> to vector<16x16xf32>
    %101 = vector.broadcast %98 : f32 to vector<16x16xf32>
    %102 = arith.mulf %101, %100 : vector<16x16xf32>
    %103 = arith.addf %97, %102 : vector<16x16xf32>
    %c15 = arith.constant 15 : index
    %104 = memref.load %arg2[%c15] : memref<98xf32, #tpu.memory_space<smem>>
    %c0_60 = arith.constant 0 : index
    %c2_61 = arith.constant 2 : index
    %c1_62 = arith.constant 1 : index
    %105 = vector.load %arg4[%c0_60, %c2_61, %c1_62] : memref<2x22x22xf32, #tpu.memory_space<vmem>>, vector<1x16x16xf32>
    %106 = vector.shape_cast %105 : vector<1x16x16xf32> to vector<16x16xf32>
    %107 = vector.broadcast %104 : f32 to vector<16x16xf32>
    %108 = arith.mulf %107, %106 : vector<16x16xf32>
    %109 = arith.addf %103, %108 : vector<16x16xf32>
    %c16 = arith.constant 16 : index
    %110 = memref.load %arg2[%c16] : memref<98xf32, #tpu.memory_space<smem>>
    %c0_63 = arith.constant 0 : index
    %c2_64 = arith.constant 2 : index
    %c2_65 = arith.constant 2 : index
    %111 = vector.load %arg4[%c0_63, %c2_64, %c2_65] : memref<2x22x22xf32, #tpu.memory_space<vmem>>, vector<1x16x16xf32>
    %112 = vector.shape_cast %111 : vector<1x16x16xf32> to vector<16x16xf32>
    %113 = vector.broadcast %110 : f32 to vector<16x16xf32>
    %114 = arith.mulf %113, %112 : vector<16x16xf32>
    %115 = arith.addf %109, %114 : vector<16x16xf32>
    %c17 = arith.constant 17 : index
    %116 = memref.load %arg2[%c17] : memref<98xf32, #tpu.memory_space<smem>>
    %c0_66 = arith.constant 0 : index
    %c2_67 = arith.constant 2 : index
    %c3_68 = arith.constant 3 : index
    %117 = vector.load %arg4[%c0_66, %c2_67, %c3_68] : memref<2x22x22xf32, #tpu.memory_space<vmem>>, vector<1x16x16xf32>
    %118 = vector.shape_cast %117 : vector<1x16x16xf32> to vector<16x16xf32>
    %119 = vector.broadcast %116 : f32 to vector<16x16xf32>
    %120 = arith.mulf %119, %118 : vector<16x16xf32>
    %121 = arith.addf %115, %120 : vector<16x16xf32>
    %c18 = arith.constant 18 : index
    %122 = memref.load %arg2[%c18] : memref<98xf32, #tpu.memory_space<smem>>
    %c0_69 = arith.constant 0 : index
    %c2_70 = arith.constant 2 : index
    %c4_71 = arith.constant 4 : index
    %123 = vector.load %arg4[%c0_69, %c2_70, %c4_71] : memref<2x22x22xf32, #tpu.memory_space<vmem>>, vector<1x16x16xf32>
    %124 = vector.shape_cast %123 : vector<1x16x16xf32> to vector<16x16xf32>
    %125 = vector.broadcast %122 : f32 to vector<16x16xf32>
    %126 = arith.mulf %125, %124 : vector<16x16xf32>
    %127 = arith.addf %121, %126 : vector<16x16xf32>
    %c19 = arith.constant 19 : index
    %128 = memref.load %arg2[%c19] : memref<98xf32, #tpu.memory_space<smem>>
    %c0_72 = arith.constant 0 : index
    %c2_73 = arith.constant 2 : index
    %c5_74 = arith.constant 5 : index
    %129 = vector.load %arg4[%c0_72, %c2_73, %c5_74] : memref<2x22x22xf32, #tpu.memory_space<vmem>>, vector<1x16x16xf32>
    %130 = vector.shape_cast %129 : vector<1x16x16xf32> to vector<16x16xf32>
    %131 = vector.broadcast %128 : f32 to vector<16x16xf32>
    %132 = arith.mulf %131, %130 : vector<16x16xf32>
    %133 = arith.addf %127, %132 : vector<16x16xf32>
    %c20 = arith.constant 20 : index
    %134 = memref.load %arg2[%c20] : memref<98xf32, #tpu.memory_space<smem>>
    %c0_75 = arith.constant 0 : index
    %c2_76 = arith.constant 2 : index
    %c6_77 = arith.constant 6 : index
    %135 = vector.load %arg4[%c0_75, %c2_76, %c6_77] : memref<2x22x22xf32, #tpu.memory_space<vmem>>, vector<1x16x16xf32>
    %136 = vector.shape_cast %135 : vector<1x16x16xf32> to vector<16x16xf32>
    %137 = vector.broadcast %134 : f32 to vector<16x16xf32>
    %138 = arith.mulf %137, %136 : vector<16x16xf32>
    %139 = arith.addf %133, %138 : vector<16x16xf32>
    %c21 = arith.constant 21 : index
    %140 = memref.load %arg2[%c21] : memref<98xf32, #tpu.memory_space<smem>>
    %c0_78 = arith.constant 0 : index
    %c3_79 = arith.constant 3 : index
    %c0_80 = arith.constant 0 : index
    %141 = vector.load %arg4[%c0_78, %c3_79, %c0_80] : memref<2x22x22xf32, #tpu.memory_space<vmem>>, vector<1x16x16xf32>
    %142 = vector.shape_cast %141 : vector<1x16x16xf32> to vector<16x16xf32>
    %143 = vector.broadcast %140 : f32 to vector<16x16xf32>
    %144 = arith.mulf %143, %142 : vector<16x16xf32>
    %145 = arith.addf %139, %144 : vector<16x16xf32>
    %c22 = arith.constant 22 : index
    %146 = memref.load %arg2[%c22] : memref<98xf32, #tpu.memory_space<smem>>
    %c0_81 = arith.constant 0 : index
    %c3_82 = arith.constant 3 : index
    %c1_83 = arith.constant 1 : index
    %147 = vector.load %arg4[%c0_81, %c3_82, %c1_83] : memref<2x22x22xf32, #tpu.memory_space<vmem>>, vector<1x16x16xf32>
    %148 = vector.shape_cast %147 : vector<1x16x16xf32> to vector<16x16xf32>
    %149 = vector.broadcast %146 : f32 to vector<16x16xf32>
    %150 = arith.mulf %149, %148 : vector<16x16xf32>
    %151 = arith.addf %145, %150 : vector<16x16xf32>
    %c23 = arith.constant 23 : index
    %152 = memref.load %arg2[%c23] : memref<98xf32, #tpu.memory_space<smem>>
    %c0_84 = arith.constant 0 : index
    %c3_85 = arith.constant 3 : index
    %c2_86 = arith.constant 2 : index
    %153 = vector.load %arg4[%c0_84, %c3_85, %c2_86] : memref<2x22x22xf32, #tpu.memory_space<vmem>>, vector<1x16x16xf32>
    %154 = vector.shape_cast %153 : vector<1x16x16xf32> to vector<16x16xf32>
    %155 = vector.broadcast %152 : f32 to vector<16x16xf32>
    %156 = arith.mulf %155, %154 : vector<16x16xf32>
    %157 = arith.addf %151, %156 : vector<16x16xf32>
    %c24 = arith.constant 24 : index
    %158 = memref.load %arg2[%c24] : memref<98xf32, #tpu.memory_space<smem>>
    %c0_87 = arith.constant 0 : index
    %c3_88 = arith.constant 3 : index
    %c3_89 = arith.constant 3 : index
    %159 = vector.load %arg4[%c0_87, %c3_88, %c3_89] : memref<2x22x22xf32, #tpu.memory_space<vmem>>, vector<1x16x16xf32>
    %160 = vector.shape_cast %159 : vector<1x16x16xf32> to vector<16x16xf32>
    %161 = vector.broadcast %158 : f32 to vector<16x16xf32>
    %162 = arith.mulf %161, %160 : vector<16x16xf32>
    %163 = arith.addf %157, %162 : vector<16x16xf32>
    %c25 = arith.constant 25 : index
    %164 = memref.load %arg2[%c25] : memref<98xf32, #tpu.memory_space<smem>>
    %c0_90 = arith.constant 0 : index
    %c3_91 = arith.constant 3 : index
    %c4_92 = arith.constant 4 : index
    %165 = vector.load %arg4[%c0_90, %c3_91, %c4_92] : memref<2x22x22xf32, #tpu.memory_space<vmem>>, vector<1x16x16xf32>
    %166 = vector.shape_cast %165 : vector<1x16x16xf32> to vector<16x16xf32>
    %167 = vector.broadcast %164 : f32 to vector<16x16xf32>
    %168 = arith.mulf %167, %166 : vector<16x16xf32>
    %169 = arith.addf %163, %168 : vector<16x16xf32>
    %c26 = arith.constant 26 : index
    %170 = memref.load %arg2[%c26] : memref<98xf32, #tpu.memory_space<smem>>
    %c0_93 = arith.constant 0 : index
    %c3_94 = arith.constant 3 : index
    %c5_95 = arith.constant 5 : index
    %171 = vector.load %arg4[%c0_93, %c3_94, %c5_95] : memref<2x22x22xf32, #tpu.memory_space<vmem>>, vector<1x16x16xf32>
    %172 = vector.shape_cast %171 : vector<1x16x16xf32> to vector<16x16xf32>
    %173 = vector.broadcast %170 : f32 to vector<16x16xf32>
    %174 = arith.mulf %173, %172 : vector<16x16xf32>
    %175 = arith.addf %169, %174 : vector<16x16xf32>
    %c27 = arith.constant 27 : index
    %176 = memref.load %arg2[%c27] : memref<98xf32, #tpu.memory_space<smem>>
    %c0_96 = arith.constant 0 : index
    %c3_97 = arith.constant 3 : index
    %c6_98 = arith.constant 6 : index
    %177 = vector.load %arg4[%c0_96, %c3_97, %c6_98] : memref<2x22x22xf32, #tpu.memory_space<vmem>>, vector<1x16x16xf32>
    %178 = vector.shape_cast %177 : vector<1x16x16xf32> to vector<16x16xf32>
    %179 = vector.broadcast %176 : f32 to vector<16x16xf32>
    %180 = arith.mulf %179, %178 : vector<16x16xf32>
    %181 = arith.addf %175, %180 : vector<16x16xf32>
    %c28 = arith.constant 28 : index
    %182 = memref.load %arg2[%c28] : memref<98xf32, #tpu.memory_space<smem>>
    %c0_99 = arith.constant 0 : index
    %c4_100 = arith.constant 4 : index
    %c0_101 = arith.constant 0 : index
    %183 = vector.load %arg4[%c0_99, %c4_100, %c0_101] : memref<2x22x22xf32, #tpu.memory_space<vmem>>, vector<1x16x16xf32>
    %184 = vector.shape_cast %183 : vector<1x16x16xf32> to vector<16x16xf32>
    %185 = vector.broadcast %182 : f32 to vector<16x16xf32>
    %186 = arith.mulf %185, %184 : vector<16x16xf32>
    %187 = arith.addf %181, %186 : vector<16x16xf32>
    %c29 = arith.constant 29 : index
    %188 = memref.load %arg2[%c29] : memref<98xf32, #tpu.memory_space<smem>>
    %c0_102 = arith.constant 0 : index
    %c4_103 = arith.constant 4 : index
    %c1_104 = arith.constant 1 : index
    %189 = vector.load %arg4[%c0_102, %c4_103, %c1_104] : memref<2x22x22xf32, #tpu.memory_space<vmem>>, vector<1x16x16xf32>
    %190 = vector.shape_cast %189 : vector<1x16x16xf32> to vector<16x16xf32>
    %191 = vector.broadcast %188 : f32 to vector<16x16xf32>
    %192 = arith.mulf %191, %190 : vector<16x16xf32>
    %193 = arith.addf %187, %192 : vector<16x16xf32>
    %c30 = arith.constant 30 : index
    %194 = memref.load %arg2[%c30] : memref<98xf32, #tpu.memory_space<smem>>
    %c0_105 = arith.constant 0 : index
    %c4_106 = arith.constant 4 : index
    %c2_107 = arith.constant 2 : index
    %195 = vector.load %arg4[%c0_105, %c4_106, %c2_107] : memref<2x22x22xf32, #tpu.memory_space<vmem>>, vector<1x16x16xf32>
    %196 = vector.shape_cast %195 : vector<1x16x16xf32> to vector<16x16xf32>
    %197 = vector.broadcast %194 : f32 to vector<16x16xf32>
    %198 = arith.mulf %197, %196 : vector<16x16xf32>
    %199 = arith.addf %193, %198 : vector<16x16xf32>
    %c31 = arith.constant 31 : index
    %200 = memref.load %arg2[%c31] : memref<98xf32, #tpu.memory_space<smem>>
    %c0_108 = arith.constant 0 : index
    %c4_109 = arith.constant 4 : index
    %c3_110 = arith.constant 3 : index
    %201 = vector.load %arg4[%c0_108, %c4_109, %c3_110] : memref<2x22x22xf32, #tpu.memory_space<vmem>>, vector<1x16x16xf32>
    %202 = vector.shape_cast %201 : vector<1x16x16xf32> to vector<16x16xf32>
    %203 = vector.broadcast %200 : f32 to vector<16x16xf32>
    %204 = arith.mulf %203, %202 : vector<16x16xf32>
    %205 = arith.addf %199, %204 : vector<16x16xf32>
    %c32 = arith.constant 32 : index
    %206 = memref.load %arg2[%c32] : memref<98xf32, #tpu.memory_space<smem>>
    %c0_111 = arith.constant 0 : index
    %c4_112 = arith.constant 4 : index
    %c4_113 = arith.constant 4 : index
    %207 = vector.load %arg4[%c0_111, %c4_112, %c4_113] : memref<2x22x22xf32, #tpu.memory_space<vmem>>, vector<1x16x16xf32>
    %208 = vector.shape_cast %207 : vector<1x16x16xf32> to vector<16x16xf32>
    %209 = vector.broadcast %206 : f32 to vector<16x16xf32>
    %210 = arith.mulf %209, %208 : vector<16x16xf32>
    %211 = arith.addf %205, %210 : vector<16x16xf32>
    %c33 = arith.constant 33 : index
    %212 = memref.load %arg2[%c33] : memref<98xf32, #tpu.memory_space<smem>>
    %c0_114 = arith.constant 0 : index
    %c4_115 = arith.constant 4 : index
    %c5_116 = arith.constant 5 : index
    %213 = vector.load %arg4[%c0_114, %c4_115, %c5_116] : memref<2x22x22xf32, #tpu.memory_space<vmem>>, vector<1x16x16xf32>
    %214 = vector.shape_cast %213 : vector<1x16x16xf32> to vector<16x16xf32>
    %215 = vector.broadcast %212 : f32 to vector<16x16xf32>
    %216 = arith.mulf %215, %214 : vector<16x16xf32>
    %217 = arith.addf %211, %216 : vector<16x16xf32>
    %c34 = arith.constant 34 : index
    %218 = memref.load %arg2[%c34] : memref<98xf32, #tpu.memory_space<smem>>
    %c0_117 = arith.constant 0 : index
    %c4_118 = arith.constant 4 : index
    %c6_119 = arith.constant 6 : index
    %219 = vector.load %arg4[%c0_117, %c4_118, %c6_119] : memref<2x22x22xf32, #tpu.memory_space<vmem>>, vector<1x16x16xf32>
    %220 = vector.shape_cast %219 : vector<1x16x16xf32> to vector<16x16xf32>
    %221 = vector.broadcast %218 : f32 to vector<16x16xf32>
    %222 = arith.mulf %221, %220 : vector<16x16xf32>
    %223 = arith.addf %217, %222 : vector<16x16xf32>
    %c35 = arith.constant 35 : index
    %224 = memref.load %arg2[%c35] : memref<98xf32, #tpu.memory_space<smem>>
    %c0_120 = arith.constant 0 : index
    %c5_121 = arith.constant 5 : index
    %c0_122 = arith.constant 0 : index
    %225 = vector.load %arg4[%c0_120, %c5_121, %c0_122] : memref<2x22x22xf32, #tpu.memory_space<vmem>>, vector<1x16x16xf32>
    %226 = vector.shape_cast %225 : vector<1x16x16xf32> to vector<16x16xf32>
    %227 = vector.broadcast %224 : f32 to vector<16x16xf32>
    %228 = arith.mulf %227, %226 : vector<16x16xf32>
    %229 = arith.addf %223, %228 : vector<16x16xf32>
    %c36 = arith.constant 36 : index
    %230 = memref.load %arg2[%c36] : memref<98xf32, #tpu.memory_space<smem>>
    %c0_123 = arith.constant 0 : index
    %c5_124 = arith.constant 5 : index
    %c1_125 = arith.constant 1 : index
    %231 = vector.load %arg4[%c0_123, %c5_124, %c1_125] : memref<2x22x22xf32, #tpu.memory_space<vmem>>, vector<1x16x16xf32>
    %232 = vector.shape_cast %231 : vector<1x16x16xf32> to vector<16x16xf32>
    %233 = vector.broadcast %230 : f32 to vector<16x16xf32>
    %234 = arith.mulf %233, %232 : vector<16x16xf32>
    %235 = arith.addf %229, %234 : vector<16x16xf32>
    %c37 = arith.constant 37 : index
    %236 = memref.load %arg2[%c37] : memref<98xf32, #tpu.memory_space<smem>>
    %c0_126 = arith.constant 0 : index
    %c5_127 = arith.constant 5 : index
    %c2_128 = arith.constant 2 : index
    %237 = vector.load %arg4[%c0_126, %c5_127, %c2_128] : memref<2x22x22xf32, #tpu.memory_space<vmem>>, vector<1x16x16xf32>
    %238 = vector.shape_cast %237 : vector<1x16x16xf32> to vector<16x16xf32>
    %239 = vector.broadcast %236 : f32 to vector<16x16xf32>
    %240 = arith.mulf %239, %238 : vector<16x16xf32>
    %241 = arith.addf %235, %240 : vector<16x16xf32>
    %c38 = arith.constant 38 : index
    %242 = memref.load %arg2[%c38] : memref<98xf32, #tpu.memory_space<smem>>
    %c0_129 = arith.constant 0 : index
    %c5_130 = arith.constant 5 : index
    %c3_131 = arith.constant 3 : index
    %243 = vector.load %arg4[%c0_129, %c5_130, %c3_131] : memref<2x22x22xf32, #tpu.memory_space<vmem>>, vector<1x16x16xf32>
    %244 = vector.shape_cast %243 : vector<1x16x16xf32> to vector<16x16xf32>
    %245 = vector.broadcast %242 : f32 to vector<16x16xf32>
    %246 = arith.mulf %245, %244 : vector<16x16xf32>
    %247 = arith.addf %241, %246 : vector<16x16xf32>
    %c39 = arith.constant 39 : index
    %248 = memref.load %arg2[%c39] : memref<98xf32, #tpu.memory_space<smem>>
    %c0_132 = arith.constant 0 : index
    %c5_133 = arith.constant 5 : index
    %c4_134 = arith.constant 4 : index
    %249 = vector.load %arg4[%c0_132, %c5_133, %c4_134] : memref<2x22x22xf32, #tpu.memory_space<vmem>>, vector<1x16x16xf32>
    %250 = vector.shape_cast %249 : vector<1x16x16xf32> to vector<16x16xf32>
    %251 = vector.broadcast %248 : f32 to vector<16x16xf32>
    %252 = arith.mulf %251, %250 : vector<16x16xf32>
    %253 = arith.addf %247, %252 : vector<16x16xf32>
    %c40 = arith.constant 40 : index
    %254 = memref.load %arg2[%c40] : memref<98xf32, #tpu.memory_space<smem>>
    %c0_135 = arith.constant 0 : index
    %c5_136 = arith.constant 5 : index
    %c5_137 = arith.constant 5 : index
    %255 = vector.load %arg4[%c0_135, %c5_136, %c5_137] : memref<2x22x22xf32, #tpu.memory_space<vmem>>, vector<1x16x16xf32>
    %256 = vector.shape_cast %255 : vector<1x16x16xf32> to vector<16x16xf32>
    %257 = vector.broadcast %254 : f32 to vector<16x16xf32>
    %258 = arith.mulf %257, %256 : vector<16x16xf32>
    %259 = arith.addf %253, %258 : vector<16x16xf32>
    %c41 = arith.constant 41 : index
    %260 = memref.load %arg2[%c41] : memref<98xf32, #tpu.memory_space<smem>>
    %c0_138 = arith.constant 0 : index
    %c5_139 = arith.constant 5 : index
    %c6_140 = arith.constant 6 : index
    %261 = vector.load %arg4[%c0_138, %c5_139, %c6_140] : memref<2x22x22xf32, #tpu.memory_space<vmem>>, vector<1x16x16xf32>
    %262 = vector.shape_cast %261 : vector<1x16x16xf32> to vector<16x16xf32>
    %263 = vector.broadcast %260 : f32 to vector<16x16xf32>
    %264 = arith.mulf %263, %262 : vector<16x16xf32>
    %265 = arith.addf %259, %264 : vector<16x16xf32>
    %c42 = arith.constant 42 : index
    %266 = memref.load %arg2[%c42] : memref<98xf32, #tpu.memory_space<smem>>
    %c0_141 = arith.constant 0 : index
    %c6_142 = arith.constant 6 : index
    %c0_143 = arith.constant 0 : index
    %267 = vector.load %arg4[%c0_141, %c6_142, %c0_143] : memref<2x22x22xf32, #tpu.memory_space<vmem>>, vector<1x16x16xf32>
    %268 = vector.shape_cast %267 : vector<1x16x16xf32> to vector<16x16xf32>
    %269 = vector.broadcast %266 : f32 to vector<16x16xf32>
    %270 = arith.mulf %269, %268 : vector<16x16xf32>
    %271 = arith.addf %265, %270 : vector<16x16xf32>
    %c43 = arith.constant 43 : index
    %272 = memref.load %arg2[%c43] : memref<98xf32, #tpu.memory_space<smem>>
    %c0_144 = arith.constant 0 : index
    %c6_145 = arith.constant 6 : index
    %c1_146 = arith.constant 1 : index
    %273 = vector.load %arg4[%c0_144, %c6_145, %c1_146] : memref<2x22x22xf32, #tpu.memory_space<vmem>>, vector<1x16x16xf32>
    %274 = vector.shape_cast %273 : vector<1x16x16xf32> to vector<16x16xf32>
    %275 = vector.broadcast %272 : f32 to vector<16x16xf32>
    %276 = arith.mulf %275, %274 : vector<16x16xf32>
    %277 = arith.addf %271, %276 : vector<16x16xf32>
    %c44 = arith.constant 44 : index
    %278 = memref.load %arg2[%c44] : memref<98xf32, #tpu.memory_space<smem>>
    %c0_147 = arith.constant 0 : index
    %c6_148 = arith.constant 6 : index
    %c2_149 = arith.constant 2 : index
    %279 = vector.load %arg4[%c0_147, %c6_148, %c2_149] : memref<2x22x22xf32, #tpu.memory_space<vmem>>, vector<1x16x16xf32>
    %280 = vector.shape_cast %279 : vector<1x16x16xf32> to vector<16x16xf32>
    %281 = vector.broadcast %278 : f32 to vector<16x16xf32>
    %282 = arith.mulf %281, %280 : vector<16x16xf32>
    %283 = arith.addf %277, %282 : vector<16x16xf32>
    %c45 = arith.constant 45 : index
    %284 = memref.load %arg2[%c45] : memref<98xf32, #tpu.memory_space<smem>>
    %c0_150 = arith.constant 0 : index
    %c6_151 = arith.constant 6 : index
    %c3_152 = arith.constant 3 : index
    %285 = vector.load %arg4[%c0_150, %c6_151, %c3_152] : memref<2x22x22xf32, #tpu.memory_space<vmem>>, vector<1x16x16xf32>
    %286 = vector.shape_cast %285 : vector<1x16x16xf32> to vector<16x16xf32>
    %287 = vector.broadcast %284 : f32 to vector<16x16xf32>
    %288 = arith.mulf %287, %286 : vector<16x16xf32>
    %289 = arith.addf %283, %288 : vector<16x16xf32>
    %c46 = arith.constant 46 : index
    %290 = memref.load %arg2[%c46] : memref<98xf32, #tpu.memory_space<smem>>
    %c0_153 = arith.constant 0 : index
    %c6_154 = arith.constant 6 : index
    %c4_155 = arith.constant 4 : index
    %291 = vector.load %arg4[%c0_153, %c6_154, %c4_155] : memref<2x22x22xf32, #tpu.memory_space<vmem>>, vector<1x16x16xf32>
    %292 = vector.shape_cast %291 : vector<1x16x16xf32> to vector<16x16xf32>
    %293 = vector.broadcast %290 : f32 to vector<16x16xf32>
    %294 = arith.mulf %293, %292 : vector<16x16xf32>
    %295 = arith.addf %289, %294 : vector<16x16xf32>
    %c47 = arith.constant 47 : index
    %296 = memref.load %arg2[%c47] : memref<98xf32, #tpu.memory_space<smem>>
    %c0_156 = arith.constant 0 : index
    %c6_157 = arith.constant 6 : index
    %c5_158 = arith.constant 5 : index
    %297 = vector.load %arg4[%c0_156, %c6_157, %c5_158] : memref<2x22x22xf32, #tpu.memory_space<vmem>>, vector<1x16x16xf32>
    %298 = vector.shape_cast %297 : vector<1x16x16xf32> to vector<16x16xf32>
    %299 = vector.broadcast %296 : f32 to vector<16x16xf32>
    %300 = arith.mulf %299, %298 : vector<16x16xf32>
    %301 = arith.addf %295, %300 : vector<16x16xf32>
    %c48 = arith.constant 48 : index
    %302 = memref.load %arg2[%c48] : memref<98xf32, #tpu.memory_space<smem>>
    %c0_159 = arith.constant 0 : index
    %c6_160 = arith.constant 6 : index
    %c6_161 = arith.constant 6 : index
    %303 = vector.load %arg4[%c0_159, %c6_160, %c6_161] : memref<2x22x22xf32, #tpu.memory_space<vmem>>, vector<1x16x16xf32>
    %304 = vector.shape_cast %303 : vector<1x16x16xf32> to vector<16x16xf32>
    %305 = vector.broadcast %302 : f32 to vector<16x16xf32>
    %306 = arith.mulf %305, %304 : vector<16x16xf32>
    %307 = arith.addf %301, %306 : vector<16x16xf32>
    %c49 = arith.constant 49 : index
    %308 = memref.load %arg2[%c49] : memref<98xf32, #tpu.memory_space<smem>>
    %c1_162 = arith.constant 1 : index
    %c0_163 = arith.constant 0 : index
    %c0_164 = arith.constant 0 : index
    %309 = vector.load %arg4[%c1_162, %c0_163, %c0_164] : memref<2x22x22xf32, #tpu.memory_space<vmem>>, vector<1x16x16xf32>
    %310 = vector.shape_cast %309 : vector<1x16x16xf32> to vector<16x16xf32>
    %311 = vector.broadcast %308 : f32 to vector<16x16xf32>
    %312 = arith.mulf %311, %310 : vector<16x16xf32>
    %313 = arith.addf %307, %312 : vector<16x16xf32>
    %c50 = arith.constant 50 : index
    %314 = memref.load %arg2[%c50] : memref<98xf32, #tpu.memory_space<smem>>
    %c1_165 = arith.constant 1 : index
    %c0_166 = arith.constant 0 : index
    %c1_167 = arith.constant 1 : index
    %315 = vector.load %arg4[%c1_165, %c0_166, %c1_167] : memref<2x22x22xf32, #tpu.memory_space<vmem>>, vector<1x16x16xf32>
    %316 = vector.shape_cast %315 : vector<1x16x16xf32> to vector<16x16xf32>
    %317 = vector.broadcast %314 : f32 to vector<16x16xf32>
    %318 = arith.mulf %317, %316 : vector<16x16xf32>
    %319 = arith.addf %313, %318 : vector<16x16xf32>
    %c51 = arith.constant 51 : index
    %320 = memref.load %arg2[%c51] : memref<98xf32, #tpu.memory_space<smem>>
    %c1_168 = arith.constant 1 : index
    %c0_169 = arith.constant 0 : index
    %c2_170 = arith.constant 2 : index
    %321 = vector.load %arg4[%c1_168, %c0_169, %c2_170] : memref<2x22x22xf32, #tpu.memory_space<vmem>>, vector<1x16x16xf32>
    %322 = vector.shape_cast %321 : vector<1x16x16xf32> to vector<16x16xf32>
    %323 = vector.broadcast %320 : f32 to vector<16x16xf32>
    %324 = arith.mulf %323, %322 : vector<16x16xf32>
    %325 = arith.addf %319, %324 : vector<16x16xf32>
    %c52 = arith.constant 52 : index
    %326 = memref.load %arg2[%c52] : memref<98xf32, #tpu.memory_space<smem>>
    %c1_171 = arith.constant 1 : index
    %c0_172 = arith.constant 0 : index
    %c3_173 = arith.constant 3 : index
    %327 = vector.load %arg4[%c1_171, %c0_172, %c3_173] : memref<2x22x22xf32, #tpu.memory_space<vmem>>, vector<1x16x16xf32>
    %328 = vector.shape_cast %327 : vector<1x16x16xf32> to vector<16x16xf32>
    %329 = vector.broadcast %326 : f32 to vector<16x16xf32>
    %330 = arith.mulf %329, %328 : vector<16x16xf32>
    %331 = arith.addf %325, %330 : vector<16x16xf32>
    %c53 = arith.constant 53 : index
    %332 = memref.load %arg2[%c53] : memref<98xf32, #tpu.memory_space<smem>>
    %c1_174 = arith.constant 1 : index
    %c0_175 = arith.constant 0 : index
    %c4_176 = arith.constant 4 : index
    %333 = vector.load %arg4[%c1_174, %c0_175, %c4_176] : memref<2x22x22xf32, #tpu.memory_space<vmem>>, vector<1x16x16xf32>
    %334 = vector.shape_cast %333 : vector<1x16x16xf32> to vector<16x16xf32>
    %335 = vector.broadcast %332 : f32 to vector<16x16xf32>
    %336 = arith.mulf %335, %334 : vector<16x16xf32>
    %337 = arith.addf %331, %336 : vector<16x16xf32>
    %c54 = arith.constant 54 : index
    %338 = memref.load %arg2[%c54] : memref<98xf32, #tpu.memory_space<smem>>
    %c1_177 = arith.constant 1 : index
    %c0_178 = arith.constant 0 : index
    %c5_179 = arith.constant 5 : index
    %339 = vector.load %arg4[%c1_177, %c0_178, %c5_179] : memref<2x22x22xf32, #tpu.memory_space<vmem>>, vector<1x16x16xf32>
    %340 = vector.shape_cast %339 : vector<1x16x16xf32> to vector<16x16xf32>
    %341 = vector.broadcast %338 : f32 to vector<16x16xf32>
    %342 = arith.mulf %341, %340 : vector<16x16xf32>
    %343 = arith.addf %337, %342 : vector<16x16xf32>
    %c55 = arith.constant 55 : index
    %344 = memref.load %arg2[%c55] : memref<98xf32, #tpu.memory_space<smem>>
    %c1_180 = arith.constant 1 : index
    %c0_181 = arith.constant 0 : index
    %c6_182 = arith.constant 6 : index
    %345 = vector.load %arg4[%c1_180, %c0_181, %c6_182] : memref<2x22x22xf32, #tpu.memory_space<vmem>>, vector<1x16x16xf32>
    %346 = vector.shape_cast %345 : vector<1x16x16xf32> to vector<16x16xf32>
    %347 = vector.broadcast %344 : f32 to vector<16x16xf32>
    %348 = arith.mulf %347, %346 : vector<16x16xf32>
    %349 = arith.addf %343, %348 : vector<16x16xf32>
    %c56 = arith.constant 56 : index
    %350 = memref.load %arg2[%c56] : memref<98xf32, #tpu.memory_space<smem>>
    %c1_183 = arith.constant 1 : index
    %c1_184 = arith.constant 1 : index
    %c0_185 = arith.constant 0 : index
    %351 = vector.load %arg4[%c1_183, %c1_184, %c0_185] : memref<2x22x22xf32, #tpu.memory_space<vmem>>, vector<1x16x16xf32>
    %352 = vector.shape_cast %351 : vector<1x16x16xf32> to vector<16x16xf32>
    %353 = vector.broadcast %350 : f32 to vector<16x16xf32>
    %354 = arith.mulf %353, %352 : vector<16x16xf32>
    %355 = arith.addf %349, %354 : vector<16x16xf32>
    %c57 = arith.constant 57 : index
    %356 = memref.load %arg2[%c57] : memref<98xf32, #tpu.memory_space<smem>>
    %c1_186 = arith.constant 1 : index
    %c1_187 = arith.constant 1 : index
    %c1_188 = arith.constant 1 : index
    %357 = vector.load %arg4[%c1_186, %c1_187, %c1_188] : memref<2x22x22xf32, #tpu.memory_space<vmem>>, vector<1x16x16xf32>
    %358 = vector.shape_cast %357 : vector<1x16x16xf32> to vector<16x16xf32>
    %359 = vector.broadcast %356 : f32 to vector<16x16xf32>
    %360 = arith.mulf %359, %358 : vector<16x16xf32>
    %361 = arith.addf %355, %360 : vector<16x16xf32>
    %c58 = arith.constant 58 : index
    %362 = memref.load %arg2[%c58] : memref<98xf32, #tpu.memory_space<smem>>
    %c1_189 = arith.constant 1 : index
    %c1_190 = arith.constant 1 : index
    %c2_191 = arith.constant 2 : index
    %363 = vector.load %arg4[%c1_189, %c1_190, %c2_191] : memref<2x22x22xf32, #tpu.memory_space<vmem>>, vector<1x16x16xf32>
    %364 = vector.shape_cast %363 : vector<1x16x16xf32> to vector<16x16xf32>
    %365 = vector.broadcast %362 : f32 to vector<16x16xf32>
    %366 = arith.mulf %365, %364 : vector<16x16xf32>
    %367 = arith.addf %361, %366 : vector<16x16xf32>
    %c59 = arith.constant 59 : index
    %368 = memref.load %arg2[%c59] : memref<98xf32, #tpu.memory_space<smem>>
    %c1_192 = arith.constant 1 : index
    %c1_193 = arith.constant 1 : index
    %c3_194 = arith.constant 3 : index
    %369 = vector.load %arg4[%c1_192, %c1_193, %c3_194] : memref<2x22x22xf32, #tpu.memory_space<vmem>>, vector<1x16x16xf32>
    %370 = vector.shape_cast %369 : vector<1x16x16xf32> to vector<16x16xf32>
    %371 = vector.broadcast %368 : f32 to vector<16x16xf32>
    %372 = arith.mulf %371, %370 : vector<16x16xf32>
    %373 = arith.addf %367, %372 : vector<16x16xf32>
    %c60 = arith.constant 60 : index
    %374 = memref.load %arg2[%c60] : memref<98xf32, #tpu.memory_space<smem>>
    %c1_195 = arith.constant 1 : index
    %c1_196 = arith.constant 1 : index
    %c4_197 = arith.constant 4 : index
    %375 = vector.load %arg4[%c1_195, %c1_196, %c4_197] : memref<2x22x22xf32, #tpu.memory_space<vmem>>, vector<1x16x16xf32>
    %376 = vector.shape_cast %375 : vector<1x16x16xf32> to vector<16x16xf32>
    %377 = vector.broadcast %374 : f32 to vector<16x16xf32>
    %378 = arith.mulf %377, %376 : vector<16x16xf32>
    %379 = arith.addf %373, %378 : vector<16x16xf32>
    %c61 = arith.constant 61 : index
    %380 = memref.load %arg2[%c61] : memref<98xf32, #tpu.memory_space<smem>>
    %c1_198 = arith.constant 1 : index
    %c1_199 = arith.constant 1 : index
    %c5_200 = arith.constant 5 : index
    %381 = vector.load %arg4[%c1_198, %c1_199, %c5_200] : memref<2x22x22xf32, #tpu.memory_space<vmem>>, vector<1x16x16xf32>
    %382 = vector.shape_cast %381 : vector<1x16x16xf32> to vector<16x16xf32>
    %383 = vector.broadcast %380 : f32 to vector<16x16xf32>
    %384 = arith.mulf %383, %382 : vector<16x16xf32>
    %385 = arith.addf %379, %384 : vector<16x16xf32>
    %c62 = arith.constant 62 : index
    %386 = memref.load %arg2[%c62] : memref<98xf32, #tpu.memory_space<smem>>
    %c1_201 = arith.constant 1 : index
    %c1_202 = arith.constant 1 : index
    %c6_203 = arith.constant 6 : index
    %387 = vector.load %arg4[%c1_201, %c1_202, %c6_203] : memref<2x22x22xf32, #tpu.memory_space<vmem>>, vector<1x16x16xf32>
    %388 = vector.shape_cast %387 : vector<1x16x16xf32> to vector<16x16xf32>
    %389 = vector.broadcast %386 : f32 to vector<16x16xf32>
    %390 = arith.mulf %389, %388 : vector<16x16xf32>
    %391 = arith.addf %385, %390 : vector<16x16xf32>
    %c63 = arith.constant 63 : index
    %392 = memref.load %arg2[%c63] : memref<98xf32, #tpu.memory_space<smem>>
    %c1_204 = arith.constant 1 : index
    %c2_205 = arith.constant 2 : index
    %c0_206 = arith.constant 0 : index
    %393 = vector.load %arg4[%c1_204, %c2_205, %c0_206] : memref<2x22x22xf32, #tpu.memory_space<vmem>>, vector<1x16x16xf32>
    %394 = vector.shape_cast %393 : vector<1x16x16xf32> to vector<16x16xf32>
    %395 = vector.broadcast %392 : f32 to vector<16x16xf32>
    %396 = arith.mulf %395, %394 : vector<16x16xf32>
    %397 = arith.addf %391, %396 : vector<16x16xf32>
    %c64 = arith.constant 64 : index
    %398 = memref.load %arg2[%c64] : memref<98xf32, #tpu.memory_space<smem>>
    %c1_207 = arith.constant 1 : index
    %c2_208 = arith.constant 2 : index
    %c1_209 = arith.constant 1 : index
    %399 = vector.load %arg4[%c1_207, %c2_208, %c1_209] : memref<2x22x22xf32, #tpu.memory_space<vmem>>, vector<1x16x16xf32>
    %400 = vector.shape_cast %399 : vector<1x16x16xf32> to vector<16x16xf32>
    %401 = vector.broadcast %398 : f32 to vector<16x16xf32>
    %402 = arith.mulf %401, %400 : vector<16x16xf32>
    %403 = arith.addf %397, %402 : vector<16x16xf32>
    %c65 = arith.constant 65 : index
    %404 = memref.load %arg2[%c65] : memref<98xf32, #tpu.memory_space<smem>>
    %c1_210 = arith.constant 1 : index
    %c2_211 = arith.constant 2 : index
    %c2_212 = arith.constant 2 : index
    %405 = vector.load %arg4[%c1_210, %c2_211, %c2_212] : memref<2x22x22xf32, #tpu.memory_space<vmem>>, vector<1x16x16xf32>
    %406 = vector.shape_cast %405 : vector<1x16x16xf32> to vector<16x16xf32>
    %407 = vector.broadcast %404 : f32 to vector<16x16xf32>
    %408 = arith.mulf %407, %406 : vector<16x16xf32>
    %409 = arith.addf %403, %408 : vector<16x16xf32>
    %c66 = arith.constant 66 : index
    %410 = memref.load %arg2[%c66] : memref<98xf32, #tpu.memory_space<smem>>
    %c1_213 = arith.constant 1 : index
    %c2_214 = arith.constant 2 : index
    %c3_215 = arith.constant 3 : index
    %411 = vector.load %arg4[%c1_213, %c2_214, %c3_215] : memref<2x22x22xf32, #tpu.memory_space<vmem>>, vector<1x16x16xf32>
    %412 = vector.shape_cast %411 : vector<1x16x16xf32> to vector<16x16xf32>
    %413 = vector.broadcast %410 : f32 to vector<16x16xf32>
    %414 = arith.mulf %413, %412 : vector<16x16xf32>
    %415 = arith.addf %409, %414 : vector<16x16xf32>
    %c67 = arith.constant 67 : index
    %416 = memref.load %arg2[%c67] : memref<98xf32, #tpu.memory_space<smem>>
    %c1_216 = arith.constant 1 : index
    %c2_217 = arith.constant 2 : index
    %c4_218 = arith.constant 4 : index
    %417 = vector.load %arg4[%c1_216, %c2_217, %c4_218] : memref<2x22x22xf32, #tpu.memory_space<vmem>>, vector<1x16x16xf32>
    %418 = vector.shape_cast %417 : vector<1x16x16xf32> to vector<16x16xf32>
    %419 = vector.broadcast %416 : f32 to vector<16x16xf32>
    %420 = arith.mulf %419, %418 : vector<16x16xf32>
    %421 = arith.addf %415, %420 : vector<16x16xf32>
    %c68 = arith.constant 68 : index
    %422 = memref.load %arg2[%c68] : memref<98xf32, #tpu.memory_space<smem>>
    %c1_219 = arith.constant 1 : index
    %c2_220 = arith.constant 2 : index
    %c5_221 = arith.constant 5 : index
    %423 = vector.load %arg4[%c1_219, %c2_220, %c5_221] : memref<2x22x22xf32, #tpu.memory_space<vmem>>, vector<1x16x16xf32>
    %424 = vector.shape_cast %423 : vector<1x16x16xf32> to vector<16x16xf32>
    %425 = vector.broadcast %422 : f32 to vector<16x16xf32>
    %426 = arith.mulf %425, %424 : vector<16x16xf32>
    %427 = arith.addf %421, %426 : vector<16x16xf32>
    %c69 = arith.constant 69 : index
    %428 = memref.load %arg2[%c69] : memref<98xf32, #tpu.memory_space<smem>>
    %c1_222 = arith.constant 1 : index
    %c2_223 = arith.constant 2 : index
    %c6_224 = arith.constant 6 : index
    %429 = vector.load %arg4[%c1_222, %c2_223, %c6_224] : memref<2x22x22xf32, #tpu.memory_space<vmem>>, vector<1x16x16xf32>
    %430 = vector.shape_cast %429 : vector<1x16x16xf32> to vector<16x16xf32>
    %431 = vector.broadcast %428 : f32 to vector<16x16xf32>
    %432 = arith.mulf %431, %430 : vector<16x16xf32>
    %433 = arith.addf %427, %432 : vector<16x16xf32>
    %c70 = arith.constant 70 : index
    %434 = memref.load %arg2[%c70] : memref<98xf32, #tpu.memory_space<smem>>
    %c1_225 = arith.constant 1 : index
    %c3_226 = arith.constant 3 : index
    %c0_227 = arith.constant 0 : index
    %435 = vector.load %arg4[%c1_225, %c3_226, %c0_227] : memref<2x22x22xf32, #tpu.memory_space<vmem>>, vector<1x16x16xf32>
    %436 = vector.shape_cast %435 : vector<1x16x16xf32> to vector<16x16xf32>
    %437 = vector.broadcast %434 : f32 to vector<16x16xf32>
    %438 = arith.mulf %437, %436 : vector<16x16xf32>
    %439 = arith.addf %433, %438 : vector<16x16xf32>
    %c71 = arith.constant 71 : index
    %440 = memref.load %arg2[%c71] : memref<98xf32, #tpu.memory_space<smem>>
    %c1_228 = arith.constant 1 : index
    %c3_229 = arith.constant 3 : index
    %c1_230 = arith.constant 1 : index
    %441 = vector.load %arg4[%c1_228, %c3_229, %c1_230] : memref<2x22x22xf32, #tpu.memory_space<vmem>>, vector<1x16x16xf32>
    %442 = vector.shape_cast %441 : vector<1x16x16xf32> to vector<16x16xf32>
    %443 = vector.broadcast %440 : f32 to vector<16x16xf32>
    %444 = arith.mulf %443, %442 : vector<16x16xf32>
    %445 = arith.addf %439, %444 : vector<16x16xf32>
    %c72 = arith.constant 72 : index
    %446 = memref.load %arg2[%c72] : memref<98xf32, #tpu.memory_space<smem>>
    %c1_231 = arith.constant 1 : index
    %c3_232 = arith.constant 3 : index
    %c2_233 = arith.constant 2 : index
    %447 = vector.load %arg4[%c1_231, %c3_232, %c2_233] : memref<2x22x22xf32, #tpu.memory_space<vmem>>, vector<1x16x16xf32>
    %448 = vector.shape_cast %447 : vector<1x16x16xf32> to vector<16x16xf32>
    %449 = vector.broadcast %446 : f32 to vector<16x16xf32>
    %450 = arith.mulf %449, %448 : vector<16x16xf32>
    %451 = arith.addf %445, %450 : vector<16x16xf32>
    %c73 = arith.constant 73 : index
    %452 = memref.load %arg2[%c73] : memref<98xf32, #tpu.memory_space<smem>>
    %c1_234 = arith.constant 1 : index
    %c3_235 = arith.constant 3 : index
    %c3_236 = arith.constant 3 : index
    %453 = vector.load %arg4[%c1_234, %c3_235, %c3_236] : memref<2x22x22xf32, #tpu.memory_space<vmem>>, vector<1x16x16xf32>
    %454 = vector.shape_cast %453 : vector<1x16x16xf32> to vector<16x16xf32>
    %455 = vector.broadcast %452 : f32 to vector<16x16xf32>
    %456 = arith.mulf %455, %454 : vector<16x16xf32>
    %457 = arith.addf %451, %456 : vector<16x16xf32>
    %c74 = arith.constant 74 : index
    %458 = memref.load %arg2[%c74] : memref<98xf32, #tpu.memory_space<smem>>
    %c1_237 = arith.constant 1 : index
    %c3_238 = arith.constant 3 : index
    %c4_239 = arith.constant 4 : index
    %459 = vector.load %arg4[%c1_237, %c3_238, %c4_239] : memref<2x22x22xf32, #tpu.memory_space<vmem>>, vector<1x16x16xf32>
    %460 = vector.shape_cast %459 : vector<1x16x16xf32> to vector<16x16xf32>
    %461 = vector.broadcast %458 : f32 to vector<16x16xf32>
    %462 = arith.mulf %461, %460 : vector<16x16xf32>
    %463 = arith.addf %457, %462 : vector<16x16xf32>
    %c75 = arith.constant 75 : index
    %464 = memref.load %arg2[%c75] : memref<98xf32, #tpu.memory_space<smem>>
    %c1_240 = arith.constant 1 : index
    %c3_241 = arith.constant 3 : index
    %c5_242 = arith.constant 5 : index
    %465 = vector.load %arg4[%c1_240, %c3_241, %c5_242] : memref<2x22x22xf32, #tpu.memory_space<vmem>>, vector<1x16x16xf32>
    %466 = vector.shape_cast %465 : vector<1x16x16xf32> to vector<16x16xf32>
    %467 = vector.broadcast %464 : f32 to vector<16x16xf32>
    %468 = arith.mulf %467, %466 : vector<16x16xf32>
    %469 = arith.addf %463, %468 : vector<16x16xf32>
    %c76 = arith.constant 76 : index
    %470 = memref.load %arg2[%c76] : memref<98xf32, #tpu.memory_space<smem>>
    %c1_243 = arith.constant 1 : index
    %c3_244 = arith.constant 3 : index
    %c6_245 = arith.constant 6 : index
    %471 = vector.load %arg4[%c1_243, %c3_244, %c6_245] : memref<2x22x22xf32, #tpu.memory_space<vmem>>, vector<1x16x16xf32>
    %472 = vector.shape_cast %471 : vector<1x16x16xf32> to vector<16x16xf32>
    %473 = vector.broadcast %470 : f32 to vector<16x16xf32>
    %474 = arith.mulf %473, %472 : vector<16x16xf32>
    %475 = arith.addf %469, %474 : vector<16x16xf32>
    %c77 = arith.constant 77 : index
    %476 = memref.load %arg2[%c77] : memref<98xf32, #tpu.memory_space<smem>>
    %c1_246 = arith.constant 1 : index
    %c4_247 = arith.constant 4 : index
    %c0_248 = arith.constant 0 : index
    %477 = vector.load %arg4[%c1_246, %c4_247, %c0_248] : memref<2x22x22xf32, #tpu.memory_space<vmem>>, vector<1x16x16xf32>
    %478 = vector.shape_cast %477 : vector<1x16x16xf32> to vector<16x16xf32>
    %479 = vector.broadcast %476 : f32 to vector<16x16xf32>
    %480 = arith.mulf %479, %478 : vector<16x16xf32>
    %481 = arith.addf %475, %480 : vector<16x16xf32>
    %c78 = arith.constant 78 : index
    %482 = memref.load %arg2[%c78] : memref<98xf32, #tpu.memory_space<smem>>
    %c1_249 = arith.constant 1 : index
    %c4_250 = arith.constant 4 : index
    %c1_251 = arith.constant 1 : index
    %483 = vector.load %arg4[%c1_249, %c4_250, %c1_251] : memref<2x22x22xf32, #tpu.memory_space<vmem>>, vector<1x16x16xf32>
    %484 = vector.shape_cast %483 : vector<1x16x16xf32> to vector<16x16xf32>
    %485 = vector.broadcast %482 : f32 to vector<16x16xf32>
    %486 = arith.mulf %485, %484 : vector<16x16xf32>
    %487 = arith.addf %481, %486 : vector<16x16xf32>
    %c79 = arith.constant 79 : index
    %488 = memref.load %arg2[%c79] : memref<98xf32, #tpu.memory_space<smem>>
    %c1_252 = arith.constant 1 : index
    %c4_253 = arith.constant 4 : index
    %c2_254 = arith.constant 2 : index
    %489 = vector.load %arg4[%c1_252, %c4_253, %c2_254] : memref<2x22x22xf32, #tpu.memory_space<vmem>>, vector<1x16x16xf32>
    %490 = vector.shape_cast %489 : vector<1x16x16xf32> to vector<16x16xf32>
    %491 = vector.broadcast %488 : f32 to vector<16x16xf32>
    %492 = arith.mulf %491, %490 : vector<16x16xf32>
    %493 = arith.addf %487, %492 : vector<16x16xf32>
    %c80 = arith.constant 80 : index
    %494 = memref.load %arg2[%c80] : memref<98xf32, #tpu.memory_space<smem>>
    %c1_255 = arith.constant 1 : index
    %c4_256 = arith.constant 4 : index
    %c3_257 = arith.constant 3 : index
    %495 = vector.load %arg4[%c1_255, %c4_256, %c3_257] : memref<2x22x22xf32, #tpu.memory_space<vmem>>, vector<1x16x16xf32>
    %496 = vector.shape_cast %495 : vector<1x16x16xf32> to vector<16x16xf32>
    %497 = vector.broadcast %494 : f32 to vector<16x16xf32>
    %498 = arith.mulf %497, %496 : vector<16x16xf32>
    %499 = arith.addf %493, %498 : vector<16x16xf32>
    %c81 = arith.constant 81 : index
    %500 = memref.load %arg2[%c81] : memref<98xf32, #tpu.memory_space<smem>>
    %c1_258 = arith.constant 1 : index
    %c4_259 = arith.constant 4 : index
    %c4_260 = arith.constant 4 : index
    %501 = vector.load %arg4[%c1_258, %c4_259, %c4_260] : memref<2x22x22xf32, #tpu.memory_space<vmem>>, vector<1x16x16xf32>
    %502 = vector.shape_cast %501 : vector<1x16x16xf32> to vector<16x16xf32>
    %503 = vector.broadcast %500 : f32 to vector<16x16xf32>
    %504 = arith.mulf %503, %502 : vector<16x16xf32>
    %505 = arith.addf %499, %504 : vector<16x16xf32>
    %c82 = arith.constant 82 : index
    %506 = memref.load %arg2[%c82] : memref<98xf32, #tpu.memory_space<smem>>
    %c1_261 = arith.constant 1 : index
    %c4_262 = arith.constant 4 : index
    %c5_263 = arith.constant 5 : index
    %507 = vector.load %arg4[%c1_261, %c4_262, %c5_263] : memref<2x22x22xf32, #tpu.memory_space<vmem>>, vector<1x16x16xf32>
    %508 = vector.shape_cast %507 : vector<1x16x16xf32> to vector<16x16xf32>
    %509 = vector.broadcast %506 : f32 to vector<16x16xf32>
    %510 = arith.mulf %509, %508 : vector<16x16xf32>
    %511 = arith.addf %505, %510 : vector<16x16xf32>
    %c83 = arith.constant 83 : index
    %512 = memref.load %arg2[%c83] : memref<98xf32, #tpu.memory_space<smem>>
    %c1_264 = arith.constant 1 : index
    %c4_265 = arith.constant 4 : index
    %c6_266 = arith.constant 6 : index
    %513 = vector.load %arg4[%c1_264, %c4_265, %c6_266] : memref<2x22x22xf32, #tpu.memory_space<vmem>>, vector<1x16x16xf32>
    %514 = vector.shape_cast %513 : vector<1x16x16xf32> to vector<16x16xf32>
    %515 = vector.broadcast %512 : f32 to vector<16x16xf32>
    %516 = arith.mulf %515, %514 : vector<16x16xf32>
    %517 = arith.addf %511, %516 : vector<16x16xf32>
    %c84 = arith.constant 84 : index
    %518 = memref.load %arg2[%c84] : memref<98xf32, #tpu.memory_space<smem>>
    %c1_267 = arith.constant 1 : index
    %c5_268 = arith.constant 5 : index
    %c0_269 = arith.constant 0 : index
    %519 = vector.load %arg4[%c1_267, %c5_268, %c0_269] : memref<2x22x22xf32, #tpu.memory_space<vmem>>, vector<1x16x16xf32>
    %520 = vector.shape_cast %519 : vector<1x16x16xf32> to vector<16x16xf32>
    %521 = vector.broadcast %518 : f32 to vector<16x16xf32>
    %522 = arith.mulf %521, %520 : vector<16x16xf32>
    %523 = arith.addf %517, %522 : vector<16x16xf32>
    %c85 = arith.constant 85 : index
    %524 = memref.load %arg2[%c85] : memref<98xf32, #tpu.memory_space<smem>>
    %c1_270 = arith.constant 1 : index
    %c5_271 = arith.constant 5 : index
    %c1_272 = arith.constant 1 : index
    %525 = vector.load %arg4[%c1_270, %c5_271, %c1_272] : memref<2x22x22xf32, #tpu.memory_space<vmem>>, vector<1x16x16xf32>
    %526 = vector.shape_cast %525 : vector<1x16x16xf32> to vector<16x16xf32>
    %527 = vector.broadcast %524 : f32 to vector<16x16xf32>
    %528 = arith.mulf %527, %526 : vector<16x16xf32>
    %529 = arith.addf %523, %528 : vector<16x16xf32>
    %c86 = arith.constant 86 : index
    %530 = memref.load %arg2[%c86] : memref<98xf32, #tpu.memory_space<smem>>
    %c1_273 = arith.constant 1 : index
    %c5_274 = arith.constant 5 : index
    %c2_275 = arith.constant 2 : index
    %531 = vector.load %arg4[%c1_273, %c5_274, %c2_275] : memref<2x22x22xf32, #tpu.memory_space<vmem>>, vector<1x16x16xf32>
    %532 = vector.shape_cast %531 : vector<1x16x16xf32> to vector<16x16xf32>
    %533 = vector.broadcast %530 : f32 to vector<16x16xf32>
    %534 = arith.mulf %533, %532 : vector<16x16xf32>
    %535 = arith.addf %529, %534 : vector<16x16xf32>
    %c87 = arith.constant 87 : index
    %536 = memref.load %arg2[%c87] : memref<98xf32, #tpu.memory_space<smem>>
    %c1_276 = arith.constant 1 : index
    %c5_277 = arith.constant 5 : index
    %c3_278 = arith.constant 3 : index
    %537 = vector.load %arg4[%c1_276, %c5_277, %c3_278] : memref<2x22x22xf32, #tpu.memory_space<vmem>>, vector<1x16x16xf32>
    %538 = vector.shape_cast %537 : vector<1x16x16xf32> to vector<16x16xf32>
    %539 = vector.broadcast %536 : f32 to vector<16x16xf32>
    %540 = arith.mulf %539, %538 : vector<16x16xf32>
    %541 = arith.addf %535, %540 : vector<16x16xf32>
    %c88 = arith.constant 88 : index
    %542 = memref.load %arg2[%c88] : memref<98xf32, #tpu.memory_space<smem>>
    %c1_279 = arith.constant 1 : index
    %c5_280 = arith.constant 5 : index
    %c4_281 = arith.constant 4 : index
    %543 = vector.load %arg4[%c1_279, %c5_280, %c4_281] : memref<2x22x22xf32, #tpu.memory_space<vmem>>, vector<1x16x16xf32>
    %544 = vector.shape_cast %543 : vector<1x16x16xf32> to vector<16x16xf32>
    %545 = vector.broadcast %542 : f32 to vector<16x16xf32>
    %546 = arith.mulf %545, %544 : vector<16x16xf32>
    %547 = arith.addf %541, %546 : vector<16x16xf32>
    %c89 = arith.constant 89 : index
    %548 = memref.load %arg2[%c89] : memref<98xf32, #tpu.memory_space<smem>>
    %c1_282 = arith.constant 1 : index
    %c5_283 = arith.constant 5 : index
    %c5_284 = arith.constant 5 : index
    %549 = vector.load %arg4[%c1_282, %c5_283, %c5_284] : memref<2x22x22xf32, #tpu.memory_space<vmem>>, vector<1x16x16xf32>
    %550 = vector.shape_cast %549 : vector<1x16x16xf32> to vector<16x16xf32>
    %551 = vector.broadcast %548 : f32 to vector<16x16xf32>
    %552 = arith.mulf %551, %550 : vector<16x16xf32>
    %553 = arith.addf %547, %552 : vector<16x16xf32>
    %c90 = arith.constant 90 : index
    %554 = memref.load %arg2[%c90] : memref<98xf32, #tpu.memory_space<smem>>
    %c1_285 = arith.constant 1 : index
    %c5_286 = arith.constant 5 : index
    %c6_287 = arith.constant 6 : index
    %555 = vector.load %arg4[%c1_285, %c5_286, %c6_287] : memref<2x22x22xf32, #tpu.memory_space<vmem>>, vector<1x16x16xf32>
    %556 = vector.shape_cast %555 : vector<1x16x16xf32> to vector<16x16xf32>
    %557 = vector.broadcast %554 : f32 to vector<16x16xf32>
    %558 = arith.mulf %557, %556 : vector<16x16xf32>
    %559 = arith.addf %553, %558 : vector<16x16xf32>
    %c91 = arith.constant 91 : index
    %560 = memref.load %arg2[%c91] : memref<98xf32, #tpu.memory_space<smem>>
    %c1_288 = arith.constant 1 : index
    %c6_289 = arith.constant 6 : index
    %c0_290 = arith.constant 0 : index
    %561 = vector.load %arg4[%c1_288, %c6_289, %c0_290] : memref<2x22x22xf32, #tpu.memory_space<vmem>>, vector<1x16x16xf32>
    %562 = vector.shape_cast %561 : vector<1x16x16xf32> to vector<16x16xf32>
    %563 = vector.broadcast %560 : f32 to vector<16x16xf32>
    %564 = arith.mulf %563, %562 : vector<16x16xf32>
    %565 = arith.addf %559, %564 : vector<16x16xf32>
    %c92 = arith.constant 92 : index
    %566 = memref.load %arg2[%c92] : memref<98xf32, #tpu.memory_space<smem>>
    %c1_291 = arith.constant 1 : index
    %c6_292 = arith.constant 6 : index
    %c1_293 = arith.constant 1 : index
    %567 = vector.load %arg4[%c1_291, %c6_292, %c1_293] : memref<2x22x22xf32, #tpu.memory_space<vmem>>, vector<1x16x16xf32>
    %568 = vector.shape_cast %567 : vector<1x16x16xf32> to vector<16x16xf32>
    %569 = vector.broadcast %566 : f32 to vector<16x16xf32>
    %570 = arith.mulf %569, %568 : vector<16x16xf32>
    %571 = arith.addf %565, %570 : vector<16x16xf32>
    %c93 = arith.constant 93 : index
    %572 = memref.load %arg2[%c93] : memref<98xf32, #tpu.memory_space<smem>>
    %c1_294 = arith.constant 1 : index
    %c6_295 = arith.constant 6 : index
    %c2_296 = arith.constant 2 : index
    %573 = vector.load %arg4[%c1_294, %c6_295, %c2_296] : memref<2x22x22xf32, #tpu.memory_space<vmem>>, vector<1x16x16xf32>
    %574 = vector.shape_cast %573 : vector<1x16x16xf32> to vector<16x16xf32>
    %575 = vector.broadcast %572 : f32 to vector<16x16xf32>
    %576 = arith.mulf %575, %574 : vector<16x16xf32>
    %577 = arith.addf %571, %576 : vector<16x16xf32>
    %c94 = arith.constant 94 : index
    %578 = memref.load %arg2[%c94] : memref<98xf32, #tpu.memory_space<smem>>
    %c1_297 = arith.constant 1 : index
    %c6_298 = arith.constant 6 : index
    %c3_299 = arith.constant 3 : index
    %579 = vector.load %arg4[%c1_297, %c6_298, %c3_299] : memref<2x22x22xf32, #tpu.memory_space<vmem>>, vector<1x16x16xf32>
    %580 = vector.shape_cast %579 : vector<1x16x16xf32> to vector<16x16xf32>
    %581 = vector.broadcast %578 : f32 to vector<16x16xf32>
    %582 = arith.mulf %581, %580 : vector<16x16xf32>
    %583 = arith.addf %577, %582 : vector<16x16xf32>
    %c95 = arith.constant 95 : index
    %584 = memref.load %arg2[%c95] : memref<98xf32, #tpu.memory_space<smem>>
    %c1_300 = arith.constant 1 : index
    %c6_301 = arith.constant 6 : index
    %c4_302 = arith.constant 4 : index
    %585 = vector.load %arg4[%c1_300, %c6_301, %c4_302] : memref<2x22x22xf32, #tpu.memory_space<vmem>>, vector<1x16x16xf32>
    %586 = vector.shape_cast %585 : vector<1x16x16xf32> to vector<16x16xf32>
    %587 = vector.broadcast %584 : f32 to vector<16x16xf32>
    %588 = arith.mulf %587, %586 : vector<16x16xf32>
    %589 = arith.addf %583, %588 : vector<16x16xf32>
    %c96 = arith.constant 96 : index
    %590 = memref.load %arg2[%c96] : memref<98xf32, #tpu.memory_space<smem>>
    %c1_303 = arith.constant 1 : index
    %c6_304 = arith.constant 6 : index
    %c5_305 = arith.constant 5 : index
    %591 = vector.load %arg4[%c1_303, %c6_304, %c5_305] : memref<2x22x22xf32, #tpu.memory_space<vmem>>, vector<1x16x16xf32>
    %592 = vector.shape_cast %591 : vector<1x16x16xf32> to vector<16x16xf32>
    %593 = vector.broadcast %590 : f32 to vector<16x16xf32>
    %594 = arith.mulf %593, %592 : vector<16x16xf32>
    %595 = arith.addf %589, %594 : vector<16x16xf32>
    %c97 = arith.constant 97 : index
    %596 = memref.load %arg2[%c97] : memref<98xf32, #tpu.memory_space<smem>>
    %c1_306 = arith.constant 1 : index
    %c6_307 = arith.constant 6 : index
    %c6_308 = arith.constant 6 : index
    %597 = vector.load %arg4[%c1_306, %c6_307, %c6_308] : memref<2x22x22xf32, #tpu.memory_space<vmem>>, vector<1x16x16xf32>
    %598 = vector.shape_cast %597 : vector<1x16x16xf32> to vector<16x16xf32>
    %599 = vector.broadcast %596 : f32 to vector<16x16xf32>
    %600 = arith.mulf %599, %598 : vector<16x16xf32>
    %601 = arith.addf %595, %600 : vector<16x16xf32>
    %602 = arith.negf %601 : vector<16x16xf32>
    %603 = math.exp %602 : vector<16x16xf32>
    %cst_309 = arith.constant 1.000000e+00 : f32
    %604 = vector.broadcast %cst_309 : f32 to vector<16x16xf32>
    %605 = arith.addf %604, %603 : vector<16x16xf32>
    %606 = arith.divf %604, %605 : vector<16x16xf32>
    %c0_310 = arith.constant 0 : index
    %c0_311 = arith.constant 0 : index
    %c0_312 = arith.constant 0 : index
    %607 = vector.load %arg3[%c0_310, %c0_311, %c0_312] : memref<1x16x16xf32, #tpu.memory_space<vmem>>, vector<1x16x16xf32>
    %608 = vector.shape_cast %607 : vector<1x16x16xf32> to vector<16x16xf32>
    %609 = vector.shape_cast %606 : vector<16x16xf32> to vector<1x16x16xf32>
    tpu.vector_store %arg3[%c0_310, %c0_311, %c0_312], %609 {strides = array<i32>} : memref<1x16x16xf32, #tpu.memory_space<vmem>>, vector<1x16x16xf32>,
    return
  }
  func.func @transform_0(%arg0: i32) -> (i32, i32, i32, i32) {
    %c0_i32 = arith.constant 0 : i32
    %c0_i32_0 = arith.constant 0 : i32
    %c0_i32_1 = arith.constant 0 : i32
    %c0_i32_2 = arith.constant 0 : i32
    return %arg0, %c0_i32, %c0_i32_0, %c0_i32_1 : i32, i32, i32, i32
  }
  func.func @transform_1(%arg0: i32) -> i32 {
    %c0_i32 = arith.constant 0 : i32
    %c0_i32_0 = arith.constant 0 : i32
    return %c0_i32 : i32
  }
  func.func @transform_2(%arg0: i32) -> (i32, i32, i32) {
    %c0_i32 = arith.constant 0 : i32
    %c0_i32_0 = arith.constant 0 : i32
    %c0_i32_1 = arith.constant 0 : i32
    return %arg0, %c0_i32, %c0_i32_0 : i32, i32, i32
  }
}

</mosaic_0001>

<llo_original>
// kernel: spatial_attention_pallas.5
$region0: #{spatial_attention_pallas.5}
  #allocation0 [shape = 'u32[]', space=smem, size = 0x4, offset = 0x4, fixed_abs, tag = 'smem constant byte address 0x4 - core index']
  #allocation1 [shape = 'u32[144,128]{1,0:T(1,128)}', space=vmem, size = 0x12000, scoped, tag = 'internal scratch']
  %s0 = inlined_call_operand.vmem [shape: f32[2,4,256], index: 0, kind: input, shape index: {}]
  %s1 = inlined_call_operand.vmem [shape: f32[2,1,256], index: 1, kind: input, shape index: {}]
  %s2 = inlined_call_operand.vmem [shape: f32[2,4,256], index: 2, kind: output, shape index: {}]
  %s3 = sld [smem:[#allocation0]]
  $region41: #{spatial_attention_pallas.5} parent=0
    _
  %s5 = ssub.s32 1, %s3
  %s6 = scalar_select 0, %s5, %s3
  loop: start=0, step=1, limit=4
  $region2: #{spatial_attention_pallas.5} parent=0 // loop_pre_header
    _
  $region3: #{spatial_attention_pallas.5} parent=0 // loop_header
    %s8 = sphi 0, %s12
    %p9 = scmp.ge.s32.totalorder %s8, 4
    %s15 = sphi 0, %s27
    %s16 = sphi 0, %s23
    %s17 = sphi 0, %s15
    %s18 = sphi 0, %s16
    %s19 = sphi 0, %s17
    %s20 = sphi 0, %s18
    %s32 = sphi 0, %s34
    %s35 = sphi 0, %s32
    %s36 = sphi 0, %s35
    %s52 = sphi 0, %s36
    %s58 = sphi 0, %s60
    %s61 = sphi 0, %s58
    %s62 = sphi 0, %s61
    %s78 = sphi 0, %s62
    %s86 = sphi 0, %s88
    %s89 = sphi 0, %s86
    %s90 = sphi 0, %s89
    %s106 = sphi 0, %s90
  $region4: #{spatial_attention_pallas.5} parent=0 // loop_header_branch
    %11 = sbr.rel (%p9) target = $region8
  $region5: #{spatial_attention_pallas.5} parent=0 // loop_body
    %s13 = ssub.s32 %s8, 1
    %s14 = ssub.s32 %s8, 2
    %s21 = sadd.s32 1, %s16
    %p22 = scmp.ge.s32.totalorder %s21, 1
    %s23 = scalar_select %p22, 0, %s21
    %s24 = sadd.s32 1, %s15
    %s25 = scalar_select %p22, %s24, %s15
    %p26 = scmp.ge.s32.totalorder %s25, 2
    %s27 = scalar_select %p26, 0, %s25
    %s28 = ssub.s32 %s15, %s27
    %s29 = ssub.s32 %s16, %s23
    %s30 = sor.u32 %s28, %s29
    %p31 = scmp.eq.s32.totalorder %s30, 0
    %s33 = sadd.s32 %s32, 1
    %s34 = scalar_select %p31, %s32, %s33
    %p37 = pneg %p31
    %p38 = scmp.eq.s32.totalorder %s8, 1
    %p39 = por %p37, %p38
    %p40 = scmp.ne.s32.totalorder %s32, %s35
    %p41 = scmp.eq.s32.totalorder %s8, 0
    %p42 = por %p40, %p41
    %p43 = scmp.ne.s32.totalorder %s32, %s35
    %p44 = scmp.eq.s32.totalorder %s13, 1
    %p45 = por %p43, %p44
    %p46 = scmp.ne.s32.totalorder %s35, %s36
    %p47 = scmp.eq.s32.totalorder %s13, 0
    %p48 = por %p46, %p47
    %p49 = scmp.ne.s32.totalorder %s35, %s36
    %p50 = scmp.eq.s32.totalorder %s14, 1
    %p51 = por %p49, %p50
    %p53 = scmp.ne.s32.totalorder %s36, %s52
    %p54 = scmp.eq.s32.totalorder %s14, 0
    %p55 = por %p53, %p54
    %s56 = ssub.s32 %s15, %s27
    %p57 = scmp.eq.s32.totalorder %s56, 0
    %s59 = sadd.s32 %s58, 1
    %s60 = scalar_select %p57, %s58, %s59
    %p63 = pneg %p57
    %p64 = scmp.eq.s32.totalorder %s8, 1
    %p65 = por %p63, %p64
    %p66 = scmp.ne.s32.totalorder %s58, %s61
    %p67 = scmp.eq.s32.totalorder %s8, 0
    %p68 = por %p66, %p67
    %p69 = scmp.ne.s32.totalorder %s58, %s61
    %p70 = scmp.eq.s32.totalorder %s13, 1
    %p71 = por %p69, %p70
    %p72 = scmp.ne.s32.totalorder %s61, %s62
    %p73 = scmp.eq.s32.totalorder %s13, 0
    %p74 = por %p72, %p73
    %p75 = scmp.ne.s32.totalorder %s61, %s62
    %p76 = scmp.eq.s32.totalorder %s14, 1
    %p77 = por %p75, %p76
    %p79 = scmp.ne.s32.totalorder %s62, %s78
    %p80 = scmp.eq.s32.totalorder %s14, 0
    %p81 = por %p79, %p80
    %s82 = ssub.s32 %s15, %s27
    %s83 = ssub.s32 %s16, %s23
    %s84 = sor.u32 %s82, %s83
    %p85 = scmp.eq.s32.totalorder %s84, 0
    %s87 = sadd.s32 %s86, 1
    %s88 = scalar_select %p85, %s86, %s87
    %p91 = pneg %p85
    %p92 = scmp.eq.s32.totalorder %s8, 1
    %p93 = por %p91, %p92
    %p94 = scmp.ne.s32.totalorder %s86, %s89
    %p95 = scmp.eq.s32.totalorder %s8, 0
    %p96 = por %p94, %p95
    %p97 = scmp.ne.s32.totalorder %s86, %s89
    %p98 = scmp.eq.s32.totalorder %s13, 1
    %p99 = por %p97, %p98
    %p100 = scmp.ne.s32.totalorder %s89, %s90
    %p101 = scmp.eq.s32.totalorder %s13, 0
    %p102 = por %p100, %p101
    %p103 = scmp.ne.s32.totalorder %s89, %s90
    %p104 = scmp.eq.s32.totalorder %s14, 1
    %p105 = por %p103, %p104
    %p107 = scmp.ne.s32.totalorder %s90, %s106
    %p108 = scmp.eq.s32.totalorder %s14, 0
    %p109 = por %p107, %p108
    %p110 = scmp.le.s32.totalorder 1, %s8
    %p111 = scmp.lt.s32.totalorder %s8, 3
    %p112 = pnand %p110, %p111
    %p113 = pneg %p112
    // Predicated region
    $region9: #{spatial_attention_pallas.5} parent=5 // pred_check
      _
    $region10: #{spatial_attention_pallas.5} parent=5 // pred_check_branch
      %115 = sbr.rel (%p112) target = $region12
    $region11: #{spatial_attention_pallas.5} parent=5 // pred_region
      %s116 = ssub.s32 %s8, 1
    $region12: #{spatial_attention_pallas.5} parent=5 // pred_fallthru
      _
    %p117 = scmp.lt.s32.totalorder %s8, 2
    // Predicated region
    $region13: #{spatial_attention_pallas.5} parent=5 // pred_check
      %p118 = pneg %p117
    $region14: #{spatial_attention_pallas.5} parent=5 // pred_check_branch
      %120 = sbr.rel (%p118) target = $region16
    $region15: #{spatial_attention_pallas.5} parent=5 // pred_region
      // Predicated region
      $region17: #{spatial_attention_pallas.5} parent=15 // pred_check
        %p121 = pneg %p42
      $region18: #{spatial_attention_pallas.5} parent=15 // pred_check_branch
        %123 = sbr.rel (%p121) target = $region20
      $region19: #{spatial_attention_pallas.5} parent=15 // pred_region
        %p124 = scmp.lt.s32.totalorder %s15, 1
        %s125 = scalar_select %p124, %s15, 1
        %p126 = scmp.lt.s32.totalorder %s16, 0
        %s127 = scalar_select %p126, %s16, 0
        %s128 = smul.addr %s127, 2
        %s129 = smul.addr %s125, 2
        %s130 = sadd.s32 %s128, %s129
        %s131 = smul.addr %s130, 4
        %s132 = scalar_lea.vmem %s0, %s131
      $region20: #{spatial_attention_pallas.5} parent=15 // pred_fallthru
        _
      // Predicated region
      $region21: #{spatial_attention_pallas.5} parent=15 // pred_check
        %p133 = pneg %p68
      $region22: #{spatial_attention_pallas.5} parent=15 // pred_check_branch
        %135 = sbr.rel (%p133) target = $region24
      $region23: #{spatial_attention_pallas.5} parent=15 // pred_region
        %p136 = scmp.lt.s32.totalorder %s15, 1
        %s137 = scalar_select %p136, %s15, 1
        %s138 = smul.addr %s137, 2
        %s139 = scalar_lea.vmem %s1, %s138
      $region24: #{spatial_attention_pallas.5} parent=15 // pred_fallthru
        _
    $region16: #{spatial_attention_pallas.5} parent=5 // pred_fallthru
      _
    %p140 = scmp.le.s32.totalorder 1, %s8
    %p141 = scmp.lt.s32.totalorder %s8, 3
    %p142 = pnand %p140, %p141
    %p143 = pneg %p142
    // Predicated region
    $region25: #{spatial_attention_pallas.5} parent=5 // pred_check
      _
    $region26: #{spatial_attention_pallas.5} parent=5 // pred_check_branch
      %145 = sbr.rel (%p142) target = $region28
    $region27: #{spatial_attention_pallas.5} parent=5 // pred_region
      %s146 = ssub.s32 %s8, 1
      %p147 = scmp.lt.s32.totalorder %s17, 1
      %s148 = scalar_select %p147, %s17, 1
      %p149 = scmp.lt.s32.totalorder %s18, 0
      %s150 = scalar_select %p149, %s18, 0
      %s151 = smul.addr %s150, 2
      %s152 = smul.addr %s148, 2
      %s153 = sadd.s32 %s151, %s152
      %s154 = smul.addr %s153, 4
      %s155 = scalar_lea.vmem %s0, %s154
      %p156 = pneg %p48
      %p157 = pneg %p45
      %p158 = scmp.lt.s32.totalorder %s17, 1
      %s159 = scalar_select %p158, %s17, 1
      %s160 = smul.addr %s159, 2
      %s161 = scalar_lea.vmem %s1, %s160
      %p162 = pneg %p74
      %p163 = pneg %p71
      %p164 = pneg %p102
      %p165 = pneg %p99
      %p166 = scmp.lt.s32.totalorder %s17, 1
      %s167 = scalar_select %p166, %s17, 1
      %p168 = scmp.lt.s32.totalorder %s18, 0
      %s169 = scalar_select %p168, %s18, 0
      %s170 = smul.addr %s169, 2
      %s171 = smul.addr %s167, 2
      %s172 = sadd.s32 %s170, %s171
      %s173 = smul.addr %s172, 4
      %s174 = scalar_lea.vmem %s2, %s173
      %p175 = scmp.lt.s32.totalorder %s17, 1
      %s176 = scalar_select %p175, %s17, 1
      %p177 = scmp.lt.s32.totalorder %s18, 0
      %s178 = scalar_select %p177, %s18, 0
      %s179 = smul.addr %s178, 2
      %s180 = smul.addr %s176, 2
      %s181 = sadd.s32 %s179, %s180
      %s182 = smul.addr %s181, 4
      %s183 = scalar_lea.vmem %s0, %s182
      %p184 = scmp.lt.s32.totalorder %s17, 1
      %s185 = scalar_select %p184, %s17, 1
      %s186 = smul.addr %s185, 2
      %s187 = scalar_lea.vmem %s1, %s186
      %p188 = scmp.lt.s32.totalorder %s17, 1
      %s189 = scalar_select %p188, %s17, 1
      %p190 = scmp.lt.s32.totalorder %s18, 0
      %s191 = scalar_select %p190, %s18, 0
      %s192 = smul.addr %s191, 2
      %s193 = smul.addr %s189, 2
      %s194 = sadd.s32 %s192, %s193
      %s195 = smul.addr %s194, 4
      %s196 = scalar_lea.vmem %s2, %s195
      %v197 = vld [vmem:[%s187] sm:$0x3]
      %v198 = vld [vmem:[%s183] sm:$0xff]
      %v200 = vlaneseq
      %v201 = vshrl.u32 %v200, 7
      %v202 = vsub.s32 0, %v201
      %v203 = vrot.slane %v197, %v202
      %v204 = vlaneseq
      %v205 = vshrl.u32 %v204, 7
      %v206 = vsub.s32 1, %v205
      %v207 = vrot.slane %v197, %v206
      %v208 = vcombine.low %v203, %v207
      %v210 = vmul.f32 %v198, %v208
      %211 = vst [vmem:[%s196] sm:$0xff] %v210
      %p212 = scmp.lt.s32.totalorder %s17, 1
      %s213 = scalar_select %p212, %s17, 1
      %p214 = scmp.lt.s32.totalorder %s18, 0
      %s215 = scalar_select %p214, %s18, 0
      %s216 = smul.addr %s215, 2
      %s217 = smul.addr %s213, 2
      %s218 = sadd.s32 %s216, %s217
      %s219 = smul.addr %s218, 4
      %s220 = scalar_lea.vmem %s2, %s219
      // Predicated region
      $region29: #{spatial_attention_pallas.5} parent=27 // pred_check
        %p221 = pneg %p99
      $region30: #{spatial_attention_pallas.5} parent=27 // pred_check_branch
        %223 = sbr.rel (%p221) target = $region32
      $region31: #{spatial_attention_pallas.5} parent=27 // pred_region
        _
      $region32: #{spatial_attention_pallas.5} parent=27 // pred_fallthru
        _
    $region28: #{spatial_attention_pallas.5} parent=5 // pred_fallthru
      _
    %p224 = scmp.le.s32.totalorder 2, %s8
    // Predicated region
    $region33: #{spatial_attention_pallas.5} parent=5 // pred_check
      %p225 = pneg %p224
    $region34: #{spatial_attention_pallas.5} parent=5 // pred_check_branch
      %227 = sbr.rel (%p225) target = $region36
    $region35: #{spatial_attention_pallas.5} parent=5 // pred_region
      %s228 = ssub.s32 %s8, 2
      // Predicated region
      $region37: #{spatial_attention_pallas.5} parent=35 // pred_check
        %p229 = pneg %p105
      $region38: #{spatial_attention_pallas.5} parent=35 // pred_check_branch
        %231 = sbr.rel (%p229) target = $region40
      $region39: #{spatial_attention_pallas.5} parent=35 // pred_region
        %p232 = scmp.lt.s32.totalorder %s19, 1
        %s233 = scalar_select %p232, %s19, 1
        %p234 = scmp.lt.s32.totalorder %s20, 0
        %s235 = scalar_select %p234, %s20, 0
        %s236 = smul.addr %s235, 2
        %s237 = smul.addr %s233, 2
        %s238 = sadd.s32 %s236, %s237
        %s239 = smul.addr %s238, 4
        %s240 = scalar_lea.vmem %s2, %s239
      $region40: #{spatial_attention_pallas.5} parent=35 // pred_fallthru
        _
    $region36: #{spatial_attention_pallas.5} parent=5 // pred_fallthru
      _
  $region6: #{spatial_attention_pallas.5} parent=0 // loop_footer
    %s12 = sadd.s32 1, %s8
  $region7: #{spatial_attention_pallas.5} parent=0 // loop_footer_branch
    %7 = sbr.rel target = $region3
  $region8: #{spatial_attention_pallas.5} parent=0 // loop_exit
    _

// kernel: spatial_attention_pallas.3
$region0: #{spatial_attention_pallas.3}
  #allocation0 [shape = 'u32[]', space=smem, size = 0x4, offset = 0x4, fixed_abs, tag = 'smem constant byte address 0x4 - core index']
  #allocation1 [shape = 'u32[144,128]{1,0:T(1,128)}', space=vmem, size = 0x12000, scoped, tag = 'internal scratch']
  %s0 = inlined_call_operand.vmem [shape: f32[2,4,256], index: 0, kind: input, shape index: {}]
  %s1 = inlined_call_operand.vmem [shape: f32[2,2,256], index: 1, kind: output, shape index: {}]
  %s2 = sld [smem:[#allocation0]]
  $region49: #{spatial_attention_pallas.3} parent=0
    _
  %s4 = ssub.s32 1, %s2
  %s5 = scalar_select 0, %s4, %s2
  loop: start=0, step=1, limit=4
  $region2: #{spatial_attention_pallas.3} parent=0 // loop_pre_header
    _
  $region3: #{spatial_attention_pallas.3} parent=0 // loop_header
    %s7 = sphi 0, %s11
    %p8 = scmp.ge.s32.totalorder %s7, 4
    %s14 = sphi 0, %s26
    %s15 = sphi 0, %s22
    %s16 = sphi 0, %s14
    %s17 = sphi 0, %s15
    %s18 = sphi 0, %s16
    %s19 = sphi 0, %s17
    %s31 = sphi 0, %s33
    %s34 = sphi 0, %s31
    %s35 = sphi 0, %s34
    %s51 = sphi 0, %s35
    %s57 = sphi 0, %s59
    %s60 = sphi 0, %s57
    %s61 = sphi 0, %s60
    %s77 = sphi 0, %s61
  $region4: #{spatial_attention_pallas.3} parent=0 // loop_header_branch
    %10 = sbr.rel (%p8) target = $region8
  $region5: #{spatial_attention_pallas.3} parent=0 // loop_body
    %s12 = ssub.s32 %s7, 1
    %s13 = ssub.s32 %s7, 2
    %s20 = sadd.s32 1, %s15
    %p21 = scmp.ge.s32.totalorder %s20, 1
    %s22 = scalar_select %p21, 0, %s20
    %s23 = sadd.s32 1, %s14
    %s24 = scalar_select %p21, %s23, %s14
    %p25 = scmp.ge.s32.totalorder %s24, 2
    %s26 = scalar_select %p25, 0, %s24
    %s27 = ssub.s32 %s14, %s26
    %s28 = ssub.s32 %s15, %s22
    %s29 = sor.u32 %s27, %s28
    %p30 = scmp.eq.s32.totalorder %s29, 0
    %s32 = sadd.s32 %s31, 1
    %s33 = scalar_select %p30, %s31, %s32
    %p36 = pneg %p30
    %p37 = scmp.eq.s32.totalorder %s7, 1
    %p38 = por %p36, %p37
    %p39 = scmp.ne.s32.totalorder %s31, %s34
    %p40 = scmp.eq.s32.totalorder %s7, 0
    %p41 = por %p39, %p40
    %p42 = scmp.ne.s32.totalorder %s31, %s34
    %p43 = scmp.eq.s32.totalorder %s12, 1
    %p44 = por %p42, %p43
    %p45 = scmp.ne.s32.totalorder %s34, %s35
    %p46 = scmp.eq.s32.totalorder %s12, 0
    %p47 = por %p45, %p46
    %p48 = scmp.ne.s32.totalorder %s34, %s35
    %p49 = scmp.eq.s32.totalorder %s13, 1
    %p50 = por %p48, %p49
    %p52 = scmp.ne.s32.totalorder %s35, %s51
    %p53 = scmp.eq.s32.totalorder %s13, 0
    %p54 = por %p52, %p53
    %s55 = ssub.s32 %s14, %s26
    %p56 = scmp.eq.s32.totalorder %s55, 0
    %s58 = sadd.s32 %s57, 1
    %s59 = scalar_select %p56, %s57, %s58
    %p62 = pneg %p56
    %p63 = scmp.eq.s32.totalorder %s7, 1
    %p64 = por %p62, %p63
    %p65 = scmp.ne.s32.totalorder %s57, %s60
    %p66 = scmp.eq.s32.totalorder %s7, 0
    %p67 = por %p65, %p66
    %p68 = scmp.ne.s32.totalorder %s57, %s60
    %p69 = scmp.eq.s32.totalorder %s12, 1
    %p70 = por %p68, %p69
    %p71 = scmp.ne.s32.totalorder %s60, %s61
    %p72 = scmp.eq.s32.totalorder %s12, 0
    %p73 = por %p71, %p72
    %p74 = scmp.ne.s32.totalorder %s60, %s61
    %p75 = scmp.eq.s32.totalorder %s13, 1
    %p76 = por %p74, %p75
    %p78 = scmp.ne.s32.totalorder %s61, %s77
    %p79 = scmp.eq.s32.totalorder %s13, 0
    %p80 = por %p78, %p79
    %p81 = scmp.le.s32.totalorder 1, %s7
    %p82 = scmp.lt.s32.totalorder %s7, 3
    %p83 = pnand %p81, %p82
    %p84 = pneg %p83
    // Predicated region
    $region9: #{spatial_attention_pallas.3} parent=5 // pred_check
      _
    $region10: #{spatial_attention_pallas.3} parent=5 // pred_check_branch
      %86 = sbr.rel (%p83) target = $region12
    $region11: #{spatial_attention_pallas.3} parent=5 // pred_region
      %s87 = ssub.s32 %s7, 1
    $region12: #{spatial_attention_pallas.3} parent=5 // pred_fallthru
      _
    %p88 = scmp.lt.s32.totalorder %s7, 2
    // Predicated region
    $region13: #{spatial_attention_pallas.3} parent=5 // pred_check
      %p89 = pneg %p88
    $region14: #{spatial_attention_pallas.3} parent=5 // pred_check_branch
      %91 = sbr.rel (%p89) target = $region16
    $region15: #{spatial_attention_pallas.3} parent=5 // pred_region
      // Predicated region
      $region17: #{spatial_attention_pallas.3} parent=15 // pred_check
        %p92 = pneg %p41
      $region18: #{spatial_attention_pallas.3} parent=15 // pred_check_branch
        %94 = sbr.rel (%p92) target = $region20
      $region19: #{spatial_attention_pallas.3} parent=15 // pred_region
        %p95 = scmp.lt.s32.totalorder %s14, 1
        %s96 = scalar_select %p95, %s14, 1
        %p97 = scmp.lt.s32.totalorder %s15, 0
        %s98 = scalar_select %p97, %s15, 0
        %s99 = smul.addr %s98, 2
        %s100 = smul.addr %s96, 2
        %s101 = sadd.s32 %s99, %s100
        %s102 = smul.addr %s101, 4
        %s103 = scalar_lea.vmem %s0, %s102
      $region20: #{spatial_attention_pallas.3} parent=15 // pred_fallthru
        _
    $region16: #{spatial_attention_pallas.3} parent=5 // pred_fallthru
      _
    %p104 = scmp.le.s32.totalorder 1, %s7
    %p105 = scmp.lt.s32.totalorder %s7, 3
    %p106 = pnand %p104, %p105
    %p107 = pneg %p106
    // Predicated region
    $region21: #{spatial_attention_pallas.3} parent=5 // pred_check
      _
    $region22: #{spatial_attention_pallas.3} parent=5 // pred_check_branch
      %109 = sbr.rel (%p106) target = $region24
    $region23: #{spatial_attention_pallas.3} parent=5 // pred_region
      %s110 = ssub.s32 %s7, 1
      %p111 = scmp.lt.s32.totalorder %s16, 1
      %s112 = scalar_select %p111, %s16, 1
      %p113 = scmp.lt.s32.totalorder %s17, 0
      %s114 = scalar_select %p113, %s17, 0
      %s115 = smul.addr %s114, 2
      %s116 = smul.addr %s112, 2
      %s117 = sadd.s32 %s115, %s116
      %s118 = smul.addr %s117, 4
      %s119 = scalar_lea.vmem %s0, %s118
      %p120 = pneg %p47
      %p121 = pneg %p44
      %p122 = pneg %p73
      %p123 = pneg %p70
      %p124 = scmp.lt.s32.totalorder %s16, 1
      %s125 = scalar_select %p124, %s16, 1
      %s126 = smul.addr %s125, 2
      %s127 = smul.addr %s126, 2
      %s128 = scalar_lea.vmem %s1, %s127
      %p129 = scmp.lt.s32.totalorder %s16, 1
      %s130 = scalar_select %p129, %s16, 1
      %p131 = scmp.lt.s32.totalorder %s17, 0
      %s132 = scalar_select %p131, %s17, 0
      %s133 = smul.addr %s132, 2
      %s134 = smul.addr %s130, 2
      %s135 = sadd.s32 %s133, %s134
      %s136 = smul.addr %s135, 4
      %s137 = scalar_lea.vmem %s0, %s136
      %p138 = scmp.lt.s32.totalorder %s16, 1
      %s139 = scalar_select %p138, %s16, 1
      %s140 = smul.addr %s139, 2
      %s141 = smul.addr %s140, 2
      %s142 = scalar_lea.vmem %s1, %s141
      %v143 = vld [vmem:[%s137] sm:$0xff]
      %v145 = vcombine.high %v143, %v143
      %vm147 = vcmask 1043456
      %v148 = vsel %vm147, %v143, 0.0
      %v149 = vrot.slane %v148, 4
      %v150 = vadd.f32 %v148, %v149
      %v151 = vrot.slane %v150, 2
      %v152 = vadd.f32 %v150, %v151
      %v153 = vrot.slane %v152, 1
      %v154 = vadd.f32 %v152, %v153
      %v155 = vsel %vm147, %v145, 0.0
      %v156 = vrot.slane %v155, 4
      %v157 = vadd.f32 %v155, %v156
      %v158 = vrot.slane %v157, 2
      %v159 = vadd.f32 %v157, %v158
      %v160 = vrot.slane %v159, 1
      %v161 = vadd.f32 %v159, %v160
      %v162 = vsel %vm147, %v143, -inf
      %v163 = vrot.slane %v162, 4
      %v164 = vmax.f32 %v162, %v163
      %v165 = vrot.slane %v164, 2
      %v166 = vmax.f32 %v164, %v165
      %v167 = vrot.slane %v166, 1
      %v168 = vmax.f32 %v166, %v167
      %v169 = vsel %vm147, %v145, -inf
      %v170 = vrot.slane %v169, 4
      %v171 = vmax.f32 %v169, %v170
      %v172 = vrot.slane %v171, 2
      %v173 = vmax.f32 %v171, %v172
      %v174 = vrot.slane %v173, 1
      %v175 = vmax.f32 %v173, %v174
      %p176 = scmp.eq.s32.totalorder %s17, 0
      // Predicated region
      $region25: #{spatial_attention_pallas.3} parent=23 // pred_check
        %p177 = pneg %p176
      $region26: #{spatial_attention_pallas.3} parent=23 // pred_check_branch
        %179 = sbr.rel (%p177) target = $region28
      $region27: #{spatial_attention_pallas.3} parent=23 // pred_region
        %v182 = vcombine.low %v154, %v161
        %v184 = vunpack.c.l.s4 1966171168
        %v185 = vunpack.c.0.s8 %v184
        %v186 = vlaneseq
        %v187 = vshrl.u32 %v186, 7
        %v188 = vsub.s32 %v185, %v187
        %v189 = vrot.slane %v182, %v188
        %v191 = vunpack.c.l.s4 1966171168
        %v192 = vunpack.c.0.s8 %v191
        %v193 = vlaneseq
        %v194 = vshrl.u32 %v193, 7
        %v195 = vsub.s32 %v192, %v194
        %v196 = vrot.slane %v189, %v195
        %v198 = vlaneseq
        %vm199 = vcmp.ge.s32.totalorder %v198, 0
        %vm200 = vcmp.lt.s32.totalorder %v198, 256
        %vm201 = vmand %vm199, %vm200
        %202 = vst.msk [vmem:[%s142] ss:$2 sm:$0x3] %vm201, %v196
        %v205 = vcombine.low %v168, %v175
        %v207 = vunpack.c.l.s4 1966171168
        %v208 = vunpack.c.0.s8 %v207
        %v209 = vlaneseq
        %v210 = vshrl.u32 %v209, 7
        %v211 = vsub.s32 %v208, %v210
        %v212 = vrot.slane %v205, %v211
        %v214 = vunpack.c.l.s4 1966171168
        %v215 = vunpack.c.0.s8 %v214
        %v216 = vlaneseq
        %v217 = vshrl.u32 %v216, 7
        %v218 = vsub.s32 %v215, %v217
        %v219 = vrot.slane %v212, %v218
        %s221 = scalar_lea.vmem %s142, 1
        %222 = vst.msk [vmem:[%s221] ss:$2 sm:$0x3] %vm201, %v219
      $region28: #{spatial_attention_pallas.3} parent=23 // pred_fallthru
        _
      %p223 = scmp.gt.s32.totalorder %s17, 0
      // Predicated region
      $region29: #{spatial_attention_pallas.3} parent=23 // pred_check
        %p224 = pneg %p223
      $region30: #{spatial_attention_pallas.3} parent=23 // pred_check_branch
        %226 = sbr.rel (%p224) target = $region32
      $region31: #{spatial_attention_pallas.3} parent=23 // pred_region
        %v227 = vld [vmem:[%s142] ss:$2 sm:$0x3]
        %v230 = vcombine.low %v154, %v161
        %v232 = vunpack.c.l.s4 1966171168
        %v233 = vunpack.c.0.s8 %v232
        %v234 = vlaneseq
        %v235 = vshrl.u32 %v234, 7
        %v236 = vsub.s32 %v233, %v235
        %v237 = vrot.slane %v230, %v236
        %v239 = vunpack.c.l.s4 1966171168
        %v240 = vunpack.c.0.s8 %v239
        %v241 = vlaneseq
        %v242 = vshrl.u32 %v241, 7
        %v243 = vsub.s32 %v240, %v242
        %v244 = vrot.slane %v237, %v243
        %v246 = vadd.f32 %v227, %v244
        %v247 = vlaneseq
        %vm248 = vcmp.ge.s32.totalorder %v247, 0
        %vm249 = vcmp.lt.s32.totalorder %v247, 256
        %vm250 = vmand %vm248, %vm249
        %251 = vst.msk [vmem:[%s142] ss:$2 sm:$0x3] %vm250, %v246
        %s252 = scalar_lea.vmem %s142, 1
        %v253 = vld [vmem:[%s252] ss:$2 sm:$0x3]
        %v256 = vcombine.low %v168, %v175
        %v258 = vunpack.c.l.s4 1966171168
        %v259 = vunpack.c.0.s8 %v258
        %v260 = vlaneseq
        %v261 = vshrl.u32 %v260, 7
        %v262 = vsub.s32 %v259, %v261
        %v263 = vrot.slane %v256, %v262
        %v265 = vunpack.c.l.s4 1966171168
        %v266 = vunpack.c.0.s8 %v265
        %v267 = vlaneseq
        %v268 = vshrl.u32 %v267, 7
        %v269 = vsub.s32 %v266, %v268
        %v270 = vrot.slane %v263, %v269
        %v272 = vmax.f32 %v253, %v270
        %273 = vst.msk [vmem:[%s252] ss:$2 sm:$0x3] %vm250, %v272
      $region32: #{spatial_attention_pallas.3} parent=23 // pred_fallthru
        _
      // Predicated region
      $region33: #{spatial_attention_pallas.3} parent=23 // pred_check
        %p274 = pneg %p176
      $region34: #{spatial_attention_pallas.3} parent=23 // pred_check_branch
        %276 = sbr.rel (%p274) target = $region36
      $region35: #{spatial_attention_pallas.3} parent=23 // pred_region
        %v277 = vld [vmem:[%s142] ss:$2 sm:$0x3]
        %v278 = vmul.f32 %v277, 0.25
        %v279 = vlaneseq
        %vm280 = vcmp.ge.s32.totalorder %v279, 0
        %vm281 = vcmp.lt.s32.totalorder %v279, 256
        %vm282 = vmand %vm280, %vm281
        %283 = vst.msk [vmem:[%s142] ss:$2 sm:$0x3] %vm282, %v278
      $region36: #{spatial_attention_pallas.3} parent=23 // pred_fallthru
        _
      %p284 = scmp.lt.s32.totalorder %s16, 1
      %s285 = scalar_select %p284, %s16, 1
      %s286 = smul.addr %s285, 2
      %s287 = smul.addr %s286, 2
      %s288 = scalar_lea.vmem %s1, %s287
      // Predicated region
      $region37: #{spatial_attention_pallas.3} parent=23 // pred_check
        %p289 = pneg %p70
      $region38: #{spatial_attention_pallas.3} parent=23 // pred_check_branch
        %291 = sbr.rel (%p289) target = $region40
      $region39: #{spatial_attention_pallas.3} parent=23 // pred_region
        _
      $region40: #{spatial_attention_pallas.3} parent=23 // pred_fallthru
        _
    $region24: #{spatial_attention_pallas.3} parent=5 // pred_fallthru
      _
    %p292 = scmp.le.s32.totalorder 2, %s7
    // Predicated region
    $region41: #{spatial_attention_pallas.3} parent=5 // pred_check
      %p293 = pneg %p292
    $region42: #{spatial_attention_pallas.3} parent=5 // pred_check_branch
      %295 = sbr.rel (%p293) target = $region44
    $region43: #{spatial_attention_pallas.3} parent=5 // pred_region
      %s296 = ssub.s32 %s7, 2
      // Predicated region
      $region45: #{spatial_attention_pallas.3} parent=43 // pred_check
        %p297 = pneg %p76
      $region46: #{spatial_attention_pallas.3} parent=43 // pred_check_branch
        %299 = sbr.rel (%p297) target = $region48
      $region47: #{spatial_attention_pallas.3} parent=43 // pred_region
        %p300 = scmp.lt.s32.totalorder %s18, 1
        %s301 = scalar_select %p300, %s18, 1
        %s302 = smul.addr %s301, 2
        %s303 = smul.addr %s302, 2
        %s304 = scalar_lea.vmem %s1, %s303
      $region48: #{spatial_attention_pallas.3} parent=43 // pred_fallthru
        _
    $region44: #{spatial_attention_pallas.3} parent=5 // pred_fallthru
      _
  $region6: #{spatial_attention_pallas.3} parent=0 // loop_footer
    %s11 = sadd.s32 1, %s7
  $region7: #{spatial_attention_pallas.3} parent=0 // loop_footer_branch
    %6 = sbr.rel target = $region3
  $region8: #{spatial_attention_pallas.3} parent=0 // loop_exit
    _

// kernel: spatial_attention_pallas.4
$region0: #{spatial_attention_pallas.4}
  #allocation0 [shape = 'u32[]', space=smem, size = 0x4, offset = 0x4, fixed_abs, tag = 'smem constant byte address 0x4 - core index']
  #allocation1 [shape = 'u32[144,128]{1,0:T(1,128)}', space=vmem, size = 0x12000, scoped, tag = 'internal scratch']
  #allocation2 [shape = 'f32[2,22,22]{2,1,0:T(8,128)}', space=vmem, size = 0x6000, scoped, tag = 'scratch operand']
  %s0 = inlined_call_operand.vmem [shape: f32[2,2,16,16], index: 0, kind: input, shape index: {}]
  %s1 = inlined_call_operand.vmem [shape: f32[98], index: 1, kind: input, shape index: {}]
  %s2 = inlined_call_operand.vmem [shape: f32[2,16,16], index: 2, kind: output, shape index: {}]
  %s3 = sld [smem:[#allocation0]]
  $region49: #{spatial_attention_pallas.4} parent=0
    _
  %s5 = ssub.s32 1, %s3
  %s6 = scalar_select 0, %s5, %s3
  $region1: #{spatial_attention_pallas.4} parent=0
    #allocation3 [shape = 'u8[512]{0}', space=smem, size = 0x200, scoped, tag = 'input window, operand 1, single buffered']
    #allocation4 [shape = 's32[2]{0}', space=sflag, size = 0x8, scoped, tag = 'scoped memory for spatial_attention_pallas.4']
    %7 = vsyncpa [#allocation4], 0
    loop: start=0, step=1, limit=4
    $region2: #{spatial_attention_pallas.4} parent=1 // loop_pre_header
      _
    $region3: #{spatial_attention_pallas.4} parent=1 // loop_header
      %s9 = sphi 0, %s13
      %p10 = scmp.ge.s32.totalorder %s9, 4
      %s19 = sphi 0, %s21
      %s22 = sphi 0, %s19
      %s23 = sphi 0, %s22
      %s39 = sphi 0, %s23
      %s43 = sphi 0, %s43
      %s45 = sphi 0, %s43
      %s46 = sphi 0, %s45
      %s60 = sphi 0, %s46
      %s66 = sphi 0, %s68
      %s69 = sphi 0, %s66
      %s70 = sphi 0, %s69
      %s86 = sphi 0, %s70
    $region4: #{spatial_attention_pallas.4} parent=1 // loop_header_branch
      %12 = sbr.rel (%p10) target = $region8
    $region5: #{spatial_attention_pallas.4} parent=1 // loop_body
      %s14 = ssub.s32 %s9, 1
      %s15 = ssub.s32 %s9, 2
      %s16 = sadd.s32 %s9, 1
      %s17 = ssub.s32 %s9, %s16
      %p18 = scmp.eq.s32.totalorder %s17, 0
      %s20 = sadd.s32 %s19, 1
      %s21 = scalar_select %p18, %s19, %s20
      %p24 = pneg %p18
      %p25 = scmp.eq.s32.totalorder %s9, 1
      %p26 = por %p24, %p25
      %p27 = scmp.ne.s32.totalorder %s19, %s22
      %p28 = scmp.eq.s32.totalorder %s9, 0
      %p29 = por %p27, %p28
      %p30 = scmp.ne.s32.totalorder %s19, %s22
      %p31 = scmp.eq.s32.totalorder %s14, 1
      %p32 = por %p30, %p31
      %p33 = scmp.ne.s32.totalorder %s22, %s23
      %p34 = scmp.eq.s32.totalorder %s14, 0
      %p35 = por %p33, %p34
      %p36 = scmp.ne.s32.totalorder %s22, %s23
      %p37 = scmp.eq.s32.totalorder %s15, 1
      %p38 = por %p36, %p37
      %p40 = scmp.ne.s32.totalorder %s23, %s39
      %p41 = scmp.eq.s32.totalorder %s15, 0
      %p42 = por %p40, %p41
      %s44 = sadd.s32 %s43, 1
      %p47 = scmp.eq.s32.totalorder %s9, 1
      %p48 = scmp.ne.s32.totalorder %s43, %s45
      %p49 = scmp.eq.s32.totalorder %s9, 0
      %p50 = por %p48, %p49
      %p51 = scmp.ne.s32.totalorder %s43, %s45
      %p52 = scmp.eq.s32.totalorder %s14, 1
      %p53 = por %p51, %p52
      %p54 = scmp.ne.s32.totalorder %s45, %s46
      %p55 = scmp.eq.s32.totalorder %s14, 0
      %p56 = por %p54, %p55
      %p57 = scmp.ne.s32.totalorder %s45, %s46
      %p58 = scmp.eq.s32.totalorder %s15, 1
      %p59 = por %p57, %p58
      %p61 = scmp.ne.s32.totalorder %s46, %s60
      %p62 = scmp.eq.s32.totalorder %s15, 0
      %p63 = por %p61, %p62
      %s64 = ssub.s32 %s9, %s16
      %p65 = scmp.eq.s32.totalorder %s64, 0
      %s67 = sadd.s32 %s66, 1
      %s68 = scalar_select %p65, %s66, %s67
      %p71 = pneg %p65
      %p72 = scmp.eq.s32.totalorder %s9, 1
      %p73 = por %p71, %p72
      %p74 = scmp.ne.s32.totalorder %s66, %s69
      %p75 = scmp.eq.s32.totalorder %s9, 0
      %p76 = por %p74, %p75
      %p77 = scmp.ne.s32.totalorder %s66, %s69
      %p78 = scmp.eq.s32.totalorder %s14, 1
      %p79 = por %p77, %p78
      %p80 = scmp.ne.s32.totalorder %s69, %s70
      %p81 = scmp.eq.s32.totalorder %s14, 0
      %p82 = por %p80, %p81
      %p83 = scmp.ne.s32.totalorder %s69, %s70
      %p84 = scmp.eq.s32.totalorder %s15, 1
      %p85 = por %p83, %p84
      %p87 = scmp.ne.s32.totalorder %s70, %s86
      %p88 = scmp.eq.s32.totalorder %s15, 0
      %p89 = por %p87, %p88
      %p90 = scmp.le.s32.totalorder 1, %s9
      %p91 = scmp.lt.s32.totalorder %s9, 3
      %p92 = pnand %p90, %p91
      %p93 = pneg %p92
      // Predicated region
      $region9: #{spatial_attention_pallas.4} parent=5 // pred_check
        _
      $region10: #{spatial_attention_pallas.4} parent=5 // pred_check_branch
        %95 = sbr.rel (%p92) target = $region12
      $region11: #{spatial_attention_pallas.4} parent=5 // pred_region
        %s96 = ssub.s32 %s9, 1
        // Predicated region
        $region13: #{spatial_attention_pallas.4} parent=11 // pred_check
          %p97 = pneg %p56
        $region14: #{spatial_attention_pallas.4} parent=11 // pred_check_branch
          %99 = sbr.rel (%p97) target = $region16
        $region15: #{spatial_attention_pallas.4} parent=11 // pred_region
          %s101 = ssub.s32 16, 16
          %102 = vsyncadd [#allocation4], %s101
          %s104 = sshll.u32 %s1, 4
          %s105 = int_to_ptr.vmem [resolvable:$true] %s104
          %107 = dma.vmem_to_smem %s105, 16, [#allocation3], [#allocation4]
        $region16: #{spatial_attention_pallas.4} parent=11 // pred_fallthru
          _
      $region12: #{spatial_attention_pallas.4} parent=5 // pred_fallthru
        _
      %p108 = scmp.lt.s32.totalorder %s9, 2
      // Predicated region
      $region17: #{spatial_attention_pallas.4} parent=5 // pred_check
        %p109 = pneg %p108
      $region18: #{spatial_attention_pallas.4} parent=5 // pred_check_branch
        %111 = sbr.rel (%p109) target = $region20
      $region19: #{spatial_attention_pallas.4} parent=5 // pred_region
        // Predicated region
        $region21: #{spatial_attention_pallas.4} parent=19 // pred_check
          %p112 = pneg %p29
        $region22: #{spatial_attention_pallas.4} parent=19 // pred_check_branch
          %114 = sbr.rel (%p112) target = $region24
        $region23: #{spatial_attention_pallas.4} parent=19 // pred_region
          %p115 = scmp.lt.s32.totalorder %s9, 1
          %s116 = scalar_select %p115, %s9, 1
          %s117 = smul.addr %s116, 4
          %s118 = smul.addr %s117, 8
          %s119 = scalar_lea.vmem %s0, %s118
        $region24: #{spatial_attention_pallas.4} parent=19 // pred_fallthru
          _
      $region20: #{spatial_attention_pallas.4} parent=5 // pred_fallthru
        _
      %p120 = scmp.le.s32.totalorder 1, %s9
      %p121 = scmp.lt.s32.totalorder %s9, 3
      %p122 = pnand %p120, %p121
      %p123 = pneg %p122
      // Predicated region
      $region25: #{spatial_attention_pallas.4} parent=5 // pred_check
        _
      $region26: #{spatial_attention_pallas.4} parent=5 // pred_check_branch
        %125 = sbr.rel (%p122) target = $region28
      $region27: #{spatial_attention_pallas.4} parent=5 // pred_region
        %s126 = ssub.s32 %s9, 1
        // Predicated region
        $region29: #{spatial_attention_pallas.4} parent=27 // pred_check
          %p127 = pneg %p56
        $region30: #{spatial_attention_pallas.4} parent=27 // pred_check_branch
          %129 = sbr.rel (%p127) target = $region32
        $region31: #{spatial_attention_pallas.4} parent=27 // pred_region
          %130 = dma.done [#allocation4], 16
        $region32: #{spatial_attention_pallas.4} parent=27 // pred_fallthru
          _
        %131 = sfence
        %p132 = scmp.lt.s32.totalorder %s14, 1
        %s133 = scalar_select %p132, %s14, 1
        %s134 = smul.addr %s133, 4
        %s135 = smul.addr %s134, 8
        %s136 = scalar_lea.vmem %s0, %s135
        %p137 = pneg %p35
        %p138 = pneg %p32
        %p139 = pneg %p56
        %p140 = pneg %p53
        %p141 = pneg %p82
        %p142 = pneg %p79
        %p143 = scmp.lt.s32.totalorder %s14, 1
        %s144 = scalar_select %p143, %s14, 1
        %s145 = smul.addr %s144, 2
        %s146 = smul.addr %s145, 8
        %s147 = scalar_lea.vmem %s2, %s146
        %p148 = scmp.lt.s32.totalorder %s14, 1
        %s149 = scalar_select %p148, %s14, 1
        %s150 = smul.addr %s149, 4
        %s151 = smul.addr %s150, 8
        %s152 = scalar_lea.vmem %s0, %s151
        %p153 = scmp.lt.s32.totalorder %s14, 1
        %s154 = scalar_select %p153, %s14, 1
        %s155 = smul.addr %s154, 2
        %s156 = smul.addr %s155, 8
        %s157 = scalar_lea.vmem %s2, %s156
        %p158 = scmp.eq.s32.totalorder %s14, 0
        // Predicated region
        $region33: #{spatial_attention_pallas.4} parent=27 // pred_check
          %p159 = pneg %p158
        $region34: #{spatial_attention_pallas.4} parent=27 // pred_check_branch
          %161 = sbr.rel (%p159) target = $region36
        $region35: #{spatial_attention_pallas.4} parent=27 // pred_region
          %vm162 = vcmask 179200
          %163 = vst.msk [vmem:[#allocation2] sm:$0xff] %vm162, 0.0
          %164 = vst.msk [vmem:[#allocation2 + $0x8] sm:$0xff] %vm162, 0.0
          %vm165 = vcmask 177152
          %166 = vst.msk [vmem:[#allocation2 + $0x10] sm:$0x3f] %vm165, 0.0
          %167 = vst.msk [vmem:[#allocation2 + $0x18] sm:$0xff] %vm162, 0.0
          %168 = vst.msk [vmem:[#allocation2 + $0x20] sm:$0xff] %vm162, 0.0
          %169 = vst.msk [vmem:[#allocation2 + $0x28] sm:$0x3f] %vm165, 0.0
        $region36: #{spatial_attention_pallas.4} parent=27 // pred_fallthru
          _
        %v170 = vld [vmem:[%s152] sm:$0xff]
        %v171 = vld [vmem:[%s152 + $0x8] sm:$0xff]
        %174 = vrot.lane.b32.xlu0 %v170, 3
        %v175 = vpop.permute.xlu0 %174
        %176 = vrot.lane.b32.xlu0 %v171, 3
        %v177 = vpop.permute.xlu0 %176
        %vm180 = vcmask 154648
        %181 = vst.msk [vmem:[#allocation2 + $0x3] sm:$0xff] %vm180, %v175
        %182 = vst.msk [vmem:[#allocation2 + $0xb] sm:$0xff] %vm180, %v177
        %s183 = scalar_lea.vmem %s152, 16
        %v184 = vld [vmem:[%s183] sm:$0xff]
        %v185 = vld [vmem:[%s183 + $0x8] sm:$0xff]
        %188 = vrot.lane.b32.xlu0 %v184, 3
        %v189 = vpop.permute.xlu0 %188
        %190 = vrot.lane.b32.xlu0 %v185, 3
        %v191 = vpop.permute.xlu0 %190
        %s194 = scalar_lea.vmem [#allocation2], 24
        %195 = vst.msk [vmem:[%s194 + $0x3] sm:$0xff] %vm180, %v189
        %196 = vst.msk [vmem:[%s194 + $0xb] sm:$0xff] %vm180, %v191
        %s197 = sld [smem:[#allocation3]]
        %v198 = vld [vmem:[#allocation2] sm:$0xff]
        %v199 = vld [vmem:[#allocation2 + $0x8] sm:$0xff]
        %v200 = vstv %s197
        %v201 = vmul.f32 %v200, %v198
        %v202 = vmul.f32 %v200, %v199
        %v203 = vadd.f32 %v201, 0.0
        %v204 = vadd.f32 %v202, 0.0
        %s205 = sld [smem:[#allocation3 + $0x1]]
        %v206 = vstv %s205
        %v207 = vmul.f32 %v206, %v198
        %v208 = vmul.f32 %v206, %v199
        %211 = vrot.lane.b32.xlu0 %v207, 127
        %v212 = vpop.permute.xlu0 %211
        %213 = vrot.lane.b32.xlu0 %v208, 127
        %v214 = vpop.permute.xlu0 %213
        %v217 = vadd.f32 %v203, %v212
        %v218 = vadd.f32 %v204, %v214
        %s219 = sld [smem:[#allocation3 + $0x2]]
        %v220 = vstv %s219
        %v221 = vmul.f32 %v220, %v198
        %v222 = vmul.f32 %v220, %v199
        %225 = vrot.lane.b32.xlu0 %v221, 126
        %v226 = vpop.permute.xlu0 %225
        %227 = vrot.lane.b32.xlu0 %v222, 126
        %v228 = vpop.permute.xlu0 %227
        %v231 = vadd.f32 %v217, %v226
        %v232 = vadd.f32 %v218, %v228
        %s233 = sld [smem:[#allocation3 + $0x3]]
        %v234 = vstv %s233
        %v235 = vmul.f32 %v234, %v198
        %v236 = vmul.f32 %v234, %v199
        %239 = vrot.lane.b32.xlu0 %v235, 125
        %v240 = vpop.permute.xlu0 %239
        %241 = vrot.lane.b32.xlu0 %v236, 125
        %v242 = vpop.permute.xlu0 %241
        %v245 = vadd.f32 %v231, %v240
        %v246 = vadd.f32 %v232, %v242
        %s247 = sld [smem:[#allocation3 + $0x4]]
        %v248 = vstv %s247
        %v249 = vmul.f32 %v248, %v198
        %v250 = vmul.f32 %v248, %v199
        %253 = vrot.lane.b32.xlu0 %v249, 124
        %v254 = vpop.permute.xlu0 %253
        %255 = vrot.lane.b32.xlu0 %v250, 124
        %v256 = vpop.permute.xlu0 %255
        %v259 = vadd.f32 %v245, %v254
        %v260 = vadd.f32 %v246, %v256
        %s261 = sld [smem:[#allocation3 + $0x5]]
        %v262 = vstv %s261
        %v263 = vmul.f32 %v262, %v198
        %v264 = vmul.f32 %v262, %v199
        %267 = vrot.lane.b32.xlu0 %v263, 123
        %v268 = vpop.permute.xlu0 %267
        %269 = vrot.lane.b32.xlu0 %v264, 123
        %v270 = vpop.permute.xlu0 %269
        %v273 = vadd.f32 %v259, %v268
        %v274 = vadd.f32 %v260, %v270
        %s275 = sld [smem:[#allocation3 + $0x6]]
        %v276 = vstv %s275
        %v277 = vmul.f32 %v276, %v198
        %v278 = vmul.f32 %v276, %v199
        %281 = vrot.lane.b32.xlu0 %v277, 122
        %v282 = vpop.permute.xlu0 %281
        %283 = vrot.lane.b32.xlu0 %v278, 122
        %v284 = vpop.permute.xlu0 %283
        %v287 = vadd.f32 %v273, %v282
        %v288 = vadd.f32 %v274, %v284
        %s289 = sld [smem:[#allocation3 + $0x7]]
        %v290 = vld [vmem:[#allocation2 + $0x1] sm:$0xff]
        %v291 = vld [vmem:[#allocation2 + $0x9] sm:$0xff]
        %v292 = vstv %s289
        %v293 = vmul.f32 %v292, %v290
        %v294 = vmul.f32 %v292, %v291
        %v295 = vadd.f32 %v287, %v293
        %v296 = vadd.f32 %v288, %v294
        %s297 = sld [smem:[#allocation3 + $0x8]]
        %v298 = vstv %s297
        %v299 = vmul.f32 %v298, %v290
        %v300 = vmul.f32 %v298, %v291
        %303 = vrot.lane.b32.xlu0 %v299, 127
        %v304 = vpop.permute.xlu0 %303
        %305 = vrot.lane.b32.xlu0 %v300, 127
        %v306 = vpop.permute.xlu0 %305
        %v309 = vadd.f32 %v295, %v304
        %v310 = vadd.f32 %v296, %v306
        %s311 = sld [smem:[#allocation3 + $0x9]]
        %v312 = vstv %s311
        %v313 = vmul.f32 %v312, %v290
        %v314 = vmul.f32 %v312, %v291
        %317 = vrot.lane.b32.xlu0 %v313, 126
        %v318 = vpop.permute.xlu0 %317
        %319 = vrot.lane.b32.xlu0 %v314, 126
        %v320 = vpop.permute.xlu0 %319
        %v323 = vadd.f32 %v309, %v318
        %v324 = vadd.f32 %v310, %v320
        %s325 = sld [smem:[#allocation3 + $0xa]]
        %v326 = vstv %s325
        %v327 = vmul.f32 %v326, %v290
        %v328 = vmul.f32 %v326, %v291
        %331 = vrot.lane.b32.xlu0 %v327, 125
        %v332 = vpop.permute.xlu0 %331
        %333 = vrot.lane.b32.xlu0 %v328, 125
        %v334 = vpop.permute.xlu0 %333
        %v337 = vadd.f32 %v323, %v332
        %v338 = vadd.f32 %v324, %v334
        %s339 = sld [smem:[#allocation3 + $0xb]]
        %v340 = vstv %s339
        %v341 = vmul.f32 %v340, %v290
        %v342 = vmul.f32 %v340, %v291
        %345 = vrot.lane.b32.xlu0 %v341, 124
        %v346 = vpop.permute.xlu0 %345
        %347 = vrot.lane.b32.xlu0 %v342, 124
        %v348 = vpop.permute.xlu0 %347
        %v351 = vadd.f32 %v337, %v346
        %v352 = vadd.f32 %v338, %v348
        %s353 = sld [smem:[#allocation3 + $0xc]]
        %v354 = vstv %s353
        %v355 = vmul.f32 %v354, %v290
        %v356 = vmul.f32 %v354, %v291
        %359 = vrot.lane.b32.xlu0 %v355, 123
        %v360 = vpop.permute.xlu0 %359
        %361 = vrot.lane.b32.xlu0 %v356, 123
        %v362 = vpop.permute.xlu0 %361
        %v365 = vadd.f32 %v351, %v360
        %v366 = vadd.f32 %v352, %v362
        %s367 = sld [smem:[#allocation3 + $0xd]]
        %v368 = vstv %s367
        %v369 = vmul.f32 %v368, %v290
        %v370 = vmul.f32 %v368, %v291
        %373 = vrot.lane.b32.xlu0 %v369, 122
        %v374 = vpop.permute.xlu0 %373
        %375 = vrot.lane.b32.xlu0 %v370, 122
        %v376 = vpop.permute.xlu0 %375
        %v379 = vadd.f32 %v365, %v374
        %v380 = vadd.f32 %v366, %v376
        %s381 = sld [smem:[#allocation3 + $0xe]]
        %v382 = vld [vmem:[#allocation2 + $0x2] sm:$0xff]
        %v383 = vld [vmem:[#allocation2 + $0xa] sm:$0xff]
        %v384 = vstv %s381
        %v385 = vmul.f32 %v384, %v382
        %v386 = vmul.f32 %v384, %v383
        %v387 = vadd.f32 %v379, %v385
        %v388 = vadd.f32 %v380, %v386
        %s389 = sld [smem:[#allocation3 + $0xf]]
        %v390 = vstv %s389
        %v391 = vmul.f32 %v390, %v382
        %v392 = vmul.f32 %v390, %v383
        %395 = vrot.lane.b32.xlu0 %v391, 127
        %v396 = vpop.permute.xlu0 %395
        %397 = vrot.lane.b32.xlu0 %v392, 127
        %v398 = vpop.permute.xlu0 %397
        %v401 = vadd.f32 %v387, %v396
        %v402 = vadd.f32 %v388, %v398
        %s403 = sld [smem:[#allocation3 + $0x10]]
        %v404 = vstv %s403
        %v405 = vmul.f32 %v404, %v382
        %v406 = vmul.f32 %v404, %v383
        %409 = vrot.lane.b32.xlu0 %v405, 126
        %v410 = vpop.permute.xlu0 %409
        %411 = vrot.lane.b32.xlu0 %v406, 126
        %v412 = vpop.permute.xlu0 %411
        %v415 = vadd.f32 %v401, %v410
        %v416 = vadd.f32 %v402, %v412
        %s417 = sld [smem:[#allocation3 + $0x11]]
        %v418 = vstv %s417
        %v419 = vmul.f32 %v418, %v382
        %v420 = vmul.f32 %v418, %v383
        %423 = vrot.lane.b32.xlu0 %v419, 125
        %v424 = vpop.permute.xlu0 %423
        %425 = vrot.lane.b32.xlu0 %v420, 125
        %v426 = vpop.permute.xlu0 %425
        %v429 = vadd.f32 %v415, %v424
        %v430 = vadd.f32 %v416, %v426
        %s431 = sld [smem:[#allocation3 + $0x12]]
        %v432 = vstv %s431
        %v433 = vmul.f32 %v432, %v382
        %v434 = vmul.f32 %v432, %v383
        %437 = vrot.lane.b32.xlu0 %v433, 124
        %v438 = vpop.permute.xlu0 %437
        %439 = vrot.lane.b32.xlu0 %v434, 124
        %v440 = vpop.permute.xlu0 %439
        %v443 = vadd.f32 %v429, %v438
        %v444 = vadd.f32 %v430, %v440
        %s445 = sld [smem:[#allocation3 + $0x13]]
        %v446 = vstv %s445
        %v447 = vmul.f32 %v446, %v382
        %v448 = vmul.f32 %v446, %v383
        %451 = vrot.lane.b32.xlu0 %v447, 123
        %v452 = vpop.permute.xlu0 %451
        %453 = vrot.lane.b32.xlu0 %v448, 123
        %v454 = vpop.permute.xlu0 %453
        %v457 = vadd.f32 %v443, %v452
        %v458 = vadd.f32 %v444, %v454
        %s459 = sld [smem:[#allocation3 + $0x14]]
        %v460 = vstv %s459
        %v461 = vmul.f32 %v460, %v382
        %v462 = vmul.f32 %v460, %v383
        %465 = vrot.lane.b32.xlu0 %v461, 122
        %v466 = vpop.permute.xlu0 %465
        %467 = vrot.lane.b32.xlu0 %v462, 122
        %v468 = vpop.permute.xlu0 %467
        %v471 = vadd.f32 %v457, %v466
        %v472 = vadd.f32 %v458, %v468
        %s473 = sld [smem:[#allocation3 + $0x15]]
        %v474 = vld [vmem:[#allocation2 + $0x3] sm:$0xff]
        %v475 = vld [vmem:[#allocation2 + $0xb] sm:$0xff]
        %v476 = vstv %s473
        %v477 = vmul.f32 %v476, %v474
        %v478 = vmul.f32 %v476, %v475
        %v479 = vadd.f32 %v471, %v477
        %v480 = vadd.f32 %v472, %v478
        %s481 = sld [smem:[#allocation3 + $0x16]]
        %v482 = vstv %s481
        %v483 = vmul.f32 %v482, %v474
        %v484 = vmul.f32 %v482, %v475
        %487 = vrot.lane.b32.xlu0 %v483, 127
        %v488 = vpop.permute.xlu0 %487
        %489 = vrot.lane.b32.xlu0 %v484, 127
        %v490 = vpop.permute.xlu0 %489
        %v493 = vadd.f32 %v479, %v488
        %v494 = vadd.f32 %v480, %v490
        %s495 = sld [smem:[#allocation3 + $0x17]]
        %v496 = vstv %s495
        %v497 = vmul.f32 %v496, %v474
        %v498 = vmul.f32 %v496, %v475
        %501 = vrot.lane.b32.xlu0 %v497, 126
        %v502 = vpop.permute.xlu0 %501
        %503 = vrot.lane.b32.xlu0 %v498, 126
        %v504 = vpop.permute.xlu0 %503
        %v507 = vadd.f32 %v493, %v502
        %v508 = vadd.f32 %v494, %v504
        %s509 = sld [smem:[#allocation3 + $0x18]]
        %v510 = vstv %s509
        %v511 = vmul.f32 %v510, %v474
        %v512 = vmul.f32 %v510, %v475
        %515 = vrot.lane.b32.xlu0 %v511, 125
        %v516 = vpop.permute.xlu0 %515
        %517 = vrot.lane.b32.xlu0 %v512, 125
        %v518 = vpop.permute.xlu0 %517
        %v521 = vadd.f32 %v507, %v516
        %v522 = vadd.f32 %v508, %v518
        %s523 = sld [smem:[#allocation3 + $0x19]]
        %v524 = vstv %s523
        %v525 = vmul.f32 %v524, %v474
        %v526 = vmul.f32 %v524, %v475
        %529 = vrot.lane.b32.xlu0 %v525, 124
        %v530 = vpop.permute.xlu0 %529
        %531 = vrot.lane.b32.xlu0 %v526, 124
        %v532 = vpop.permute.xlu0 %531
        %v535 = vadd.f32 %v521, %v530
        %v536 = vadd.f32 %v522, %v532
        %s537 = sld [smem:[#allocation3 + $0x1a]]
        %v538 = vstv %s537
        %v539 = vmul.f32 %v538, %v474
        %v540 = vmul.f32 %v538, %v475
        %543 = vrot.lane.b32.xlu0 %v539, 123
        %v544 = vpop.permute.xlu0 %543
        %545 = vrot.lane.b32.xlu0 %v540, 123
        %v546 = vpop.permute.xlu0 %545
        %v549 = vadd.f32 %v535, %v544
        %v550 = vadd.f32 %v536, %v546
        %s551 = sld [smem:[#allocation3 + $0x1b]]
        %v552 = vstv %s551
        %v553 = vmul.f32 %v552, %v474
        %v554 = vmul.f32 %v552, %v475
        %557 = vrot.lane.b32.xlu0 %v553, 122
        %v558 = vpop.permute.xlu0 %557
        %559 = vrot.lane.b32.xlu0 %v554, 122
        %v560 = vpop.permute.xlu0 %559
        %v563 = vadd.f32 %v549, %v558
        %v564 = vadd.f32 %v550, %v560
        %s565 = sld [smem:[#allocation3 + $0x1c]]
        %v566 = vld [vmem:[#allocation2 + $0x4] sm:$0xff]
        %v567 = vld [vmem:[#allocation2 + $0xc] sm:$0xff]
        %v568 = vstv %s565
        %v569 = vmul.f32 %v568, %v566
        %v570 = vmul.f32 %v568, %v567
        %v571 = vadd.f32 %v563, %v569
        %v572 = vadd.f32 %v564, %v570
        %s573 = sld [smem:[#allocation3 + $0x1d]]
        %v574 = vstv %s573
        %v575 = vmul.f32 %v574, %v566
        %v576 = vmul.f32 %v574, %v567
        %579 = vrot.lane.b32.xlu0 %v575, 127
        %v580 = vpop.permute.xlu0 %579
        %581 = vrot.lane.b32.xlu0 %v576, 127
        %v582 = vpop.permute.xlu0 %581
        %v585 = vadd.f32 %v571, %v580
        %v586 = vadd.f32 %v572, %v582
        %s587 = sld [smem:[#allocation3 + $0x1e]]
        %v588 = vstv %s587
        %v589 = vmul.f32 %v588, %v566
        %v590 = vmul.f32 %v588, %v567
        %593 = vrot.lane.b32.xlu0 %v589, 126
        %v594 = vpop.permute.xlu0 %593
        %595 = vrot.lane.b32.xlu0 %v590, 126
        %v596 = vpop.permute.xlu0 %595
        %v599 = vadd.f32 %v585, %v594
        %v600 = vadd.f32 %v586, %v596
        %s601 = sld [smem:[#allocation3 + $0x1f]]
        %v602 = vstv %s601
        %v603 = vmul.f32 %v602, %v566
        %v604 = vmul.f32 %v602, %v567
        %607 = vrot.lane.b32.xlu0 %v603, 125
        %v608 = vpop.permute.xlu0 %607
        %609 = vrot.lane.b32.xlu0 %v604, 125
        %v610 = vpop.permute.xlu0 %609
        %v613 = vadd.f32 %v599, %v608
        %v614 = vadd.f32 %v600, %v610
        %s615 = sld [smem:[#allocation3 + $0x20]]
        %v616 = vstv %s615
        %v617 = vmul.f32 %v616, %v566
        %v618 = vmul.f32 %v616, %v567
        %621 = vrot.lane.b32.xlu0 %v617, 124
        %v622 = vpop.permute.xlu0 %621
        %623 = vrot.lane.b32.xlu0 %v618, 124
        %v624 = vpop.permute.xlu0 %623
        %v627 = vadd.f32 %v613, %v622
        %v628 = vadd.f32 %v614, %v624
        %s629 = sld [smem:[#allocation3 + $0x21]]
        %v630 = vstv %s629
        %v631 = vmul.f32 %v630, %v566
        %v632 = vmul.f32 %v630, %v567
        %635 = vrot.lane.b32.xlu0 %v631, 123
        %v636 = vpop.permute.xlu0 %635
        %637 = vrot.lane.b32.xlu0 %v632, 123
        %v638 = vpop.permute.xlu0 %637
        %v641 = vadd.f32 %v627, %v636
        %v642 = vadd.f32 %v628, %v638
        %s643 = sld [smem:[#allocation3 + $0x22]]
        %v644 = vstv %s643
        %v645 = vmul.f32 %v644, %v566
        %v646 = vmul.f32 %v644, %v567
        %649 = vrot.lane.b32.xlu0 %v645, 122
        %v650 = vpop.permute.xlu0 %649
        %651 = vrot.lane.b32.xlu0 %v646, 122
        %v652 = vpop.permute.xlu0 %651
        %v655 = vadd.f32 %v641, %v650
        %v656 = vadd.f32 %v642, %v652
        %s657 = sld [smem:[#allocation3 + $0x23]]
        %v658 = vld [vmem:[#allocation2 + $0x5] sm:$0xff]
        %v659 = vld [vmem:[#allocation2 + $0xd] sm:$0xff]
        %v660 = vstv %s657
        %v661 = vmul.f32 %v660, %v658
        %v662 = vmul.f32 %v660, %v659
        %v663 = vadd.f32 %v655, %v661
        %v664 = vadd.f32 %v656, %v662
        %s665 = sld [smem:[#allocation3 + $0x24]]
        %v666 = vstv %s665
        %v667 = vmul.f32 %v666, %v658
        %v668 = vmul.f32 %v666, %v659
        %671 = vrot.lane.b32.xlu0 %v667, 127
        %v672 = vpop.permute.xlu0 %671
        %673 = vrot.lane.b32.xlu0 %v668, 127
        %v674 = vpop.permute.xlu0 %673
        %v677 = vadd.f32 %v663, %v672
        %v678 = vadd.f32 %v664, %v674
        %s679 = sld [smem:[#allocation3 + $0x25]]
        %v680 = vstv %s679
        %v681 = vmul.f32 %v680, %v658
        %v682 = vmul.f32 %v680, %v659
        %685 = vrot.lane.b32.xlu0 %v681, 126
        %v686 = vpop.permute.xlu0 %685
        %687 = vrot.lane.b32.xlu0 %v682, 126
        %v688 = vpop.permute.xlu0 %687
        %v691 = vadd.f32 %v677, %v686
        %v692 = vadd.f32 %v678, %v688
        %s693 = sld [smem:[#allocation3 + $0x26]]
        %v694 = vstv %s693
        %v695 = vmul.f32 %v694, %v658
        %v696 = vmul.f32 %v694, %v659
        %699 = vrot.lane.b32.xlu0 %v695, 125
        %v700 = vpop.permute.xlu0 %699
        %701 = vrot.lane.b32.xlu0 %v696, 125
        %v702 = vpop.permute.xlu0 %701
        %v705 = vadd.f32 %v691, %v700
        %v706 = vadd.f32 %v692, %v702
        %s707 = sld [smem:[#allocation3 + $0x27]]
        %v708 = vstv %s707
        %v709 = vmul.f32 %v708, %v658
        %v710 = vmul.f32 %v708, %v659
        %713 = vrot.lane.b32.xlu0 %v709, 124
        %v714 = vpop.permute.xlu0 %713
        %715 = vrot.lane.b32.xlu0 %v710, 124
        %v716 = vpop.permute.xlu0 %715
        %v719 = vadd.f32 %v705, %v714
        %v720 = vadd.f32 %v706, %v716
        %s721 = sld [smem:[#allocation3 + $0x28]]
        %v722 = vstv %s721
        %v723 = vmul.f32 %v722, %v658
        %v724 = vmul.f32 %v722, %v659
        %727 = vrot.lane.b32.xlu0 %v723, 123
        %v728 = vpop.permute.xlu0 %727
        %729 = vrot.lane.b32.xlu0 %v724, 123
        %v730 = vpop.permute.xlu0 %729
        %v733 = vadd.f32 %v719, %v728
        %v734 = vadd.f32 %v720, %v730
        %s735 = sld [smem:[#allocation3 + $0x29]]
        %v736 = vstv %s735
        %v737 = vmul.f32 %v736, %v658
        %v738 = vmul.f32 %v736, %v659
        %741 = vrot.lane.b32.xlu0 %v737, 122
        %v742 = vpop.permute.xlu0 %741
        %743 = vrot.lane.b32.xlu0 %v738, 122
        %v744 = vpop.permute.xlu0 %743
        %v747 = vadd.f32 %v733, %v742
        %v748 = vadd.f32 %v734, %v744
        %s749 = sld [smem:[#allocation3 + $0x2a]]
        %v750 = vld [vmem:[#allocation2 + $0x6] sm:$0xff]
        %v751 = vld [vmem:[#allocation2 + $0xe] sm:$0xff]
        %v752 = vstv %s749
        %v753 = vmul.f32 %v752, %v750
        %v754 = vmul.f32 %v752, %v751
        %v755 = vadd.f32 %v747, %v753
        %v756 = vadd.f32 %v748, %v754
        %s757 = sld [smem:[#allocation3 + $0x2b]]
        %v758 = vstv %s757
        %v759 = vmul.f32 %v758, %v750
        %v760 = vmul.f32 %v758, %v751
        %763 = vrot.lane.b32.xlu0 %v759, 127
        %v764 = vpop.permute.xlu0 %763
        %765 = vrot.lane.b32.xlu0 %v760, 127
        %v766 = vpop.permute.xlu0 %765
        %v769 = vadd.f32 %v755, %v764
        %v770 = vadd.f32 %v756, %v766
        %s771 = sld [smem:[#allocation3 + $0x2c]]
        %v772 = vstv %s771
        %v773 = vmul.f32 %v772, %v750
        %v774 = vmul.f32 %v772, %v751
        %777 = vrot.lane.b32.xlu0 %v773, 126
        %v778 = vpop.permute.xlu0 %777
        %779 = vrot.lane.b32.xlu0 %v774, 126
        %v780 = vpop.permute.xlu0 %779
        %v783 = vadd.f32 %v769, %v778
        %v784 = vadd.f32 %v770, %v780
        %s785 = sld [smem:[#allocation3 + $0x2d]]
        %v786 = vstv %s785
        %v787 = vmul.f32 %v786, %v750
        %v788 = vmul.f32 %v786, %v751
        %791 = vrot.lane.b32.xlu0 %v787, 125
        %v792 = vpop.permute.xlu0 %791
        %793 = vrot.lane.b32.xlu0 %v788, 125
        %v794 = vpop.permute.xlu0 %793
        %v797 = vadd.f32 %v783, %v792
        %v798 = vadd.f32 %v784, %v794
        %s799 = sld [smem:[#allocation3 + $0x2e]]
        %v800 = vstv %s799
        %v801 = vmul.f32 %v800, %v750
        %v802 = vmul.f32 %v800, %v751
        %805 = vrot.lane.b32.xlu0 %v801, 124
        %v806 = vpop.permute.xlu0 %805
        %807 = vrot.lane.b32.xlu0 %v802, 124
        %v808 = vpop.permute.xlu0 %807
        %v811 = vadd.f32 %v797, %v806
        %v812 = vadd.f32 %v798, %v808
        %s813 = sld [smem:[#allocation3 + $0x2f]]
        %v814 = vstv %s813
        %v815 = vmul.f32 %v814, %v750
        %v816 = vmul.f32 %v814, %v751
        %819 = vrot.lane.b32.xlu0 %v815, 123
        %v820 = vpop.permute.xlu0 %819
        %821 = vrot.lane.b32.xlu0 %v816, 123
        %v822 = vpop.permute.xlu0 %821
        %v825 = vadd.f32 %v811, %v820
        %v826 = vadd.f32 %v812, %v822
        %s827 = sld [smem:[#allocation3 + $0x30]]
        %v828 = vstv %s827
        %v829 = vmul.f32 %v828, %v750
        %v830 = vmul.f32 %v828, %v751
        %833 = vrot.lane.b32.xlu0 %v829, 122
        %v834 = vpop.permute.xlu0 %833
        %835 = vrot.lane.b32.xlu0 %v830, 122
        %v836 = vpop.permute.xlu0 %835
        %v839 = vadd.f32 %v825, %v834
        %v840 = vadd.f32 %v826, %v836
        %s841 = sld [smem:[#allocation3 + $0x31]]
        %v842 = vld [vmem:[%s194] sm:$0xff]
        %v843 = vld [vmem:[%s194 + $0x8] sm:$0xff]
        %v844 = vstv %s841
        %v845 = vmul.f32 %v844, %v842
        %v846 = vmul.f32 %v844, %v843
        %v847 = vadd.f32 %v839, %v845
        %v848 = vadd.f32 %v840, %v846
        %s849 = sld [smem:[#allocation3 + $0x32]]
        %v850 = vstv %s849
        %v851 = vmul.f32 %v850, %v842
        %v852 = vmul.f32 %v850, %v843
        %855 = vrot.lane.b32.xlu0 %v851, 127
        %v856 = vpop.permute.xlu0 %855
        %857 = vrot.lane.b32.xlu0 %v852, 127
        %v858 = vpop.permute.xlu0 %857
        %v861 = vadd.f32 %v847, %v856
        %v862 = vadd.f32 %v848, %v858
        %s863 = sld [smem:[#allocation3 + $0x33]]
        %v864 = vstv %s863
        %v865 = vmul.f32 %v864, %v842
        %v866 = vmul.f32 %v864, %v843
        %869 = vrot.lane.b32.xlu0 %v865, 126
        %v870 = vpop.permute.xlu0 %869
        %871 = vrot.lane.b32.xlu0 %v866, 126
        %v872 = vpop.permute.xlu0 %871
        %v875 = vadd.f32 %v861, %v870
        %v876 = vadd.f32 %v862, %v872
        %s877 = sld [smem:[#allocation3 + $0x34]]
        %v878 = vstv %s877
        %v879 = vmul.f32 %v878, %v842
        %v880 = vmul.f32 %v878, %v843
        %883 = vrot.lane.b32.xlu0 %v879, 125
        %v884 = vpop.permute.xlu0 %883
        %885 = vrot.lane.b32.xlu0 %v880, 125
        %v886 = vpop.permute.xlu0 %885
        %v889 = vadd.f32 %v875, %v884
        %v890 = vadd.f32 %v876, %v886
        %s891 = sld [smem:[#allocation3 + $0x35]]
        %v892 = vstv %s891
        %v893 = vmul.f32 %v892, %v842
        %v894 = vmul.f32 %v892, %v843
        %897 = vrot.lane.b32.xlu0 %v893, 124
        %v898 = vpop.permute.xlu0 %897
        %899 = vrot.lane.b32.xlu0 %v894, 124
        %v900 = vpop.permute.xlu0 %899
        %v903 = vadd.f32 %v889, %v898
        %v904 = vadd.f32 %v890, %v900
        %s905 = sld [smem:[#allocation3 + $0x36]]
        %v906 = vstv %s905
        %v907 = vmul.f32 %v906, %v842
        %v908 = vmul.f32 %v906, %v843
        %911 = vrot.lane.b32.xlu0 %v907, 123
        %v912 = vpop.permute.xlu0 %911
        %913 = vrot.lane.b32.xlu0 %v908, 123
        %v914 = vpop.permute.xlu0 %913
        %v917 = vadd.f32 %v903, %v912
        %v918 = vadd.f32 %v904, %v914
        %s919 = sld [smem:[#allocation3 + $0x37]]
        %v920 = vstv %s919
        %v921 = vmul.f32 %v920, %v842
        %v922 = vmul.f32 %v920, %v843
        %925 = vrot.lane.b32.xlu0 %v921, 122
        %v926 = vpop.permute.xlu0 %925
        %927 = vrot.lane.b32.xlu0 %v922, 122
        %v928 = vpop.permute.xlu0 %927
        %v931 = vadd.f32 %v917, %v926
        %v932 = vadd.f32 %v918, %v928
        %s933 = sld [smem:[#allocation3 + $0x38]]
        %v934 = vld [vmem:[%s194 + $0x1] sm:$0xff]
        %v935 = vld [vmem:[%s194 + $0x9] sm:$0xff]
        %v936 = vstv %s933
        %v937 = vmul.f32 %v936, %v934
        %v938 = vmul.f32 %v936, %v935
        %v939 = vadd.f32 %v931, %v937
        %v940 = vadd.f32 %v932, %v938
        %s941 = sld [smem:[#allocation3 + $0x39]]
        %v942 = vstv %s941
        %v943 = vmul.f32 %v942, %v934
        %v944 = vmul.f32 %v942, %v935
        %947 = vrot.lane.b32.xlu0 %v943, 127
        %v948 = vpop.permute.xlu0 %947
        %949 = vrot.lane.b32.xlu0 %v944, 127
        %v950 = vpop.permute.xlu0 %949
        %v953 = vadd.f32 %v939, %v948
        %v954 = vadd.f32 %v940, %v950
        %s955 = sld [smem:[#allocation3 + $0x3a]]
        %v956 = vstv %s955
        %v957 = vmul.f32 %v956, %v934
        %v958 = vmul.f32 %v956, %v935
        %961 = vrot.lane.b32.xlu0 %v957, 126
        %v962 = vpop.permute.xlu0 %961
        %963 = vrot.lane.b32.xlu0 %v958, 126
        %v964 = vpop.permute.xlu0 %963
        %v967 = vadd.f32 %v953, %v962
        %v968 = vadd.f32 %v954, %v964
        %s969 = sld [smem:[#allocation3 + $0x3b]]
        %v970 = vstv %s969
        %v971 = vmul.f32 %v970, %v934
        %v972 = vmul.f32 %v970, %v935
        %975 = vrot.lane.b32.xlu0 %v971, 125
        %v976 = vpop.permute.xlu0 %975
        %977 = vrot.lane.b32.xlu0 %v972, 125
        %v978 = vpop.permute.xlu0 %977
        %v981 = vadd.f32 %v967, %v976
        %v982 = vadd.f32 %v968, %v978
        %s983 = sld [smem:[#allocation3 + $0x3c]]
        %v984 = vstv %s983
        %v985 = vmul.f32 %v984, %v934
        %v986 = vmul.f32 %v984, %v935
        %989 = vrot.lane.b32.xlu0 %v985, 124
        %v990 = vpop.permute.xlu0 %989
        %991 = vrot.lane.b32.xlu0 %v986, 124
        %v992 = vpop.permute.xlu0 %991
        %v995 = vadd.f32 %v981, %v990
        %v996 = vadd.f32 %v982, %v992
        %s997 = sld [smem:[#allocation3 + $0x3d]]
        %v998 = vstv %s997
        %v999 = vmul.f32 %v998, %v934
        %v1000 = vmul.f32 %v998, %v935
        %1003 = vrot.lane.b32.xlu0 %v999, 123
        %v1004 = vpop.permute.xlu0 %1003
        %1005 = vrot.lane.b32.xlu0 %v1000, 123
        %v1006 = vpop.permute.xlu0 %1005
        %v1009 = vadd.f32 %v995, %v1004
        %v1010 = vadd.f32 %v996, %v1006
        %s1011 = sld [smem:[#allocation3 + $0x3e]]
        %v1012 = vstv %s1011
        %v1013 = vmul.f32 %v1012, %v934
        %v1014 = vmul.f32 %v1012, %v935
        %1017 = vrot.lane.b32.xlu0 %v1013, 122
        %v1018 = vpop.permute.xlu0 %1017
        %1019 = vrot.lane.b32.xlu0 %v1014, 122
        %v1020 = vpop.permute.xlu0 %1019
        %v1023 = vadd.f32 %v1009, %v1018
        %v1024 = vadd.f32 %v1010, %v1020
        %s1025 = sld [smem:[#allocation3 + $0x3f]]
        %v1026 = vld [vmem:[%s194 + $0x2] sm:$0xff]
        %v1027 = vld [vmem:[%s194 + $0xa] sm:$0xff]
        %v1028 = vstv %s1025
        %v1029 = vmul.f32 %v1028, %v1026
        %v1030 = vmul.f32 %v1028, %v1027
        %v1031 = vadd.f32 %v1023, %v1029
        %v1032 = vadd.f32 %v1024, %v1030
        %s1033 = sld [smem:[#allocation3 + $0x40]]
        %v1034 = vstv %s1033
        %v1035 = vmul.f32 %v1034, %v1026
        %v1036 = vmul.f32 %v1034, %v1027
        %1039 = vrot.lane.b32.xlu0 %v1035, 127
        %v1040 = vpop.permute.xlu0 %1039
        %1041 = vrot.lane.b32.xlu0 %v1036, 127
        %v1042 = vpop.permute.xlu0 %1041
        %v1045 = vadd.f32 %v1031, %v1040
        %v1046 = vadd.f32 %v1032, %v1042
        %s1047 = sld [smem:[#allocation3 + $0x41]]
        %v1048 = vstv %s1047
        %v1049 = vmul.f32 %v1048, %v1026
        %v1050 = vmul.f32 %v1048, %v1027
        %1053 = vrot.lane.b32.xlu0 %v1049, 126
        %v1054 = vpop.permute.xlu0 %1053
        %1055 = vrot.lane.b32.xlu0 %v1050, 126
        %v1056 = vpop.permute.xlu0 %1055
        %v1059 = vadd.f32 %v1045, %v1054
        %v1060 = vadd.f32 %v1046, %v1056
        %s1061 = sld [smem:[#allocation3 + $0x42]]
        %v1062 = vstv %s1061
        %v1063 = vmul.f32 %v1062, %v1026
        %v1064 = vmul.f32 %v1062, %v1027
        %1067 = vrot.lane.b32.xlu0 %v1063, 125
        %v1068 = vpop.permute.xlu0 %1067
        %1069 = vrot.lane.b32.xlu0 %v1064, 125
        %v1070 = vpop.permute.xlu0 %1069
        %v1073 = vadd.f32 %v1059, %v1068
        %v1074 = vadd.f32 %v1060, %v1070
        %s1075 = sld [smem:[#allocation3 + $0x43]]
        %v1076 = vstv %s1075
        %v1077 = vmul.f32 %v1076, %v1026
        %v1078 = vmul.f32 %v1076, %v1027
        %1081 = vrot.lane.b32.xlu0 %v1077, 124
        %v1082 = vpop.permute.xlu0 %1081
        %1083 = vrot.lane.b32.xlu0 %v1078, 124
        %v1084 = vpop.permute.xlu0 %1083
        %v1087 = vadd.f32 %v1073, %v1082
        %v1088 = vadd.f32 %v1074, %v1084
        %s1089 = sld [smem:[#allocation3 + $0x44]]
        %v1090 = vstv %s1089
        %v1091 = vmul.f32 %v1090, %v1026
        %v1092 = vmul.f32 %v1090, %v1027
        %1095 = vrot.lane.b32.xlu0 %v1091, 123
        %v1096 = vpop.permute.xlu0 %1095
        %1097 = vrot.lane.b32.xlu0 %v1092, 123
        %v1098 = vpop.permute.xlu0 %1097
        %v1101 = vadd.f32 %v1087, %v1096
        %v1102 = vadd.f32 %v1088, %v1098
        %s1103 = sld [smem:[#allocation3 + $0x45]]
        %v1104 = vstv %s1103
        %v1105 = vmul.f32 %v1104, %v1026
        %v1106 = vmul.f32 %v1104, %v1027
        %1109 = vrot.lane.b32.xlu0 %v1105, 122
        %v1110 = vpop.permute.xlu0 %1109
        %1111 = vrot.lane.b32.xlu0 %v1106, 122
        %v1112 = vpop.permute.xlu0 %1111
        %v1115 = vadd.f32 %v1101, %v1110
        %v1116 = vadd.f32 %v1102, %v1112
        %s1117 = sld [smem:[#allocation3 + $0x46]]
        %v1118 = vld [vmem:[%s194 + $0x3] sm:$0xff]
        %v1119 = vld [vmem:[%s194 + $0xb] sm:$0xff]
        %v1120 = vstv %s1117
        %v1121 = vmul.f32 %v1120, %v1118
        %v1122 = vmul.f32 %v1120, %v1119
        %v1123 = vadd.f32 %v1115, %v1121
        %v1124 = vadd.f32 %v1116, %v1122
        %s1125 = sld [smem:[#allocation3 + $0x47]]
        %v1126 = vstv %s1125
        %v1127 = vmul.f32 %v1126, %v1118
        %v1128 = vmul.f32 %v1126, %v1119
        %1131 = vrot.lane.b32.xlu0 %v1127, 127
        %v1132 = vpop.permute.xlu0 %1131
        %1133 = vrot.lane.b32.xlu0 %v1128, 127
        %v1134 = vpop.permute.xlu0 %1133
        %v1137 = vadd.f32 %v1123, %v1132
        %v1138 = vadd.f32 %v1124, %v1134
        %s1139 = sld [smem:[#allocation3 + $0x48]]
        %v1140 = vstv %s1139
        %v1141 = vmul.f32 %v1140, %v1118
        %v1142 = vmul.f32 %v1140, %v1119
        %1145 = vrot.lane.b32.xlu0 %v1141, 126
        %v1146 = vpop.permute.xlu0 %1145
        %1147 = vrot.lane.b32.xlu0 %v1142, 126
        %v1148 = vpop.permute.xlu0 %1147
        %v1151 = vadd.f32 %v1137, %v1146
        %v1152 = vadd.f32 %v1138, %v1148
        %s1153 = sld [smem:[#allocation3 + $0x49]]
        %v1154 = vstv %s1153
        %v1155 = vmul.f32 %v1154, %v1118
        %v1156 = vmul.f32 %v1154, %v1119
        %1159 = vrot.lane.b32.xlu0 %v1155, 125
        %v1160 = vpop.permute.xlu0 %1159
        %1161 = vrot.lane.b32.xlu0 %v1156, 125
        %v1162 = vpop.permute.xlu0 %1161
        %v1165 = vadd.f32 %v1151, %v1160
        %v1166 = vadd.f32 %v1152, %v1162
        %s1167 = sld [smem:[#allocation3 + $0x4a]]
        %v1168 = vstv %s1167
        %v1169 = vmul.f32 %v1168, %v1118
        %v1170 = vmul.f32 %v1168, %v1119
        %1173 = vrot.lane.b32.xlu0 %v1169, 124
        %v1174 = vpop.permute.xlu0 %1173
        %1175 = vrot.lane.b32.xlu0 %v1170, 124
        %v1176 = vpop.permute.xlu0 %1175
        %v1179 = vadd.f32 %v1165, %v1174
        %v1180 = vadd.f32 %v1166, %v1176
        %s1181 = sld [smem:[#allocation3 + $0x4b]]
        %v1182 = vstv %s1181
        %v1183 = vmul.f32 %v1182, %v1118
        %v1184 = vmul.f32 %v1182, %v1119
        %1187 = vrot.lane.b32.xlu0 %v1183, 123
        %v1188 = vpop.permute.xlu0 %1187
        %1189 = vrot.lane.b32.xlu0 %v1184, 123
        %v1190 = vpop.permute.xlu0 %1189
        %v1193 = vadd.f32 %v1179, %v1188
        %v1194 = vadd.f32 %v1180, %v1190
        %s1195 = sld [smem:[#allocation3 + $0x4c]]
        %v1196 = vstv %s1195
        %v1197 = vmul.f32 %v1196, %v1118
        %v1198 = vmul.f32 %v1196, %v1119
        %1201 = vrot.lane.b32.xlu0 %v1197, 122
        %v1202 = vpop.permute.xlu0 %1201
        %1203 = vrot.lane.b32.xlu0 %v1198, 122
        %v1204 = vpop.permute.xlu0 %1203
        %v1207 = vadd.f32 %v1193, %v1202
        %v1208 = vadd.f32 %v1194, %v1204
        %s1209 = sld [smem:[#allocation3 + $0x4d]]
        %v1210 = vld [vmem:[%s194 + $0x4] sm:$0xff]
        %v1211 = vld [vmem:[%s194 + $0xc] sm:$0xff]
        %v1212 = vstv %s1209
        %v1213 = vmul.f32 %v1212, %v1210
        %v1214 = vmul.f32 %v1212, %v1211
        %v1215 = vadd.f32 %v1207, %v1213
        %v1216 = vadd.f32 %v1208, %v1214
        %s1217 = sld [smem:[#allocation3 + $0x4e]]
        %v1218 = vstv %s1217
        %v1219 = vmul.f32 %v1218, %v1210
        %v1220 = vmul.f32 %v1218, %v1211
        %1223 = vrot.lane.b32.xlu0 %v1219, 127
        %v1224 = vpop.permute.xlu0 %1223
        %1225 = vrot.lane.b32.xlu0 %v1220, 127
        %v1226 = vpop.permute.xlu0 %1225
        %v1229 = vadd.f32 %v1215, %v1224
        %v1230 = vadd.f32 %v1216, %v1226
        %s1231 = sld [smem:[#allocation3 + $0x4f]]
        %v1232 = vstv %s1231
        %v1233 = vmul.f32 %v1232, %v1210
        %v1234 = vmul.f32 %v1232, %v1211
        %1237 = vrot.lane.b32.xlu0 %v1233, 126
        %v1238 = vpop.permute.xlu0 %1237
        %1239 = vrot.lane.b32.xlu0 %v1234, 126
        %v1240 = vpop.permute.xlu0 %1239
        %v1243 = vadd.f32 %v1229, %v1238
        %v1244 = vadd.f32 %v1230, %v1240
        %s1245 = sld [smem:[#allocation3 + $0x50]]
        %v1246 = vstv %s1245
        %v1247 = vmul.f32 %v1246, %v1210
        %v1248 = vmul.f32 %v1246, %v1211
        %1251 = vrot.lane.b32.xlu0 %v1247, 125
        %v1252 = vpop.permute.xlu0 %1251
        %1253 = vrot.lane.b32.xlu0 %v1248, 125
        %v1254 = vpop.permute.xlu0 %1253
        %v1257 = vadd.f32 %v1243, %v1252
        %v1258 = vadd.f32 %v1244, %v1254
        %s1259 = sld [smem:[#allocation3 + $0x51]]
        %v1260 = vstv %s1259
        %v1261 = vmul.f32 %v1260, %v1210
        %v1262 = vmul.f32 %v1260, %v1211
        %1265 = vrot.lane.b32.xlu0 %v1261, 124
        %v1266 = vpop.permute.xlu0 %1265
        %1267 = vrot.lane.b32.xlu0 %v1262, 124
        %v1268 = vpop.permute.xlu0 %1267
        %v1271 = vadd.f32 %v1257, %v1266
        %v1272 = vadd.f32 %v1258, %v1268
        %s1273 = sld [smem:[#allocation3 + $0x52]]
        %v1274 = vstv %s1273
        %v1275 = vmul.f32 %v1274, %v1210
        %v1276 = vmul.f32 %v1274, %v1211
        %1279 = vrot.lane.b32.xlu0 %v1275, 123
        %v1280 = vpop.permute.xlu0 %1279
        %1281 = vrot.lane.b32.xlu0 %v1276, 123
        %v1282 = vpop.permute.xlu0 %1281
        %v1285 = vadd.f32 %v1271, %v1280
        %v1286 = vadd.f32 %v1272, %v1282
        %s1287 = sld [smem:[#allocation3 + $0x53]]
        %v1288 = vstv %s1287
        %v1289 = vmul.f32 %v1288, %v1210
        %v1290 = vmul.f32 %v1288, %v1211
        %1293 = vrot.lane.b32.xlu0 %v1289, 122
        %v1294 = vpop.permute.xlu0 %1293
        %1295 = vrot.lane.b32.xlu0 %v1290, 122
        %v1296 = vpop.permute.xlu0 %1295
        %v1299 = vadd.f32 %v1285, %v1294
        %v1300 = vadd.f32 %v1286, %v1296
        %s1301 = sld [smem:[#allocation3 + $0x54]]
        %v1302 = vld [vmem:[%s194 + $0x5] sm:$0xff]
        %v1303 = vld [vmem:[%s194 + $0xd] sm:$0xff]
        %v1304 = vstv %s1301
        %v1305 = vmul.f32 %v1304, %v1302
        %v1306 = vmul.f32 %v1304, %v1303
        %v1307 = vadd.f32 %v1299, %v1305
        %v1308 = vadd.f32 %v1300, %v1306
        %s1309 = sld [smem:[#allocation3 + $0x55]]
        %v1310 = vstv %s1309
        %v1311 = vmul.f32 %v1310, %v1302
        %v1312 = vmul.f32 %v1310, %v1303
        %1315 = vrot.lane.b32.xlu0 %v1311, 127
        %v1316 = vpop.permute.xlu0 %1315
        %1317 = vrot.lane.b32.xlu0 %v1312, 127
        %v1318 = vpop.permute.xlu0 %1317
        %v1321 = vadd.f32 %v1307, %v1316
        %v1322 = vadd.f32 %v1308, %v1318
        %s1323 = sld [smem:[#allocation3 + $0x56]]
        %v1324 = vstv %s1323
        %v1325 = vmul.f32 %v1324, %v1302
        %v1326 = vmul.f32 %v1324, %v1303
        %1329 = vrot.lane.b32.xlu0 %v1325, 126
        %v1330 = vpop.permute.xlu0 %1329
        %1331 = vrot.lane.b32.xlu0 %v1326, 126
        %v1332 = vpop.permute.xlu0 %1331
        %v1335 = vadd.f32 %v1321, %v1330
        %v1336 = vadd.f32 %v1322, %v1332
        %s1337 = sld [smem:[#allocation3 + $0x57]]
        %v1338 = vstv %s1337
        %v1339 = vmul.f32 %v1338, %v1302
        %v1340 = vmul.f32 %v1338, %v1303
        %1343 = vrot.lane.b32.xlu0 %v1339, 125
        %v1344 = vpop.permute.xlu0 %1343
        %1345 = vrot.lane.b32.xlu0 %v1340, 125
        %v1346 = vpop.permute.xlu0 %1345
        %v1349 = vadd.f32 %v1335, %v1344
        %v1350 = vadd.f32 %v1336, %v1346
        %s1351 = sld [smem:[#allocation3 + $0x58]]
        %v1352 = vstv %s1351
        %v1353 = vmul.f32 %v1352, %v1302
        %v1354 = vmul.f32 %v1352, %v1303
        %1357 = vrot.lane.b32.xlu0 %v1353, 124
        %v1358 = vpop.permute.xlu0 %1357
        %1359 = vrot.lane.b32.xlu0 %v1354, 124
        %v1360 = vpop.permute.xlu0 %1359
        %v1363 = vadd.f32 %v1349, %v1358
        %v1364 = vadd.f32 %v1350, %v1360
        %s1365 = sld [smem:[#allocation3 + $0x59]]
        %v1366 = vstv %s1365
        %v1367 = vmul.f32 %v1366, %v1302
        %v1368 = vmul.f32 %v1366, %v1303
        %1371 = vrot.lane.b32.xlu0 %v1367, 123
        %v1372 = vpop.permute.xlu0 %1371
        %1373 = vrot.lane.b32.xlu0 %v1368, 123
        %v1374 = vpop.permute.xlu0 %1373
        %v1377 = vadd.f32 %v1363, %v1372
        %v1378 = vadd.f32 %v1364, %v1374
        %s1379 = sld [smem:[#allocation3 + $0x5a]]
        %v1380 = vstv %s1379
        %v1381 = vmul.f32 %v1380, %v1302
        %v1382 = vmul.f32 %v1380, %v1303
        %1385 = vrot.lane.b32.xlu0 %v1381, 122
        %v1386 = vpop.permute.xlu0 %1385
        %1387 = vrot.lane.b32.xlu0 %v1382, 122
        %v1388 = vpop.permute.xlu0 %1387
        %v1391 = vadd.f32 %v1377, %v1386
        %v1392 = vadd.f32 %v1378, %v1388
        %s1393 = sld [smem:[#allocation3 + $0x5b]]
        %v1394 = vld [vmem:[%s194 + $0x6] sm:$0xff]
        %v1395 = vld [vmem:[%s194 + $0xe] sm:$0xff]
        %v1396 = vstv %s1393
        %v1397 = vmul.f32 %v1396, %v1394
        %v1398 = vmul.f32 %v1396, %v1395
        %v1399 = vadd.f32 %v1391, %v1397
        %v1400 = vadd.f32 %v1392, %v1398
        %s1401 = sld [smem:[#allocation3 + $0x5c]]
        %v1402 = vstv %s1401
        %v1403 = vmul.f32 %v1402, %v1394
        %v1404 = vmul.f32 %v1402, %v1395
        %1407 = vrot.lane.b32.xlu0 %v1403, 127
        %v1408 = vpop.permute.xlu0 %1407
        %1409 = vrot.lane.b32.xlu0 %v1404, 127
        %v1410 = vpop.permute.xlu0 %1409
        %v1413 = vadd.f32 %v1399, %v1408
        %v1414 = vadd.f32 %v1400, %v1410
        %s1415 = sld [smem:[#allocation3 + $0x5d]]
        %v1416 = vstv %s1415
        %v1417 = vmul.f32 %v1416, %v1394
        %v1418 = vmul.f32 %v1416, %v1395
        %1421 = vrot.lane.b32.xlu0 %v1417, 126
        %v1422 = vpop.permute.xlu0 %1421
        %1423 = vrot.lane.b32.xlu0 %v1418, 126
        %v1424 = vpop.permute.xlu0 %1423
        %v1427 = vadd.f32 %v1413, %v1422
        %v1428 = vadd.f32 %v1414, %v1424
        %s1429 = sld [smem:[#allocation3 + $0x5e]]
        %v1430 = vstv %s1429
        %v1431 = vmul.f32 %v1430, %v1394
        %v1432 = vmul.f32 %v1430, %v1395
        %1435 = vrot.lane.b32.xlu0 %v1431, 125
        %v1436 = vpop.permute.xlu0 %1435
        %1437 = vrot.lane.b32.xlu0 %v1432, 125
        %v1438 = vpop.permute.xlu0 %1437
        %v1441 = vadd.f32 %v1427, %v1436
        %v1442 = vadd.f32 %v1428, %v1438
        %s1443 = sld [smem:[#allocation3 + $0x5f]]
        %v1444 = vstv %s1443
        %v1445 = vmul.f32 %v1444, %v1394
        %v1446 = vmul.f32 %v1444, %v1395
        %1449 = vrot.lane.b32.xlu0 %v1445, 124
        %v1450 = vpop.permute.xlu0 %1449
        %1451 = vrot.lane.b32.xlu0 %v1446, 124
        %v1452 = vpop.permute.xlu0 %1451
        %v1455 = vadd.f32 %v1441, %v1450
        %v1456 = vadd.f32 %v1442, %v1452
        %s1457 = sld [smem:[#allocation3 + $0x60]]
        %v1458 = vstv %s1457
        %v1459 = vmul.f32 %v1458, %v1394
        %v1460 = vmul.f32 %v1458, %v1395
        %1463 = vrot.lane.b32.xlu0 %v1459, 123
        %v1464 = vpop.permute.xlu0 %1463
        %1465 = vrot.lane.b32.xlu0 %v1460, 123
        %v1466 = vpop.permute.xlu0 %1465
        %v1469 = vadd.f32 %v1455, %v1464
        %v1470 = vadd.f32 %v1456, %v1466
        %s1471 = sld [smem:[#allocation3 + $0x61]]
        %v1472 = vstv %s1471
        %v1473 = vmul.f32 %v1472, %v1394
        %v1474 = vmul.f32 %v1472, %v1395
        %1477 = vrot.lane.b32.xlu0 %v1473, 122
        %v1478 = vpop.permute.xlu0 %1477
        %1479 = vrot.lane.b32.xlu0 %v1474, 122
        %v1480 = vpop.permute.xlu0 %1479
        %v1483 = vadd.f32 %v1469, %v1478
        %v1484 = vadd.f32 %v1470, %v1480
        %v1485 = vxor.u32 %v1483, 2147483648
        %v1486 = vxor.u32 %v1484, 2147483648
        %v1487 = vmul.f32 %v1485, 1.442695
        %v1488 = vpow.pop %v1487
        %v1489 = vmul.f32 %v1486, 1.442695
        %v1490 = vpow.pop %v1489
        %v1491 = vadd.f32 %v1488, 1.0
        %v1492 = vadd.f32 %v1490, 1.0
        %v1493 = vrcp.pop %v1491
        %v1494 = vmul.f32 1.0, %v1493
        %v1495 = vrcp.pop %v1492
        %v1496 = vmul.f32 1.0, %v1495
        %vm1497 = vcmask 130048
        %1498 = vst.msk [vmem:[%s157] sm:$0xff] %vm1497, %v1494
        %1499 = vst.msk [vmem:[%s157 + $0x8] sm:$0xff] %vm1497, %v1496
        %p1500 = scmp.lt.s32.totalorder %s14, 1
        %s1501 = scalar_select %p1500, %s14, 1
        %s1502 = smul.addr %s1501, 2
        %s1503 = smul.addr %s1502, 8
        %s1504 = scalar_lea.vmem %s2, %s1503
        // Predicated region
        $region37: #{spatial_attention_pallas.4} parent=27 // pred_check
          %p1505 = pneg %p79
        $region38: #{spatial_attention_pallas.4} parent=27 // pred_check_branch
          %1507 = sbr.rel (%p1505) target = $region40
        $region39: #{spatial_attention_pallas.4} parent=27 // pred_region
          _
        $region40: #{spatial_attention_pallas.4} parent=27 // pred_fallthru
          _
      $region28: #{spatial_attention_pallas.4} parent=5 // pred_fallthru
        _
      %p1508 = scmp.le.s32.totalorder 2, %s9
      // Predicated region
      $region41: #{spatial_attention_pallas.4} parent=5 // pred_check
        %p1509 = pneg %p1508
      $region42: #{spatial_attention_pallas.4} parent=5 // pred_check_branch
        %1511 = sbr.rel (%p1509) target = $region44
      $region43: #{spatial_attention_pallas.4} parent=5 // pred_region
        %s1512 = ssub.s32 %s9, 2
        // Predicated region
        $region45: #{spatial_attention_pallas.4} parent=43 // pred_check
          %p1513 = pneg %p85
        $region46: #{spatial_attention_pallas.4} parent=43 // pred_check_branch
          %1515 = sbr.rel (%p1513) target = $region48
        $region47: #{spatial_attention_pallas.4} parent=43 // pred_region
          %p1516 = scmp.lt.s32.totalorder %s15, 1
          %s1517 = scalar_select %p1516, %s15, 1
          %s1518 = smul.addr %s1517, 2
          %s1519 = smul.addr %s1518, 8
          %s1520 = scalar_lea.vmem %s2, %s1519
        $region48: #{spatial_attention_pallas.4} parent=43 // pred_fallthru
          _
      $region44: #{spatial_attention_pallas.4} parent=5 // pred_fallthru
        _
    $region6: #{spatial_attention_pallas.4} parent=1 // loop_footer
      %s13 = sadd.s32 1, %s9
    $region7: #{spatial_attention_pallas.4} parent=1 // loop_footer_branch
      %8 = sbr.rel target = $region3
    $region8: #{spatial_attention_pallas.4} parent=1 // loop_exit
      _
    %1521 = vsyncpa [#allocation4], 1
    %s1522 = scalar_lea.sflag [#allocation4], 1
    %1523 = vsyncpa %s1522, 1

</llo_original>
